<compile_context>
chip_gen: v6e
topology: v6e:2x2x1
jax: 0.10.0
libtpu: 0.0.40
codegen_flags: <defaults>
</compile_context>

<pallas_src>
import numpy as np
import jax
import jax.numpy as jnp
from jax import lax
from jax.experimental import pallas as pl
from jax.experimental.pallas import tpu as pltpu


BBLK = 8  # batch rows per grid step = one full sublane group


# --------------------------------------------------------------------------
# Fused Pallas kernel: BiLSTM recurrence + flatten + fc1/leaky_relu + fc2/sigmoid
# --------------------------------------------------------------------------
def bilstm_fused_kernel(x_ref,     # (T, BBLK, 2D)   rows: [x[t] | x[T-1-t]]
                        wi_ref,    # (2D, 4*GP)      block-structured input weights
                        b_ref,     # (1, 4*GP)       combined LSTM biases
                        wh_ref,    # (2H, 4*GP)      block-diagonal recurrent weights
                        w1p_ref,   # (T, 2H, 2H)     fc1 weight blocks paired per step
                        b1_ref,    # (1, 2H)
                        w2_ref,    # (2H, O)
                        b2_ref,    # (1, O)
                        out_ref,   # (BBLK, O)
                        xw_ref,    # scratch (T, BBLK, 4*GP)  projected gate inputs
                        hs_ref):   # scratch (T, BBLK, 2H)    per-step hidden states
    T, BB, _ = x_ref.shape
    H2 = wh_ref.shape[0]             # 2H  (fwd | bwd hidden, unpadded)
    GP = wh_ref.shape[1] // 4        # padded per-gate lane block (multiple of 128)

    # ---- hoisted input projection: all timesteps, both directions, bias folded.
    # wi has block structure: rows 0:D feed forward-lane columns, rows D:2D feed
    # backward-lane columns, so xw_ref[t] already holds the per-step combined
    # gate inputs (no per-step fwd/bwd select needed).  Entirely off the
    # recurrence critical path.
    wi = wi_ref[...]
    bias = b_ref[...]
    for t in range(T):               # static unroll: T fixed & tiny
        xw_ref[t] = (jnp.dot(x_ref[t], wi, preferred_element_type=jnp.float32)
                     + bias)

    h = jnp.zeros((BB, H2), jnp.float32)   # [h_fwd | h_bwd]
    c = jnp.zeros((BB, H2), jnp.float32)

    # ---- fused fwd+bwd recurrence -------------------------------------------
    # TODO(synk): hold Wh resident in the MXU across the 8 steps via
    # pltpu.matmul_push_rhs / matmul_acc_lhs / matmul_pop; here we re-read it
    # from VMEM each step to keep vreg live ranges short and let Mosaic decide.
    for t in range(T):               # static unroll: T fixed & tiny
        gates = xw_ref[t] + jnp.dot(h, wh_ref[...],
                                    preferred_element_type=jnp.float32)  # (BB, 4*GP)
        # Gate slabs start at vreg-aligned lane offsets (GP is a multiple of 128);
        # activations only on the lanes that are actually used.
        i_g = jax.nn.sigmoid(gates[:, 0 * GP:0 * GP + H2])
        f_g = jax.nn.sigmoid(gates[:, 1 * GP:1 * GP + H2])
        g_g = jnp.tanh(gates[:, 2 * GP:2 * GP + H2])
        o_g = jax.nn.sigmoid(gates[:, 3 * GP:3 * GP + H2])
        c = f_g * c + i_g * g_g
        h = o_g * jnp.tanh(c)
        hs_ref[t] = h                # stash; fc1 dots deferred off the recurrence

    # ---- deferred fc1 accumulation (independent dots, after the serial chain) --
    fc1 = jnp.zeros((BB, H2), jnp.float32)
    for t in range(T):
        fc1 = fc1 + jnp.dot(hs_ref[t], w1p_ref[t],
                            preferred_element_type=jnp.float32)
    fc1 = fc1 + b1_ref[...]
    fc1 = jnp.where(fc1 >= 0, fc1, 0.01 * fc1)        # leaky_relu, slope 0.01

    # ---- fused fc2 + sigmoid --------------------------------------------------
    y = (jnp.dot(fc1, w2_ref[...], preferred_element_type=jnp.float32)
         + b2_ref[...])
    out_ref[...] = jax.nn.sigmoid(y)


# --------------------------------------------------------------------------
# Parameter construction (deterministic, PyTorch-style uniform init)
# --------------------------------------------------------------------------
def init_params(key, input_dims, hidden_dims, output_dims, n_timestamps):
    H = hidden_dims
    ks = jax.random.split(key, 16)
    bound_lstm = 1.0 / np.sqrt(H)

    def u(k, shape, bound):
        return jax.random.uniform(k, shape, jnp.float32, -bound, bound)

    p = {}
    # LSTM, forward direction (PyTorch shapes: (4H, D), (4H, H), (4H,), (4H,))
    p["w_ih_f"] = u(ks[0], (4 * H, input_dims), bound_lstm)
    p["w_hh_f"] = u(ks[1], (4 * H, H), bound_lstm)
    p["b_ih_f"] = u(ks[2], (4 * H,), bound_lstm)
    p["b_hh_f"] = u(ks[3], (4 * H,), bound_lstm)
    # LSTM, reverse direction
    p["w_ih_b"] = u(ks[4], (4 * H, input_dims), bound_lstm)
    p["w_hh_b"] = u(ks[5], (4 * H, H), bound_lstm)
    p["b_ih_b"] = u(ks[6], (4 * H,), bound_lstm)
    p["b_hh_b"] = u(ks[7], (4 * H,), bound_lstm)
    # fc1: (2H, T*2H) weight, (2H,) bias
    fan1 = n_timestamps * H * 2
    p["w_fc1"] = u(ks[8], (2 * H, fan1), 1.0 / np.sqrt(fan1))
    p["b_fc1"] = u(ks[9], (2 * H,), 1.0 / np.sqrt(fan1))
    # fc2: (O, 2H) weight, (O,) bias
    fan2 = 2 * H
    p["w_fc2"] = u(ks[10], (output_dims, fan2), 1.0 / np.sqrt(fan2))
    p["b_fc2"] = u(ks[11], (output_dims,), 1.0 / np.sqrt(fan2))
    return p


# --------------------------------------------------------------------------
# Forward pass wrapper: one fused pallas_call, gridded over batch blocks
# --------------------------------------------------------------------------
def bilstm_forward(x, params):
    B, T, D = x.shape
    H = params["w_hh_f"].shape[1]
    O = params["w_fc2"].shape[0]
    H2 = 2 * H
    GP = max(128, ((H2 + 127) // 128) * 128)   # per-gate lane block, vreg-aligned
    G4 = 4 * GP
    f32 = jnp.float32

    # ---- one-time parameter layout prep (would be cached in a real model) ----
    # Gate-major layout, each gate block padded to GP lanes:
    #   [ i_f i_b pad | f_f f_b pad | g_f g_b pad | o_f o_b pad ]
    def gate_pack(fwd, bwd, lead):             # (lead,4,H),(lead,4,H) -> (lead,4*GP)
        pad = jnp.zeros((lead, 4, GP - H2), f32)
        return jnp.concatenate([fwd, bwd, pad], axis=2).reshape(lead, G4)

    # Input weights, block-structured over the doubled input [x[t] | x[T-1-t]]:
    # rows 0:D feed forward-lane columns, rows D:2D feed backward-lane columns.
    wif = params["w_ih_f"].T.reshape(D, 4, H)
    wib = params["w_ih_b"].T.reshape(D, 4, H)
    zD = jnp.zeros((D, 4, H), f32)
    wi_comb = jnp.concatenate([gate_pack(wif, zD, D),
                               gate_pack(zD, wib, D)], axis=0)          # (2D, 4GP)

    bf = (params["b_ih_f"] + params["b_hh_f"]).reshape(1, 4, H)
    bb = (params["b_ih_b"] + params["b_hh_b"]).reshape(1, 4, H)
    b_comb = gate_pack(bf, bb, 1)                                       # (1, 4GP)

    # Block-diagonal recurrent weights: rows 0:H act on h_fwd, rows H:2H on h_bwd.
    whf = params["w_hh_f"].T.reshape(H, 4, H)
    whb = params["w_hh_b"].T.reshape(H, 4, H)
    zH = jnp.zeros((H, 4, H), f32)
    wh_comb = jnp.concatenate([gate_pack(whf, zH, H),
                               gate_pack(zH, whb, H)], axis=0)          # (2H, 4GP)

    # fc1 weight re-paired per loop step: step t consumes [h_fwd(t), h_bwd(T-1-t)]
    w1t = params["w_fc1"].T.reshape(T, 2, H, H2)                        # (t, dir, H, 2H)
    w1_paired = jnp.concatenate([w1t[:, 0], w1t[::-1, 1]], axis=1)      # (T, 2H, 2H)

    b1 = params["b_fc1"].reshape(1, H2)
    w2 = params["w_fc2"].T                                              # (2H, O)
    b2 = params["b_fc2"].reshape(1, O)

    # ---- batch padding to a multiple of BBLK (>= one full sublane group) -----
    n_blk = (B + BBLK - 1) // BBLK
    Bp = n_blk * BBLK
    x_tm = jnp.transpose(x, (1, 0, 2))                                  # (T, B, D)
    if Bp != B:
        x_tm = jnp.pad(x_tm, ((0, 0), (0, Bp - B), (0, 0)))
    # per-step paired input: fwd lanes consume x[t], bwd lanes consume x[T-1-t]
    x_pair = jnp.concatenate([x_tm, x_tm[::-1]], axis=-1)               # (T, Bp, 2D)

    out = pl.pallas_call(
        bilstm_fused_kernel,
        out_shape=jax.ShapeDtypeStruct((Bp, O), f32),
        grid=(n_blk,),
        in_specs=[
            pl.BlockSpec((T, BBLK, 2 * D), lambda i: (0, i, 0)),
            pl.BlockSpec((2 * D, G4),      lambda i: (0, 0)),
            pl.BlockSpec((1, G4),          lambda i: (0, 0)),
            pl.BlockSpec((H2, G4),         lambda i: (0, 0)),
            pl.BlockSpec((T, H2, H2),      lambda i: (0, 0, 0)),
            pl.BlockSpec((1, H2),          lambda i: (0, 0)),
            pl.BlockSpec((H2, O),          lambda i: (0, 0)),
            pl.BlockSpec((1, O),           lambda i: (0, 0)),
        ],
        out_specs=pl.BlockSpec((BBLK, O), lambda i: (i, 0)),
        scratch_shapes=[pltpu.VMEM((T, BBLK, G4), f32),   # projected gate inputs
                        pltpu.VMEM((T, BBLK, H2), f32)],  # stashed hidden states
        compiler_params=pltpu.CompilerParams(
            dimension_semantics=("parallel",)),
    )(x_pair, wi_comb, b_comb, wh_comb, w1_paired, b1, w2, b2)
    return out[:B]


# --------------------------------------------------------------------------
# Pure-JAX reference (for correctness check)
# --------------------------------------------------------------------------
def reference_forward(x, params):
    B, T, D = x.shape
    H = params["w_hh_f"].shape[1]

    def run_dir(xs, w_ih, w_hh, b_ih, b_hh):
        wi, wh = w_ih.T, w_hh.T
        b = (b_ih + b_hh)[None, :]

        def step(carry, x_t):
            h, c = carry
            gates = x_t @ wi + h @ wh + b
            i = jax.nn.sigmoid(gates[:, 0 * H:1 * H])
            f = jax.nn.sigmoid(gates[:, 1 * H:2 * H])
            g = jnp.tanh(gates[:, 2 * H:3 * H])
            o = jax.nn.sigmoid(gates[:, 3 * H:4 * H])
            c_new = f * c + i * g
            h_new = o * jnp.tanh(c_new)
            return (h_new, c_new), h_new

        init = (jnp.zeros((B, H), jnp.float32), jnp.zeros((B, H), jnp.float32))
        _, hs = lax.scan(step, init, xs)     # (T, B, H)
        return hs

    x_tbd = jnp.transpose(x, (1, 0, 2))
    hf = run_dir(x_tbd, params["w_ih_f"], params["w_hh_f"],
                 params["b_ih_f"], params["b_hh_f"])
    hb = run_dir(x_tbd[::-1], params["w_ih_b"], params["w_hh_b"],
                 params["b_ih_b"], params["b_hh_b"])[::-1]
    lstm_out = jnp.transpose(jnp.concatenate([hf, hb], axis=-1), (1, 0, 2))
    flat = lstm_out.reshape(B, -1)
    h = flat @ params["w_fc1"].T + params["b_fc1"]
    h = jnp.where(h >= 0, h, 0.01 * h)
    y = h @ params["w_fc2"].T + params["b_fc2"]
    return jax.nn.sigmoid(y)


if __name__ == "__main__":
    B, T, D = 2, 8, 4          # batch, n_timestamps, input_dims
    H, O = 32, 3               # hidden_dims, output_dims

    key = jax.random.PRNGKey(0)
    k_x, k_p = jax.random.split(key)
    x = jax.random.normal(k_x, (B, T, D), jnp.float32)
    params = init_params(k_p, D, H, O, T)

    fwd = jax.jit(bilstm_forward)
    out = jax.block_until_ready(fwd(x, params))
    ref = jax.block_until_ready(reference_forward(x, params))

    np.testing.assert_allclose(np.asarray(out), np.asarray(ref),
                               rtol=1e-4, atol=1e-5)
    assert out.shape == (B, O)
    print("KERNEL_OK")
</pallas_src>

<mosaic_0001>
module attributes {stable_mosaic.version = 11 : i64} {
  func.func @bilstm_fused_kernel(%arg0: i32, %arg1: memref<8x8x8xf32, #tpu.memory_space<vmem>>, %arg2: memref<8x512xf32, #tpu.memory_space<vmem>>, %arg3: memref<1x512xf32, #tpu.memory_space<vmem>>, %arg4: memref<64x512xf32, #tpu.memory_space<vmem>>, %arg5: memref<8x64x64xf32, #tpu.memory_space<vmem>>, %arg6: memref<1x64xf32, #tpu.memory_space<vmem>>, %arg7: memref<64x3xf32, #tpu.memory_space<vmem>>, %arg8: memref<1x3xf32, #tpu.memory_space<vmem>>, %arg9: memref<8x3xf32, #tpu.memory_space<vmem>>, %arg10: memref<8x8x512xf32, #tpu.memory_space<vmem>>, %arg11: memref<8x8x64xf32, #tpu.memory_space<vmem>>) attributes {dimension_semantics = [#tpu.dimension_semantics<parallel>], iteration_bounds = array<i64: 1>, scalar_prefetch = 0 : i64, scratch_operands = 2 : i64, tpu.core_type = #tpu.core_type<tc>, window_params = [{transform_indices = @transform_0, window_bounds = array<i64: 8, 8, 8>}, {pipeline_mode = #tpu.pipeline_mode<synchronous>, transform_indices = @transform_1, window_bounds = array<i64: 8, 512>}, {pipeline_mode = #tpu.pipeline_mode<synchronous>, transform_indices = @transform_2, window_bounds = array<i64: 1, 512>}, {pipeline_mode = #tpu.pipeline_mode<synchronous>, transform_indices = @transform_3, window_bounds = array<i64: 64, 512>}, {pipeline_mode = #tpu.pipeline_mode<synchronous>, transform_indices = @transform_4, window_bounds = array<i64: 8, 64, 64>}, {pipeline_mode = #tpu.pipeline_mode<synchronous>, transform_indices = @transform_5, window_bounds = array<i64: 1, 64>}, {pipeline_mode = #tpu.pipeline_mode<synchronous>, transform_indices = @transform_6, window_bounds = array<i64: 64, 3>}, {pipeline_mode = #tpu.pipeline_mode<synchronous>, transform_indices = @transform_7, window_bounds = array<i64: 1, 3>}, {transform_indices = @transform_8, window_bounds = array<i64: 8, 3>}]} {
    %c0 = arith.constant 0 : index
    %c0_0 = arith.constant 0 : index
    %0 = vector.load %arg2[%c0, %c0_0] : memref<8x512xf32, #tpu.memory_space<vmem>>, vector<8x512xf32>
    %c0_1 = arith.constant 0 : index
    %c0_2 = arith.constant 0 : index
    %1 = vector.load %arg3[%c0_1, %c0_2] : memref<1x512xf32, #tpu.memory_space<vmem>>, vector<1x512xf32>
    %c0_3 = arith.constant 0 : index
    %c0_4 = arith.constant 0 : index
    %c0_5 = arith.constant 0 : index
    %2 = vector.load %arg1[%c0_3, %c0_4, %c0_5] : memref<8x8x8xf32, #tpu.memory_space<vmem>>, vector<1x8x8xf32>
    %3 = vector.shape_cast %2 : vector<1x8x8xf32> to vector<8x8xf32>
    %cst = arith.constant dense<0.000000e+00> : vector<8x512xf32>
    %4 = tpu.matmul %3, %0, %cst {dimension_numbers = #tpu.dot_dimension_numbers<[1], [0], [0], [1], [0, 0, 1, 1], [], []>} : vector<8x8xf32>, vector<8x512xf32>, vector<8x512xf32> -> vector<8x512xf32>
    %5 = vector.broadcast %1 : vector<1x512xf32> to vector<8x512xf32>
    %6 = arith.addf %4, %5 : vector<8x512xf32>
    %c0_6 = arith.constant 0 : index
    %c0_7 = arith.constant 0 : index
    %c0_8 = arith.constant 0 : index
    %7 = vector.load %arg10[%c0_6, %c0_7, %c0_8] : memref<8x8x512xf32, #tpu.memory_space<vmem>>, vector<1x8x512xf32>
    %8 = vector.shape_cast %7 : vector<1x8x512xf32> to vector<8x512xf32>
    %9 = vector.shape_cast %6 : vector<8x512xf32> to vector<1x8x512xf32>
    tpu.vector_store %arg10[%c0_6, %c0_7, %c0_8], %9 {strides = array<i32>} : memref<8x8x512xf32, #tpu.memory_space<vmem>>, vector<1x8x512xf32>,
    %c1 = arith.constant 1 : index
    %c0_9 = arith.constant 0 : index
    %c0_10 = arith.constant 0 : index
    %10 = vector.load %arg1[%c1, %c0_9, %c0_10] : memref<8x8x8xf32, #tpu.memory_space<vmem>>, vector<1x8x8xf32>
    %11 = vector.shape_cast %10 : vector<1x8x8xf32> to vector<8x8xf32>
    %cst_11 = arith.constant dense<0.000000e+00> : vector<8x512xf32>
    %12 = tpu.matmul %11, %0, %cst_11 {dimension_numbers = #tpu.dot_dimension_numbers<[1], [0], [0], [1], [0, 0, 1, 1], [], []>} : vector<8x8xf32>, vector<8x512xf32>, vector<8x512xf32> -> vector<8x512xf32>
    %13 = vector.broadcast %1 : vector<1x512xf32> to vector<8x512xf32>
    %14 = arith.addf %12, %13 : vector<8x512xf32>
    %c1_12 = arith.constant 1 : index
    %c0_13 = arith.constant 0 : index
    %c0_14 = arith.constant 0 : index
    %15 = vector.load %arg10[%c1_12, %c0_13, %c0_14] : memref<8x8x512xf32, #tpu.memory_space<vmem>>, vector<1x8x512xf32>
    %16 = vector.shape_cast %15 : vector<1x8x512xf32> to vector<8x512xf32>
    %17 = vector.shape_cast %14 : vector<8x512xf32> to vector<1x8x512xf32>
    tpu.vector_store %arg10[%c1_12, %c0_13, %c0_14], %17 {strides = array<i32>} : memref<8x8x512xf32, #tpu.memory_space<vmem>>, vector<1x8x512xf32>,
    %c2 = arith.constant 2 : index
    %c0_15 = arith.constant 0 : index
    %c0_16 = arith.constant 0 : index
    %18 = vector.load %arg1[%c2, %c0_15, %c0_16] : memref<8x8x8xf32, #tpu.memory_space<vmem>>, vector<1x8x8xf32>
    %19 = vector.shape_cast %18 : vector<1x8x8xf32> to vector<8x8xf32>
    %cst_17 = arith.constant dense<0.000000e+00> : vector<8x512xf32>
    %20 = tpu.matmul %19, %0, %cst_17 {dimension_numbers = #tpu.dot_dimension_numbers<[1], [0], [0], [1], [0, 0, 1, 1], [], []>} : vector<8x8xf32>, vector<8x512xf32>, vector<8x512xf32> -> vector<8x512xf32>
    %21 = vector.broadcast %1 : vector<1x512xf32> to vector<8x512xf32>
    %22 = arith.addf %20, %21 : vector<8x512xf32>
    %c2_18 = arith.constant 2 : index
    %c0_19 = arith.constant 0 : index
    %c0_20 = arith.constant 0 : index
    %23 = vector.load %arg10[%c2_18, %c0_19, %c0_20] : memref<8x8x512xf32, #tpu.memory_space<vmem>>, vector<1x8x512xf32>
    %24 = vector.shape_cast %23 : vector<1x8x512xf32> to vector<8x512xf32>
    %25 = vector.shape_cast %22 : vector<8x512xf32> to vector<1x8x512xf32>
    tpu.vector_store %arg10[%c2_18, %c0_19, %c0_20], %25 {strides = array<i32>} : memref<8x8x512xf32, #tpu.memory_space<vmem>>, vector<1x8x512xf32>,
    %c3 = arith.constant 3 : index
    %c0_21 = arith.constant 0 : index
    %c0_22 = arith.constant 0 : index
    %26 = vector.load %arg1[%c3, %c0_21, %c0_22] : memref<8x8x8xf32, #tpu.memory_space<vmem>>, vector<1x8x8xf32>
    %27 = vector.shape_cast %26 : vector<1x8x8xf32> to vector<8x8xf32>
    %cst_23 = arith.constant dense<0.000000e+00> : vector<8x512xf32>
    %28 = tpu.matmul %27, %0, %cst_23 {dimension_numbers = #tpu.dot_dimension_numbers<[1], [0], [0], [1], [0, 0, 1, 1], [], []>} : vector<8x8xf32>, vector<8x512xf32>, vector<8x512xf32> -> vector<8x512xf32>
    %29 = vector.broadcast %1 : vector<1x512xf32> to vector<8x512xf32>
    %30 = arith.addf %28, %29 : vector<8x512xf32>
    %c3_24 = arith.constant 3 : index
    %c0_25 = arith.constant 0 : index
    %c0_26 = arith.constant 0 : index
    %31 = vector.load %arg10[%c3_24, %c0_25, %c0_26] : memref<8x8x512xf32, #tpu.memory_space<vmem>>, vector<1x8x512xf32>
    %32 = vector.shape_cast %31 : vector<1x8x512xf32> to vector<8x512xf32>
    %33 = vector.shape_cast %30 : vector<8x512xf32> to vector<1x8x512xf32>
    tpu.vector_store %arg10[%c3_24, %c0_25, %c0_26], %33 {strides = array<i32>} : memref<8x8x512xf32, #tpu.memory_space<vmem>>, vector<1x8x512xf32>,
    %c4 = arith.constant 4 : index
    %c0_27 = arith.constant 0 : index
    %c0_28 = arith.constant 0 : index
    %34 = vector.load %arg1[%c4, %c0_27, %c0_28] : memref<8x8x8xf32, #tpu.memory_space<vmem>>, vector<1x8x8xf32>
    %35 = vector.shape_cast %34 : vector<1x8x8xf32> to vector<8x8xf32>
    %cst_29 = arith.constant dense<0.000000e+00> : vector<8x512xf32>
    %36 = tpu.matmul %35, %0, %cst_29 {dimension_numbers = #tpu.dot_dimension_numbers<[1], [0], [0], [1], [0, 0, 1, 1], [], []>} : vector<8x8xf32>, vector<8x512xf32>, vector<8x512xf32> -> vector<8x512xf32>
    %37 = vector.broadcast %1 : vector<1x512xf32> to vector<8x512xf32>
    %38 = arith.addf %36, %37 : vector<8x512xf32>
    %c4_30 = arith.constant 4 : index
    %c0_31 = arith.constant 0 : index
    %c0_32 = arith.constant 0 : index
    %39 = vector.load %arg10[%c4_30, %c0_31, %c0_32] : memref<8x8x512xf32, #tpu.memory_space<vmem>>, vector<1x8x512xf32>
    %40 = vector.shape_cast %39 : vector<1x8x512xf32> to vector<8x512xf32>
    %41 = vector.shape_cast %38 : vector<8x512xf32> to vector<1x8x512xf32>
    tpu.vector_store %arg10[%c4_30, %c0_31, %c0_32], %41 {strides = array<i32>} : memref<8x8x512xf32, #tpu.memory_space<vmem>>, vector<1x8x512xf32>,
    %c5 = arith.constant 5 : index
    %c0_33 = arith.constant 0 : index
    %c0_34 = arith.constant 0 : index
    %42 = vector.load %arg1[%c5, %c0_33, %c0_34] : memref<8x8x8xf32, #tpu.memory_space<vmem>>, vector<1x8x8xf32>
    %43 = vector.shape_cast %42 : vector<1x8x8xf32> to vector<8x8xf32>
    %cst_35 = arith.constant dense<0.000000e+00> : vector<8x512xf32>
    %44 = tpu.matmul %43, %0, %cst_35 {dimension_numbers = #tpu.dot_dimension_numbers<[1], [0], [0], [1], [0, 0, 1, 1], [], []>} : vector<8x8xf32>, vector<8x512xf32>, vector<8x512xf32> -> vector<8x512xf32>
    %45 = vector.broadcast %1 : vector<1x512xf32> to vector<8x512xf32>
    %46 = arith.addf %44, %45 : vector<8x512xf32>
    %c5_36 = arith.constant 5 : index
    %c0_37 = arith.constant 0 : index
    %c0_38 = arith.constant 0 : index
    %47 = vector.load %arg10[%c5_36, %c0_37, %c0_38] : memref<8x8x512xf32, #tpu.memory_space<vmem>>, vector<1x8x512xf32>
    %48 = vector.shape_cast %47 : vector<1x8x512xf32> to vector<8x512xf32>
    %49 = vector.shape_cast %46 : vector<8x512xf32> to vector<1x8x512xf32>
    tpu.vector_store %arg10[%c5_36, %c0_37, %c0_38], %49 {strides = array<i32>} : memref<8x8x512xf32, #tpu.memory_space<vmem>>, vector<1x8x512xf32>,
    %c6 = arith.constant 6 : index
    %c0_39 = arith.constant 0 : index
    %c0_40 = arith.constant 0 : index
    %50 = vector.load %arg1[%c6, %c0_39, %c0_40] : memref<8x8x8xf32, #tpu.memory_space<vmem>>, vector<1x8x8xf32>
    %51 = vector.shape_cast %50 : vector<1x8x8xf32> to vector<8x8xf32>
    %cst_41 = arith.constant dense<0.000000e+00> : vector<8x512xf32>
    %52 = tpu.matmul %51, %0, %cst_41 {dimension_numbers = #tpu.dot_dimension_numbers<[1], [0], [0], [1], [0, 0, 1, 1], [], []>} : vector<8x8xf32>, vector<8x512xf32>, vector<8x512xf32> -> vector<8x512xf32>
    %53 = vector.broadcast %1 : vector<1x512xf32> to vector<8x512xf32>
    %54 = arith.addf %52, %53 : vector<8x512xf32>
    %c6_42 = arith.constant 6 : index
    %c0_43 = arith.constant 0 : index
    %c0_44 = arith.constant 0 : index
    %55 = vector.load %arg10[%c6_42, %c0_43, %c0_44] : memref<8x8x512xf32, #tpu.memory_space<vmem>>, vector<1x8x512xf32>
    %56 = vector.shape_cast %55 : vector<1x8x512xf32> to vector<8x512xf32>
    %57 = vector.shape_cast %54 : vector<8x512xf32> to vector<1x8x512xf32>
    tpu.vector_store %arg10[%c6_42, %c0_43, %c0_44], %57 {strides = array<i32>} : memref<8x8x512xf32, #tpu.memory_space<vmem>>, vector<1x8x512xf32>,
    %c7 = arith.constant 7 : index
    %c0_45 = arith.constant 0 : index
    %c0_46 = arith.constant 0 : index
    %58 = vector.load %arg1[%c7, %c0_45, %c0_46] : memref<8x8x8xf32, #tpu.memory_space<vmem>>, vector<1x8x8xf32>
    %59 = vector.shape_cast %58 : vector<1x8x8xf32> to vector<8x8xf32>
    %cst_47 = arith.constant dense<0.000000e+00> : vector<8x512xf32>
    %60 = tpu.matmul %59, %0, %cst_47 {dimension_numbers = #tpu.dot_dimension_numbers<[1], [0], [0], [1], [0, 0, 1, 1], [], []>} : vector<8x8xf32>, vector<8x512xf32>, vector<8x512xf32> -> vector<8x512xf32>
    %61 = vector.broadcast %1 : vector<1x512xf32> to vector<8x512xf32>
    %62 = arith.addf %60, %61 : vector<8x512xf32>
    %c7_48 = arith.constant 7 : index
    %c0_49 = arith.constant 0 : index
    %c0_50 = arith.constant 0 : index
    %63 = vector.load %arg10[%c7_48, %c0_49, %c0_50] : memref<8x8x512xf32, #tpu.memory_space<vmem>>, vector<1x8x512xf32>
    %64 = vector.shape_cast %63 : vector<1x8x512xf32> to vector<8x512xf32>
    %65 = vector.shape_cast %62 : vector<8x512xf32> to vector<1x8x512xf32>
    tpu.vector_store %arg10[%c7_48, %c0_49, %c0_50], %65 {strides = array<i32>} : memref<8x8x512xf32, #tpu.memory_space<vmem>>, vector<1x8x512xf32>,
    %cst_51 = arith.constant 0.000000e+00 : f32
    %66 = vector.broadcast %cst_51 : f32 to vector<8x64xf32>
    %cst_52 = arith.constant 0.000000e+00 : f32
    %67 = vector.broadcast %cst_52 : f32 to vector<8x64xf32>
    %c0_53 = arith.constant 0 : index
    %c0_54 = arith.constant 0 : index
    %c0_55 = arith.constant 0 : index
    %68 = vector.load %arg10[%c0_53, %c0_54, %c0_55] : memref<8x8x512xf32, #tpu.memory_space<vmem>>, vector<1x8x512xf32>
    %69 = vector.shape_cast %68 : vector<1x8x512xf32> to vector<8x512xf32>
    %c0_56 = arith.constant 0 : index
    %c0_57 = arith.constant 0 : index
    %70 = vector.load %arg4[%c0_56, %c0_57] : memref<64x512xf32, #tpu.memory_space<vmem>>, vector<64x512xf32>
    %cst_58 = arith.constant dense<0.000000e+00> : vector<8x512xf32>
    %71 = tpu.matmul %66, %70, %cst_58 {dimension_numbers = #tpu.dot_dimension_numbers<[1], [0], [0], [1], [0, 0, 1, 1], [], []>} : vector<8x64xf32>, vector<64x512xf32>, vector<8x512xf32> -> vector<8x512xf32>
    %72 = arith.addf %69, %71 : vector<8x512xf32>
    %73 = vector.extract_strided_slice %72 {offsets = [0, 0], sizes = [8, 64], strides = [1, 1]} : vector<8x512xf32> to vector<8x64xf32>
    %74 = arith.negf %73 : vector<8x64xf32>
    %75 = math.exp %74 : vector<8x64xf32>
    %cst_59 = arith.constant 1.000000e+00 : f32
    %76 = vector.broadcast %cst_59 : f32 to vector<8x64xf32>
    %77 = arith.addf %76, %75 : vector<8x64xf32>
    %78 = arith.divf %76, %77 : vector<8x64xf32>
    %79 = vector.extract_strided_slice %72 {offsets = [0, 128], sizes = [8, 64], strides = [1, 1]} : vector<8x512xf32> to vector<8x64xf32>
    %80 = arith.negf %79 : vector<8x64xf32>
    %81 = math.exp %80 : vector<8x64xf32>
    %cst_60 = arith.constant 1.000000e+00 : f32
    %82 = vector.broadcast %cst_60 : f32 to vector<8x64xf32>
    %83 = arith.addf %82, %81 : vector<8x64xf32>
    %84 = arith.divf %82, %83 : vector<8x64xf32>
    %85 = vector.extract_strided_slice %72 {offsets = [0, 256], sizes = [8, 64], strides = [1, 1]} : vector<8x512xf32> to vector<8x64xf32>
    %86 = math.tanh %85 : vector<8x64xf32>
    %87 = vector.extract_strided_slice %72 {offsets = [0, 384], sizes = [8, 64], strides = [1, 1]} : vector<8x512xf32> to vector<8x64xf32>
    %88 = arith.negf %87 : vector<8x64xf32>
    %89 = math.exp %88 : vector<8x64xf32>
    %cst_61 = arith.constant 1.000000e+00 : f32
    %90 = vector.broadcast %cst_61 : f32 to vector<8x64xf32>
    %91 = arith.addf %90, %89 : vector<8x64xf32>
    %92 = arith.divf %90, %91 : vector<8x64xf32>
    %93 = arith.mulf %84, %67 : vector<8x64xf32>
    %94 = arith.mulf %78, %86 : vector<8x64xf32>
    %95 = arith.addf %93, %94 : vector<8x64xf32>
    %96 = math.tanh %95 : vector<8x64xf32>
    %97 = arith.mulf %92, %96 : vector<8x64xf32>
    %c0_62 = arith.constant 0 : index
    %c0_63 = arith.constant 0 : index
    %c0_64 = arith.constant 0 : index
    %98 = vector.load %arg11[%c0_62, %c0_63, %c0_64] : memref<8x8x64xf32, #tpu.memory_space<vmem>>, vector<1x8x64xf32>
    %99 = vector.shape_cast %98 : vector<1x8x64xf32> to vector<8x64xf32>
    %100 = vector.shape_cast %97 : vector<8x64xf32> to vector<1x8x64xf32>
    tpu.vector_store %arg11[%c0_62, %c0_63, %c0_64], %100 {strides = array<i32>} : memref<8x8x64xf32, #tpu.memory_space<vmem>>, vector<1x8x64xf32>,
    %c1_65 = arith.constant 1 : index
    %c0_66 = arith.constant 0 : index
    %c0_67 = arith.constant 0 : index
    %101 = vector.load %arg10[%c1_65, %c0_66, %c0_67] : memref<8x8x512xf32, #tpu.memory_space<vmem>>, vector<1x8x512xf32>
    %102 = vector.shape_cast %101 : vector<1x8x512xf32> to vector<8x512xf32>
    %c0_68 = arith.constant 0 : index
    %c0_69 = arith.constant 0 : index
    %103 = vector.load %arg4[%c0_68, %c0_69] : memref<64x512xf32, #tpu.memory_space<vmem>>, vector<64x512xf32>
    %cst_70 = arith.constant dense<0.000000e+00> : vector<8x512xf32>
    %104 = tpu.matmul %97, %103, %cst_70 {dimension_numbers = #tpu.dot_dimension_numbers<[1], [0], [0], [1], [0, 0, 1, 1], [], []>} : vector<8x64xf32>, vector<64x512xf32>, vector<8x512xf32> -> vector<8x512xf32>
    %105 = arith.addf %102, %104 : vector<8x512xf32>
    %106 = vector.extract_strided_slice %105 {offsets = [0, 0], sizes = [8, 64], strides = [1, 1]} : vector<8x512xf32> to vector<8x64xf32>
    %107 = arith.negf %106 : vector<8x64xf32>
    %108 = math.exp %107 : vector<8x64xf32>
    %cst_71 = arith.constant 1.000000e+00 : f32
    %109 = vector.broadcast %cst_71 : f32 to vector<8x64xf32>
    %110 = arith.addf %109, %108 : vector<8x64xf32>
    %111 = arith.divf %109, %110 : vector<8x64xf32>
    %112 = vector.extract_strided_slice %105 {offsets = [0, 128], sizes = [8, 64], strides = [1, 1]} : vector<8x512xf32> to vector<8x64xf32>
    %113 = arith.negf %112 : vector<8x64xf32>
    %114 = math.exp %113 : vector<8x64xf32>
    %cst_72 = arith.constant 1.000000e+00 : f32
    %115 = vector.broadcast %cst_72 : f32 to vector<8x64xf32>
    %116 = arith.addf %115, %114 : vector<8x64xf32>
    %117 = arith.divf %115, %116 : vector<8x64xf32>
    %118 = vector.extract_strided_slice %105 {offsets = [0, 256], sizes = [8, 64], strides = [1, 1]} : vector<8x512xf32> to vector<8x64xf32>
    %119 = math.tanh %118 : vector<8x64xf32>
    %120 = vector.extract_strided_slice %105 {offsets = [0, 384], sizes = [8, 64], strides = [1, 1]} : vector<8x512xf32> to vector<8x64xf32>
    %121 = arith.negf %120 : vector<8x64xf32>
    %122 = math.exp %121 : vector<8x64xf32>
    %cst_73 = arith.constant 1.000000e+00 : f32
    %123 = vector.broadcast %cst_73 : f32 to vector<8x64xf32>
    %124 = arith.addf %123, %122 : vector<8x64xf32>
    %125 = arith.divf %123, %124 : vector<8x64xf32>
    %126 = arith.mulf %117, %95 : vector<8x64xf32>
    %127 = arith.mulf %111, %119 : vector<8x64xf32>
    %128 = arith.addf %126, %127 : vector<8x64xf32>
    %129 = math.tanh %128 : vector<8x64xf32>
    %130 = arith.mulf %125, %129 : vector<8x64xf32>
    %c1_74 = arith.constant 1 : index
    %c0_75 = arith.constant 0 : index
    %c0_76 = arith.constant 0 : index
    %131 = vector.load %arg11[%c1_74, %c0_75, %c0_76] : memref<8x8x64xf32, #tpu.memory_space<vmem>>, vector<1x8x64xf32>
    %132 = vector.shape_cast %131 : vector<1x8x64xf32> to vector<8x64xf32>
    %133 = vector.shape_cast %130 : vector<8x64xf32> to vector<1x8x64xf32>
    tpu.vector_store %arg11[%c1_74, %c0_75, %c0_76], %133 {strides = array<i32>} : memref<8x8x64xf32, #tpu.memory_space<vmem>>, vector<1x8x64xf32>,
    %c2_77 = arith.constant 2 : index
    %c0_78 = arith.constant 0 : index
    %c0_79 = arith.constant 0 : index
    %134 = vector.load %arg10[%c2_77, %c0_78, %c0_79] : memref<8x8x512xf32, #tpu.memory_space<vmem>>, vector<1x8x512xf32>
    %135 = vector.shape_cast %134 : vector<1x8x512xf32> to vector<8x512xf32>
    %c0_80 = arith.constant 0 : index
    %c0_81 = arith.constant 0 : index
    %136 = vector.load %arg4[%c0_80, %c0_81] : memref<64x512xf32, #tpu.memory_space<vmem>>, vector<64x512xf32>
    %cst_82 = arith.constant dense<0.000000e+00> : vector<8x512xf32>
    %137 = tpu.matmul %130, %136, %cst_82 {dimension_numbers = #tpu.dot_dimension_numbers<[1], [0], [0], [1], [0, 0, 1, 1], [], []>} : vector<8x64xf32>, vector<64x512xf32>, vector<8x512xf32> -> vector<8x512xf32>
    %138 = arith.addf %135, %137 : vector<8x512xf32>
    %139 = vector.extract_strided_slice %138 {offsets = [0, 0], sizes = [8, 64], strides = [1, 1]} : vector<8x512xf32> to vector<8x64xf32>
    %140 = arith.negf %139 : vector<8x64xf32>
    %141 = math.exp %140 : vector<8x64xf32>
    %cst_83 = arith.constant 1.000000e+00 : f32
    %142 = vector.broadcast %cst_83 : f32 to vector<8x64xf32>
    %143 = arith.addf %142, %141 : vector<8x64xf32>
    %144 = arith.divf %142, %143 : vector<8x64xf32>
    %145 = vector.extract_strided_slice %138 {offsets = [0, 128], sizes = [8, 64], strides = [1, 1]} : vector<8x512xf32> to vector<8x64xf32>
    %146 = arith.negf %145 : vector<8x64xf32>
    %147 = math.exp %146 : vector<8x64xf32>
    %cst_84 = arith.constant 1.000000e+00 : f32
    %148 = vector.broadcast %cst_84 : f32 to vector<8x64xf32>
    %149 = arith.addf %148, %147 : vector<8x64xf32>
    %150 = arith.divf %148, %149 : vector<8x64xf32>
    %151 = vector.extract_strided_slice %138 {offsets = [0, 256], sizes = [8, 64], strides = [1, 1]} : vector<8x512xf32> to vector<8x64xf32>
    %152 = math.tanh %151 : vector<8x64xf32>
    %153 = vector.extract_strided_slice %138 {offsets = [0, 384], sizes = [8, 64], strides = [1, 1]} : vector<8x512xf32> to vector<8x64xf32>
    %154 = arith.negf %153 : vector<8x64xf32>
    %155 = math.exp %154 : vector<8x64xf32>
    %cst_85 = arith.constant 1.000000e+00 : f32
    %156 = vector.broadcast %cst_85 : f32 to vector<8x64xf32>
    %157 = arith.addf %156, %155 : vector<8x64xf32>
    %158 = arith.divf %156, %157 : vector<8x64xf32>
    %159 = arith.mulf %150, %128 : vector<8x64xf32>
    %160 = arith.mulf %144, %152 : vector<8x64xf32>
    %161 = arith.addf %159, %160 : vector<8x64xf32>
    %162 = math.tanh %161 : vector<8x64xf32>
    %163 = arith.mulf %158, %162 : vector<8x64xf32>
    %c2_86 = arith.constant 2 : index
    %c0_87 = arith.constant 0 : index
    %c0_88 = arith.constant 0 : index
    %164 = vector.load %arg11[%c2_86, %c0_87, %c0_88] : memref<8x8x64xf32, #tpu.memory_space<vmem>>, vector<1x8x64xf32>
    %165 = vector.shape_cast %164 : vector<1x8x64xf32> to vector<8x64xf32>
    %166 = vector.shape_cast %163 : vector<8x64xf32> to vector<1x8x64xf32>
    tpu.vector_store %arg11[%c2_86, %c0_87, %c0_88], %166 {strides = array<i32>} : memref<8x8x64xf32, #tpu.memory_space<vmem>>, vector<1x8x64xf32>,
    %c3_89 = arith.constant 3 : index
    %c0_90 = arith.constant 0 : index
    %c0_91 = arith.constant 0 : index
    %167 = vector.load %arg10[%c3_89, %c0_90, %c0_91] : memref<8x8x512xf32, #tpu.memory_space<vmem>>, vector<1x8x512xf32>
    %168 = vector.shape_cast %167 : vector<1x8x512xf32> to vector<8x512xf32>
    %c0_92 = arith.constant 0 : index
    %c0_93 = arith.constant 0 : index
    %169 = vector.load %arg4[%c0_92, %c0_93] : memref<64x512xf32, #tpu.memory_space<vmem>>, vector<64x512xf32>
    %cst_94 = arith.constant dense<0.000000e+00> : vector<8x512xf32>
    %170 = tpu.matmul %163, %169, %cst_94 {dimension_numbers = #tpu.dot_dimension_numbers<[1], [0], [0], [1], [0, 0, 1, 1], [], []>} : vector<8x64xf32>, vector<64x512xf32>, vector<8x512xf32> -> vector<8x512xf32>
    %171 = arith.addf %168, %170 : vector<8x512xf32>
    %172 = vector.extract_strided_slice %171 {offsets = [0, 0], sizes = [8, 64], strides = [1, 1]} : vector<8x512xf32> to vector<8x64xf32>
    %173 = arith.negf %172 : vector<8x64xf32>
    %174 = math.exp %173 : vector<8x64xf32>
    %cst_95 = arith.constant 1.000000e+00 : f32
    %175 = vector.broadcast %cst_95 : f32 to vector<8x64xf32>
    %176 = arith.addf %175, %174 : vector<8x64xf32>
    %177 = arith.divf %175, %176 : vector<8x64xf32>
    %178 = vector.extract_strided_slice %171 {offsets = [0, 128], sizes = [8, 64], strides = [1, 1]} : vector<8x512xf32> to vector<8x64xf32>
    %179 = arith.negf %178 : vector<8x64xf32>
    %180 = math.exp %179 : vector<8x64xf32>
    %cst_96 = arith.constant 1.000000e+00 : f32
    %181 = vector.broadcast %cst_96 : f32 to vector<8x64xf32>
    %182 = arith.addf %181, %180 : vector<8x64xf32>
    %183 = arith.divf %181, %182 : vector<8x64xf32>
    %184 = vector.extract_strided_slice %171 {offsets = [0, 256], sizes = [8, 64], strides = [1, 1]} : vector<8x512xf32> to vector<8x64xf32>
    %185 = math.tanh %184 : vector<8x64xf32>
    %186 = vector.extract_strided_slice %171 {offsets = [0, 384], sizes = [8, 64], strides = [1, 1]} : vector<8x512xf32> to vector<8x64xf32>
    %187 = arith.negf %186 : vector<8x64xf32>
    %188 = math.exp %187 : vector<8x64xf32>
    %cst_97 = arith.constant 1.000000e+00 : f32
    %189 = vector.broadcast %cst_97 : f32 to vector<8x64xf32>
    %190 = arith.addf %189, %188 : vector<8x64xf32>
    %191 = arith.divf %189, %190 : vector<8x64xf32>
    %192 = arith.mulf %183, %161 : vector<8x64xf32>
    %193 = arith.mulf %177, %185 : vector<8x64xf32>
    %194 = arith.addf %192, %193 : vector<8x64xf32>
    %195 = math.tanh %194 : vector<8x64xf32>
    %196 = arith.mulf %191, %195 : vector<8x64xf32>
    %c3_98 = arith.constant 3 : index
    %c0_99 = arith.constant 0 : index
    %c0_100 = arith.constant 0 : index
    %197 = vector.load %arg11[%c3_98, %c0_99, %c0_100] : memref<8x8x64xf32, #tpu.memory_space<vmem>>, vector<1x8x64xf32>
    %198 = vector.shape_cast %197 : vector<1x8x64xf32> to vector<8x64xf32>
    %199 = vector.shape_cast %196 : vector<8x64xf32> to vector<1x8x64xf32>
    tpu.vector_store %arg11[%c3_98, %c0_99, %c0_100], %199 {strides = array<i32>} : memref<8x8x64xf32, #tpu.memory_space<vmem>>, vector<1x8x64xf32>,
    %c4_101 = arith.constant 4 : index
    %c0_102 = arith.constant 0 : index
    %c0_103 = arith.constant 0 : index
    %200 = vector.load %arg10[%c4_101, %c0_102, %c0_103] : memref<8x8x512xf32, #tpu.memory_space<vmem>>, vector<1x8x512xf32>
    %201 = vector.shape_cast %200 : vector<1x8x512xf32> to vector<8x512xf32>
    %c0_104 = arith.constant 0 : index
    %c0_105 = arith.constant 0 : index
    %202 = vector.load %arg4[%c0_104, %c0_105] : memref<64x512xf32, #tpu.memory_space<vmem>>, vector<64x512xf32>
    %cst_106 = arith.constant dense<0.000000e+00> : vector<8x512xf32>
    %203 = tpu.matmul %196, %202, %cst_106 {dimension_numbers = #tpu.dot_dimension_numbers<[1], [0], [0], [1], [0, 0, 1, 1], [], []>} : vector<8x64xf32>, vector<64x512xf32>, vector<8x512xf32> -> vector<8x512xf32>
    %204 = arith.addf %201, %203 : vector<8x512xf32>
    %205 = vector.extract_strided_slice %204 {offsets = [0, 0], sizes = [8, 64], strides = [1, 1]} : vector<8x512xf32> to vector<8x64xf32>
    %206 = arith.negf %205 : vector<8x64xf32>
    %207 = math.exp %206 : vector<8x64xf32>
    %cst_107 = arith.constant 1.000000e+00 : f32
    %208 = vector.broadcast %cst_107 : f32 to vector<8x64xf32>
    %209 = arith.addf %208, %207 : vector<8x64xf32>
    %210 = arith.divf %208, %209 : vector<8x64xf32>
    %211 = vector.extract_strided_slice %204 {offsets = [0, 128], sizes = [8, 64], strides = [1, 1]} : vector<8x512xf32> to vector<8x64xf32>
    %212 = arith.negf %211 : vector<8x64xf32>
    %213 = math.exp %212 : vector<8x64xf32>
    %cst_108 = arith.constant 1.000000e+00 : f32
    %214 = vector.broadcast %cst_108 : f32 to vector<8x64xf32>
    %215 = arith.addf %214, %213 : vector<8x64xf32>
    %216 = arith.divf %214, %215 : vector<8x64xf32>
    %217 = vector.extract_strided_slice %204 {offsets = [0, 256], sizes = [8, 64], strides = [1, 1]} : vector<8x512xf32> to vector<8x64xf32>
    %218 = math.tanh %217 : vector<8x64xf32>
    %219 = vector.extract_strided_slice %204 {offsets = [0, 384], sizes = [8, 64], strides = [1, 1]} : vector<8x512xf32> to vector<8x64xf32>
    %220 = arith.negf %219 : vector<8x64xf32>
    %221 = math.exp %220 : vector<8x64xf32>
    %cst_109 = arith.constant 1.000000e+00 : f32
    %222 = vector.broadcast %cst_109 : f32 to vector<8x64xf32>
    %223 = arith.addf %222, %221 : vector<8x64xf32>
    %224 = arith.divf %222, %223 : vector<8x64xf32>
    %225 = arith.mulf %216, %194 : vector<8x64xf32>
    %226 = arith.mulf %210, %218 : vector<8x64xf32>
    %227 = arith.addf %225, %226 : vector<8x64xf32>
    %228 = math.tanh %227 : vector<8x64xf32>
    %229 = arith.mulf %224, %228 : vector<8x64xf32>
    %c4_110 = arith.constant 4 : index
    %c0_111 = arith.constant 0 : index
    %c0_112 = arith.constant 0 : index
    %230 = vector.load %arg11[%c4_110, %c0_111, %c0_112] : memref<8x8x64xf32, #tpu.memory_space<vmem>>, vector<1x8x64xf32>
    %231 = vector.shape_cast %230 : vector<1x8x64xf32> to vector<8x64xf32>
    %232 = vector.shape_cast %229 : vector<8x64xf32> to vector<1x8x64xf32>
    tpu.vector_store %arg11[%c4_110, %c0_111, %c0_112], %232 {strides = array<i32>} : memref<8x8x64xf32, #tpu.memory_space<vmem>>, vector<1x8x64xf32>,
    %c5_113 = arith.constant 5 : index
    %c0_114 = arith.constant 0 : index
    %c0_115 = arith.constant 0 : index
    %233 = vector.load %arg10[%c5_113, %c0_114, %c0_115] : memref<8x8x512xf32, #tpu.memory_space<vmem>>, vector<1x8x512xf32>
    %234 = vector.shape_cast %233 : vector<1x8x512xf32> to vector<8x512xf32>
    %c0_116 = arith.constant 0 : index
    %c0_117 = arith.constant 0 : index
    %235 = vector.load %arg4[%c0_116, %c0_117] : memref<64x512xf32, #tpu.memory_space<vmem>>, vector<64x512xf32>
    %cst_118 = arith.constant dense<0.000000e+00> : vector<8x512xf32>
    %236 = tpu.matmul %229, %235, %cst_118 {dimension_numbers = #tpu.dot_dimension_numbers<[1], [0], [0], [1], [0, 0, 1, 1], [], []>} : vector<8x64xf32>, vector<64x512xf32>, vector<8x512xf32> -> vector<8x512xf32>
    %237 = arith.addf %234, %236 : vector<8x512xf32>
    %238 = vector.extract_strided_slice %237 {offsets = [0, 0], sizes = [8, 64], strides = [1, 1]} : vector<8x512xf32> to vector<8x64xf32>
    %239 = arith.negf %238 : vector<8x64xf32>
    %240 = math.exp %239 : vector<8x64xf32>
    %cst_119 = arith.constant 1.000000e+00 : f32
    %241 = vector.broadcast %cst_119 : f32 to vector<8x64xf32>
    %242 = arith.addf %241, %240 : vector<8x64xf32>
    %243 = arith.divf %241, %242 : vector<8x64xf32>
    %244 = vector.extract_strided_slice %237 {offsets = [0, 128], sizes = [8, 64], strides = [1, 1]} : vector<8x512xf32> to vector<8x64xf32>
    %245 = arith.negf %244 : vector<8x64xf32>
    %246 = math.exp %245 : vector<8x64xf32>
    %cst_120 = arith.constant 1.000000e+00 : f32
    %247 = vector.broadcast %cst_120 : f32 to vector<8x64xf32>
    %248 = arith.addf %247, %246 : vector<8x64xf32>
    %249 = arith.divf %247, %248 : vector<8x64xf32>
    %250 = vector.extract_strided_slice %237 {offsets = [0, 256], sizes = [8, 64], strides = [1, 1]} : vector<8x512xf32> to vector<8x64xf32>
    %251 = math.tanh %250 : vector<8x64xf32>
    %252 = vector.extract_strided_slice %237 {offsets = [0, 384], sizes = [8, 64], strides = [1, 1]} : vector<8x512xf32> to vector<8x64xf32>
    %253 = arith.negf %252 : vector<8x64xf32>
    %254 = math.exp %253 : vector<8x64xf32>
    %cst_121 = arith.constant 1.000000e+00 : f32
    %255 = vector.broadcast %cst_121 : f32 to vector<8x64xf32>
    %256 = arith.addf %255, %254 : vector<8x64xf32>
    %257 = arith.divf %255, %256 : vector<8x64xf32>
    %258 = arith.mulf %249, %227 : vector<8x64xf32>
    %259 = arith.mulf %243, %251 : vector<8x64xf32>
    %260 = arith.addf %258, %259 : vector<8x64xf32>
    %261 = math.tanh %260 : vector<8x64xf32>
    %262 = arith.mulf %257, %261 : vector<8x64xf32>
    %c5_122 = arith.constant 5 : index
    %c0_123 = arith.constant 0 : index
    %c0_124 = arith.constant 0 : index
    %263 = vector.load %arg11[%c5_122, %c0_123, %c0_124] : memref<8x8x64xf32, #tpu.memory_space<vmem>>, vector<1x8x64xf32>
    %264 = vector.shape_cast %263 : vector<1x8x64xf32> to vector<8x64xf32>
    %265 = vector.shape_cast %262 : vector<8x64xf32> to vector<1x8x64xf32>
    tpu.vector_store %arg11[%c5_122, %c0_123, %c0_124], %265 {strides = array<i32>} : memref<8x8x64xf32, #tpu.memory_space<vmem>>, vector<1x8x64xf32>,
    %c6_125 = arith.constant 6 : index
    %c0_126 = arith.constant 0 : index
    %c0_127 = arith.constant 0 : index
    %266 = vector.load %arg10[%c6_125, %c0_126, %c0_127] : memref<8x8x512xf32, #tpu.memory_space<vmem>>, vector<1x8x512xf32>
    %267 = vector.shape_cast %266 : vector<1x8x512xf32> to vector<8x512xf32>
    %c0_128 = arith.constant 0 : index
    %c0_129 = arith.constant 0 : index
    %268 = vector.load %arg4[%c0_128, %c0_129] : memref<64x512xf32, #tpu.memory_space<vmem>>, vector<64x512xf32>
    %cst_130 = arith.constant dense<0.000000e+00> : vector<8x512xf32>
    %269 = tpu.matmul %262, %268, %cst_130 {dimension_numbers = #tpu.dot_dimension_numbers<[1], [0], [0], [1], [0, 0, 1, 1], [], []>} : vector<8x64xf32>, vector<64x512xf32>, vector<8x512xf32> -> vector<8x512xf32>
    %270 = arith.addf %267, %269 : vector<8x512xf32>
    %271 = vector.extract_strided_slice %270 {offsets = [0, 0], sizes = [8, 64], strides = [1, 1]} : vector<8x512xf32> to vector<8x64xf32>
    %272 = arith.negf %271 : vector<8x64xf32>
    %273 = math.exp %272 : vector<8x64xf32>
    %cst_131 = arith.constant 1.000000e+00 : f32
    %274 = vector.broadcast %cst_131 : f32 to vector<8x64xf32>
    %275 = arith.addf %274, %273 : vector<8x64xf32>
    %276 = arith.divf %274, %275 : vector<8x64xf32>
    %277 = vector.extract_strided_slice %270 {offsets = [0, 128], sizes = [8, 64], strides = [1, 1]} : vector<8x512xf32> to vector<8x64xf32>
    %278 = arith.negf %277 : vector<8x64xf32>
    %279 = math.exp %278 : vector<8x64xf32>
    %cst_132 = arith.constant 1.000000e+00 : f32
    %280 = vector.broadcast %cst_132 : f32 to vector<8x64xf32>
    %281 = arith.addf %280, %279 : vector<8x64xf32>
    %282 = arith.divf %280, %281 : vector<8x64xf32>
    %283 = vector.extract_strided_slice %270 {offsets = [0, 256], sizes = [8, 64], strides = [1, 1]} : vector<8x512xf32> to vector<8x64xf32>
    %284 = math.tanh %283 : vector<8x64xf32>
    %285 = vector.extract_strided_slice %270 {offsets = [0, 384], sizes = [8, 64], strides = [1, 1]} : vector<8x512xf32> to vector<8x64xf32>
    %286 = arith.negf %285 : vector<8x64xf32>
    %287 = math.exp %286 : vector<8x64xf32>
    %cst_133 = arith.constant 1.000000e+00 : f32
    %288 = vector.broadcast %cst_133 : f32 to vector<8x64xf32>
    %289 = arith.addf %288, %287 : vector<8x64xf32>
    %290 = arith.divf %288, %289 : vector<8x64xf32>
    %291 = arith.mulf %282, %260 : vector<8x64xf32>
    %292 = arith.mulf %276, %284 : vector<8x64xf32>
    %293 = arith.addf %291, %292 : vector<8x64xf32>
    %294 = math.tanh %293 : vector<8x64xf32>
    %295 = arith.mulf %290, %294 : vector<8x64xf32>
    %c6_134 = arith.constant 6 : index
    %c0_135 = arith.constant 0 : index
    %c0_136 = arith.constant 0 : index
    %296 = vector.load %arg11[%c6_134, %c0_135, %c0_136] : memref<8x8x64xf32, #tpu.memory_space<vmem>>, vector<1x8x64xf32>
    %297 = vector.shape_cast %296 : vector<1x8x64xf32> to vector<8x64xf32>
    %298 = vector.shape_cast %295 : vector<8x64xf32> to vector<1x8x64xf32>
    tpu.vector_store %arg11[%c6_134, %c0_135, %c0_136], %298 {strides = array<i32>} : memref<8x8x64xf32, #tpu.memory_space<vmem>>, vector<1x8x64xf32>,
    %c7_137 = arith.constant 7 : index
    %c0_138 = arith.constant 0 : index
    %c0_139 = arith.constant 0 : index
    %299 = vector.load %arg10[%c7_137, %c0_138, %c0_139] : memref<8x8x512xf32, #tpu.memory_space<vmem>>, vector<1x8x512xf32>
    %300 = vector.shape_cast %299 : vector<1x8x512xf32> to vector<8x512xf32>
    %c0_140 = arith.constant 0 : index
    %c0_141 = arith.constant 0 : index
    %301 = vector.load %arg4[%c0_140, %c0_141] : memref<64x512xf32, #tpu.memory_space<vmem>>, vector<64x512xf32>
    %cst_142 = arith.constant dense<0.000000e+00> : vector<8x512xf32>
    %302 = tpu.matmul %295, %301, %cst_142 {dimension_numbers = #tpu.dot_dimension_numbers<[1], [0], [0], [1], [0, 0, 1, 1], [], []>} : vector<8x64xf32>, vector<64x512xf32>, vector<8x512xf32> -> vector<8x512xf32>
    %303 = arith.addf %300, %302 : vector<8x512xf32>
    %304 = vector.extract_strided_slice %303 {offsets = [0, 0], sizes = [8, 64], strides = [1, 1]} : vector<8x512xf32> to vector<8x64xf32>
    %305 = arith.negf %304 : vector<8x64xf32>
    %306 = math.exp %305 : vector<8x64xf32>
    %cst_143 = arith.constant 1.000000e+00 : f32
    %307 = vector.broadcast %cst_143 : f32 to vector<8x64xf32>
    %308 = arith.addf %307, %306 : vector<8x64xf32>
    %309 = arith.divf %307, %308 : vector<8x64xf32>
    %310 = vector.extract_strided_slice %303 {offsets = [0, 128], sizes = [8, 64], strides = [1, 1]} : vector<8x512xf32> to vector<8x64xf32>
    %311 = arith.negf %310 : vector<8x64xf32>
    %312 = math.exp %311 : vector<8x64xf32>
    %cst_144 = arith.constant 1.000000e+00 : f32
    %313 = vector.broadcast %cst_144 : f32 to vector<8x64xf32>
    %314 = arith.addf %313, %312 : vector<8x64xf32>
    %315 = arith.divf %313, %314 : vector<8x64xf32>
    %316 = vector.extract_strided_slice %303 {offsets = [0, 256], sizes = [8, 64], strides = [1, 1]} : vector<8x512xf32> to vector<8x64xf32>
    %317 = math.tanh %316 : vector<8x64xf32>
    %318 = vector.extract_strided_slice %303 {offsets = [0, 384], sizes = [8, 64], strides = [1, 1]} : vector<8x512xf32> to vector<8x64xf32>
    %319 = arith.negf %318 : vector<8x64xf32>
    %320 = math.exp %319 : vector<8x64xf32>
    %cst_145 = arith.constant 1.000000e+00 : f32
    %321 = vector.broadcast %cst_145 : f32 to vector<8x64xf32>
    %322 = arith.addf %321, %320 : vector<8x64xf32>
    %323 = arith.divf %321, %322 : vector<8x64xf32>
    %324 = arith.mulf %315, %293 : vector<8x64xf32>
    %325 = arith.mulf %309, %317 : vector<8x64xf32>
    %326 = arith.addf %324, %325 : vector<8x64xf32>
    %327 = math.tanh %326 : vector<8x64xf32>
    %328 = arith.mulf %323, %327 : vector<8x64xf32>
    %c7_146 = arith.constant 7 : index
    %c0_147 = arith.constant 0 : index
    %c0_148 = arith.constant 0 : index
    %329 = vector.load %arg11[%c7_146, %c0_147, %c0_148] : memref<8x8x64xf32, #tpu.memory_space<vmem>>, vector<1x8x64xf32>
    %330 = vector.shape_cast %329 : vector<1x8x64xf32> to vector<8x64xf32>
    %331 = vector.shape_cast %328 : vector<8x64xf32> to vector<1x8x64xf32>
    tpu.vector_store %arg11[%c7_146, %c0_147, %c0_148], %331 {strides = array<i32>} : memref<8x8x64xf32, #tpu.memory_space<vmem>>, vector<1x8x64xf32>,
    %cst_149 = arith.constant 0.000000e+00 : f32
    %332 = vector.broadcast %cst_149 : f32 to vector<8x64xf32>
    %c0_150 = arith.constant 0 : index
    %c0_151 = arith.constant 0 : index
    %c0_152 = arith.constant 0 : index
    %333 = vector.load %arg11[%c0_150, %c0_151, %c0_152] : memref<8x8x64xf32, #tpu.memory_space<vmem>>, vector<1x8x64xf32>
    %334 = vector.shape_cast %333 : vector<1x8x64xf32> to vector<8x64xf32>
    %c0_153 = arith.constant 0 : index
    %c0_154 = arith.constant 0 : index
    %c0_155 = arith.constant 0 : index
    %335 = vector.load %arg5[%c0_153, %c0_154, %c0_155] : memref<8x64x64xf32, #tpu.memory_space<vmem>>, vector<1x64x64xf32>
    %336 = vector.shape_cast %335 : vector<1x64x64xf32> to vector<64x64xf32>
    %cst_156 = arith.constant dense<0.000000e+00> : vector<8x64xf32>
    %337 = tpu.matmul %334, %336, %cst_156 {dimension_numbers = #tpu.dot_dimension_numbers<[1], [0], [0], [1], [0, 0, 1, 1], [], []>} : vector<8x64xf32>, vector<64x64xf32>, vector<8x64xf32> -> vector<8x64xf32>
    %338 = arith.addf %332, %337 : vector<8x64xf32>
    %c1_157 = arith.constant 1 : index
    %c0_158 = arith.constant 0 : index
    %c0_159 = arith.constant 0 : index
    %339 = vector.load %arg11[%c1_157, %c0_158, %c0_159] : memref<8x8x64xf32, #tpu.memory_space<vmem>>, vector<1x8x64xf32>
    %340 = vector.shape_cast %339 : vector<1x8x64xf32> to vector<8x64xf32>
    %c1_160 = arith.constant 1 : index
    %c0_161 = arith.constant 0 : index
    %c0_162 = arith.constant 0 : index
    %341 = vector.load %arg5[%c1_160, %c0_161, %c0_162] : memref<8x64x64xf32, #tpu.memory_space<vmem>>, vector<1x64x64xf32>
    %342 = vector.shape_cast %341 : vector<1x64x64xf32> to vector<64x64xf32>
    %cst_163 = arith.constant dense<0.000000e+00> : vector<8x64xf32>
    %343 = tpu.matmul %340, %342, %cst_163 {dimension_numbers = #tpu.dot_dimension_numbers<[1], [0], [0], [1], [0, 0, 1, 1], [], []>} : vector<8x64xf32>, vector<64x64xf32>, vector<8x64xf32> -> vector<8x64xf32>
    %344 = arith.addf %338, %343 : vector<8x64xf32>
    %c2_164 = arith.constant 2 : index
    %c0_165 = arith.constant 0 : index
    %c0_166 = arith.constant 0 : index
    %345 = vector.load %arg11[%c2_164, %c0_165, %c0_166] : memref<8x8x64xf32, #tpu.memory_space<vmem>>, vector<1x8x64xf32>
    %346 = vector.shape_cast %345 : vector<1x8x64xf32> to vector<8x64xf32>
    %c2_167 = arith.constant 2 : index
    %c0_168 = arith.constant 0 : index
    %c0_169 = arith.constant 0 : index
    %347 = vector.load %arg5[%c2_167, %c0_168, %c0_169] : memref<8x64x64xf32, #tpu.memory_space<vmem>>, vector<1x64x64xf32>
    %348 = vector.shape_cast %347 : vector<1x64x64xf32> to vector<64x64xf32>
    %cst_170 = arith.constant dense<0.000000e+00> : vector<8x64xf32>
    %349 = tpu.matmul %346, %348, %cst_170 {dimension_numbers = #tpu.dot_dimension_numbers<[1], [0], [0], [1], [0, 0, 1, 1], [], []>} : vector<8x64xf32>, vector<64x64xf32>, vector<8x64xf32> -> vector<8x64xf32>
    %350 = arith.addf %344, %349 : vector<8x64xf32>
    %c3_171 = arith.constant 3 : index
    %c0_172 = arith.constant 0 : index
    %c0_173 = arith.constant 0 : index
    %351 = vector.load %arg11[%c3_171, %c0_172, %c0_173] : memref<8x8x64xf32, #tpu.memory_space<vmem>>, vector<1x8x64xf32>
    %352 = vector.shape_cast %351 : vector<1x8x64xf32> to vector<8x64xf32>
    %c3_174 = arith.constant 3 : index
    %c0_175 = arith.constant 0 : index
    %c0_176 = arith.constant 0 : index
    %353 = vector.load %arg5[%c3_174, %c0_175, %c0_176] : memref<8x64x64xf32, #tpu.memory_space<vmem>>, vector<1x64x64xf32>
    %354 = vector.shape_cast %353 : vector<1x64x64xf32> to vector<64x64xf32>
    %cst_177 = arith.constant dense<0.000000e+00> : vector<8x64xf32>
    %355 = tpu.matmul %352, %354, %cst_177 {dimension_numbers = #tpu.dot_dimension_numbers<[1], [0], [0], [1], [0, 0, 1, 1], [], []>} : vector<8x64xf32>, vector<64x64xf32>, vector<8x64xf32> -> vector<8x64xf32>
    %356 = arith.addf %350, %355 : vector<8x64xf32>
    %c4_178 = arith.constant 4 : index
    %c0_179 = arith.constant 0 : index
    %c0_180 = arith.constant 0 : index
    %357 = vector.load %arg11[%c4_178, %c0_179, %c0_180] : memref<8x8x64xf32, #tpu.memory_space<vmem>>, vector<1x8x64xf32>
    %358 = vector.shape_cast %357 : vector<1x8x64xf32> to vector<8x64xf32>
    %c4_181 = arith.constant 4 : index
    %c0_182 = arith.constant 0 : index
    %c0_183 = arith.constant 0 : index
    %359 = vector.load %arg5[%c4_181, %c0_182, %c0_183] : memref<8x64x64xf32, #tpu.memory_space<vmem>>, vector<1x64x64xf32>
    %360 = vector.shape_cast %359 : vector<1x64x64xf32> to vector<64x64xf32>
    %cst_184 = arith.constant dense<0.000000e+00> : vector<8x64xf32>
    %361 = tpu.matmul %358, %360, %cst_184 {dimension_numbers = #tpu.dot_dimension_numbers<[1], [0], [0], [1], [0, 0, 1, 1], [], []>} : vector<8x64xf32>, vector<64x64xf32>, vector<8x64xf32> -> vector<8x64xf32>
    %362 = arith.addf %356, %361 : vector<8x64xf32>
    %c5_185 = arith.constant 5 : index
    %c0_186 = arith.constant 0 : index
    %c0_187 = arith.constant 0 : index
    %363 = vector.load %arg11[%c5_185, %c0_186, %c0_187] : memref<8x8x64xf32, #tpu.memory_space<vmem>>, vector<1x8x64xf32>
    %364 = vector.shape_cast %363 : vector<1x8x64xf32> to vector<8x64xf32>
    %c5_188 = arith.constant 5 : index
    %c0_189 = arith.constant 0 : index
    %c0_190 = arith.constant 0 : index
    %365 = vector.load %arg5[%c5_188, %c0_189, %c0_190] : memref<8x64x64xf32, #tpu.memory_space<vmem>>, vector<1x64x64xf32>
    %366 = vector.shape_cast %365 : vector<1x64x64xf32> to vector<64x64xf32>
    %cst_191 = arith.constant dense<0.000000e+00> : vector<8x64xf32>
    %367 = tpu.matmul %364, %366, %cst_191 {dimension_numbers = #tpu.dot_dimension_numbers<[1], [0], [0], [1], [0, 0, 1, 1], [], []>} : vector<8x64xf32>, vector<64x64xf32>, vector<8x64xf32> -> vector<8x64xf32>
    %368 = arith.addf %362, %367 : vector<8x64xf32>
    %c6_192 = arith.constant 6 : index
    %c0_193 = arith.constant 0 : index
    %c0_194 = arith.constant 0 : index
    %369 = vector.load %arg11[%c6_192, %c0_193, %c0_194] : memref<8x8x64xf32, #tpu.memory_space<vmem>>, vector<1x8x64xf32>
    %370 = vector.shape_cast %369 : vector<1x8x64xf32> to vector<8x64xf32>
    %c6_195 = arith.constant 6 : index
    %c0_196 = arith.constant 0 : index
    %c0_197 = arith.constant 0 : index
    %371 = vector.load %arg5[%c6_195, %c0_196, %c0_197] : memref<8x64x64xf32, #tpu.memory_space<vmem>>, vector<1x64x64xf32>
    %372 = vector.shape_cast %371 : vector<1x64x64xf32> to vector<64x64xf32>
    %cst_198 = arith.constant dense<0.000000e+00> : vector<8x64xf32>
    %373 = tpu.matmul %370, %372, %cst_198 {dimension_numbers = #tpu.dot_dimension_numbers<[1], [0], [0], [1], [0, 0, 1, 1], [], []>} : vector<8x64xf32>, vector<64x64xf32>, vector<8x64xf32> -> vector<8x64xf32>
    %374 = arith.addf %368, %373 : vector<8x64xf32>
    %c7_199 = arith.constant 7 : index
    %c0_200 = arith.constant 0 : index
    %c0_201 = arith.constant 0 : index
    %375 = vector.load %arg11[%c7_199, %c0_200, %c0_201] : memref<8x8x64xf32, #tpu.memory_space<vmem>>, vector<1x8x64xf32>
    %376 = vector.shape_cast %375 : vector<1x8x64xf32> to vector<8x64xf32>
    %c7_202 = arith.constant 7 : index
    %c0_203 = arith.constant 0 : index
    %c0_204 = arith.constant 0 : index
    %377 = vector.load %arg5[%c7_202, %c0_203, %c0_204] : memref<8x64x64xf32, #tpu.memory_space<vmem>>, vector<1x64x64xf32>
    %378 = vector.shape_cast %377 : vector<1x64x64xf32> to vector<64x64xf32>
    %cst_205 = arith.constant dense<0.000000e+00> : vector<8x64xf32>
    %379 = tpu.matmul %376, %378, %cst_205 {dimension_numbers = #tpu.dot_dimension_numbers<[1], [0], [0], [1], [0, 0, 1, 1], [], []>} : vector<8x64xf32>, vector<64x64xf32>, vector<8x64xf32> -> vector<8x64xf32>
    %380 = arith.addf %374, %379 : vector<8x64xf32>
    %c0_206 = arith.constant 0 : index
    %c0_207 = arith.constant 0 : index
    %381 = vector.load %arg6[%c0_206, %c0_207] : memref<1x64xf32, #tpu.memory_space<vmem>>, vector<1x64xf32>
    %382 = vector.broadcast %381 : vector<1x64xf32> to vector<8x64xf32>
    %383 = arith.addf %380, %382 : vector<8x64xf32>
    %cst_208 = arith.constant 0.000000e+00 : f32
    %384 = vector.broadcast %cst_208 : f32 to vector<8x64xf32>
    %385 = arith.cmpf oge, %383, %384 : vector<8x64xf32>
    %cst_209 = arith.constant 0.00999999977 : f32
    %386 = vector.broadcast %cst_209 : f32 to vector<8x64xf32>
    %387 = arith.mulf %386, %383 : vector<8x64xf32>
    %388 = arith.select %385, %383, %387 : vector<8x64xi1>, vector<8x64xf32>
    %c0_210 = arith.constant 0 : index
    %c0_211 = arith.constant 0 : index
    %389 = vector.load %arg7[%c0_210, %c0_211] : memref<64x3xf32, #tpu.memory_space<vmem>>, vector<64x3xf32>
    %cst_212 = arith.constant dense<0.000000e+00> : vector<8x3xf32>
    %390 = tpu.matmul %388, %389, %cst_212 {dimension_numbers = #tpu.dot_dimension_numbers<[1], [0], [0], [1], [0, 0, 1, 1], [], []>} : vector<8x64xf32>, vector<64x3xf32>, vector<8x3xf32> -> vector<8x3xf32>
    %c0_213 = arith.constant 0 : index
    %c0_214 = arith.constant 0 : index
    %391 = vector.load %arg8[%c0_213, %c0_214] : memref<1x3xf32, #tpu.memory_space<vmem>>, vector<1x3xf32>
    %392 = vector.broadcast %391 : vector<1x3xf32> to vector<8x3xf32>
    %393 = arith.addf %390, %392 : vector<8x3xf32>
    %394 = arith.negf %393 : vector<8x3xf32>
    %395 = math.exp %394 : vector<8x3xf32>
    %cst_215 = arith.constant 1.000000e+00 : f32
    %396 = vector.broadcast %cst_215 : f32 to vector<8x3xf32>
    %397 = arith.addf %396, %395 : vector<8x3xf32>
    %398 = arith.divf %396, %397 : vector<8x3xf32>
    %c0_216 = arith.constant 0 : index
    %c0_217 = arith.constant 0 : index
    %399 = vector.load %arg9[%c0_216, %c0_217] : memref<8x3xf32, #tpu.memory_space<vmem>>, vector<8x3xf32>
    tpu.vector_store %arg9[%c0_216, %c0_217], %398 {strides = array<i32>} : memref<8x3xf32, #tpu.memory_space<vmem>>, vector<8x3xf32>,
    return
  }
  func.func @transform_0(%arg0: i32) -> (i32, i32, i32) {
    %c0_i32 = arith.constant 0 : i32
    %c0_i32_0 = arith.constant 0 : i32
    %c0_i32_1 = arith.constant 0 : i32
    return %c0_i32, %arg0, %c0_i32_0 : i32, i32, i32
  }
  func.func @transform_1(%arg0: i32) -> (i32, i32) {
    %c0_i32 = arith.constant 0 : i32
    %c0_i32_0 = arith.constant 0 : i32
    %c0_i32_1 = arith.constant 0 : i32
    return %c0_i32, %c0_i32_0 : i32, i32
  }
  func.func @transform_2(%arg0: i32) -> (i32, i32) {
    %c0_i32 = arith.constant 0 : i32
    %c0_i32_0 = arith.constant 0 : i32
    %c0_i32_1 = arith.constant 0 : i32
    return %c0_i32, %c0_i32_0 : i32, i32
  }
  func.func @transform_3(%arg0: i32) -> (i32, i32) {
    %c0_i32 = arith.constant 0 : i32
    %c0_i32_0 = arith.constant 0 : i32
    %c0_i32_1 = arith.constant 0 : i32
    return %c0_i32, %c0_i32_0 : i32, i32
  }
  func.func @transform_4(%arg0: i32) -> (i32, i32, i32) {
    %c0_i32 = arith.constant 0 : i32
    %c0_i32_0 = arith.constant 0 : i32
    %c0_i32_1 = arith.constant 0 : i32
    %c0_i32_2 = arith.constant 0 : i32
    return %c0_i32, %c0_i32_0, %c0_i32_1 : i32, i32, i32
  }
  func.func @transform_5(%arg0: i32) -> (i32, i32) {
    %c0_i32 = arith.constant 0 : i32
    %c0_i32_0 = arith.constant 0 : i32
    %c0_i32_1 = arith.constant 0 : i32
    return %c0_i32, %c0_i32_0 : i32, i32
  }
  func.func @transform_6(%arg0: i32) -> (i32, i32) {
    %c0_i32 = arith.constant 0 : i32
    %c0_i32_0 = arith.constant 0 : i32
    %c0_i32_1 = arith.constant 0 : i32
    return %c0_i32, %c0_i32_0 : i32, i32
  }
  func.func @transform_7(%arg0: i32) -> (i32, i32) {
    %c0_i32 = arith.constant 0 : i32
    %c0_i32_0 = arith.constant 0 : i32
    %c0_i32_1 = arith.constant 0 : i32
    return %c0_i32, %c0_i32_0 : i32, i32
  }
  func.func @transform_8(%arg0: i32) -> (i32, i32) {
    %c0_i32 = arith.constant 0 : i32
    %c0_i32_0 = arith.constant 0 : i32
    return %arg0, %c0_i32 : i32, i32
  }
}

</mosaic_0001>

<llo_original>
// kernel: bilstm_forward.1
$region0: #{bilstm_forward.1}
  #allocation0 [shape = 'u32[]', space=smem, size = 0x4, offset = 0x4, fixed_abs, tag = 'smem constant byte address 0x4 - core index']
  #allocation1 [shape = 'u32[144,128]{1,0:T(1,128)}', space=vmem, size = 0x12000, scoped, tag = 'internal scratch']
  #allocation2 [shape = 'f32[8,8,512]{2,1,0:T(8,128)}', space=vmem, size = 0x20000, scoped, tag = 'scratch operand']
  #allocation3 [shape = 'f32[8,8,64]{2,1,0:T(8,128)}', space=vmem, size = 0x8000, scoped, tag = 'scratch operand']
  %s0 = inlined_call_operand.vmem [shape: f32[8,8,8], index: 0, kind: input, shape index: {}]
  %s1 = inlined_call_operand.vmem [shape: f32[8,512], index: 1, kind: input, shape index: {}]
  %s2 = inlined_call_operand.vmem [shape: f32[1,512], index: 2, kind: input, shape index: {}]
  %s3 = inlined_call_operand.vmem [shape: f32[64,512], index: 3, kind: input, shape index: {}]
  %s4 = inlined_call_operand.vmem [shape: f32[8,64,64], index: 4, kind: input, shape index: {}]
  %s5 = inlined_call_operand.vmem [shape: f32[1,64], index: 5, kind: input, shape index: {}]
  %s6 = inlined_call_operand.vmem [shape: f32[64,3], index: 6, kind: input, shape index: {}]
  %s7 = inlined_call_operand.vmem [shape: f32[1,3], index: 7, kind: input, shape index: {}]
  %s8 = inlined_call_operand.vmem [shape: f32[8,3], index: 8, kind: output, shape index: {}]
  %s9 = sld [smem:[#allocation0]]
  $region42: #{bilstm_forward.1} parent=0
    _
  %s11 = ssub.s32 1, %s9
  %s12 = scalar_select 0, %s11, %s9
  // Predicated region
  $region2: #{bilstm_forward.1} parent=0 // pred_check
    _
  $region3: #{bilstm_forward.1} parent=0 // pred_check_branch
    %14 = sbr.rel (0) target = $region5
  $region4: #{bilstm_forward.1} parent=0 // pred_region
    _
  $region5: #{bilstm_forward.1} parent=0 // pred_fallthru
    _
  // Predicated region
  $region6: #{bilstm_forward.1} parent=0 // pred_check
    _
  $region7: #{bilstm_forward.1} parent=0 // pred_check_branch
    %16 = sbr.rel (0) target = $region9
  $region8: #{bilstm_forward.1} parent=0 // pred_region
    _
  $region9: #{bilstm_forward.1} parent=0 // pred_fallthru
    _
  // Predicated region
  $region10: #{bilstm_forward.1} parent=0 // pred_check
    _
  $region11: #{bilstm_forward.1} parent=0 // pred_check_branch
    %18 = sbr.rel (0) target = $region13
  $region12: #{bilstm_forward.1} parent=0 // pred_region
    _
  $region13: #{bilstm_forward.1} parent=0 // pred_fallthru
    _
  // Predicated region
  $region14: #{bilstm_forward.1} parent=0 // pred_check
    _
  $region15: #{bilstm_forward.1} parent=0 // pred_check_branch
    %20 = sbr.rel (0) target = $region17
  $region16: #{bilstm_forward.1} parent=0 // pred_region
    _
  $region17: #{bilstm_forward.1} parent=0 // pred_fallthru
    _
  // Predicated region
  $region18: #{bilstm_forward.1} parent=0 // pred_check
    _
  $region19: #{bilstm_forward.1} parent=0 // pred_check_branch
    %22 = sbr.rel (0) target = $region21
  $region20: #{bilstm_forward.1} parent=0 // pred_region
    _
  $region21: #{bilstm_forward.1} parent=0 // pred_fallthru
    _
  // Predicated region
  $region22: #{bilstm_forward.1} parent=0 // pred_check
    _
  $region23: #{bilstm_forward.1} parent=0 // pred_check_branch
    %24 = sbr.rel (0) target = $region25
  $region24: #{bilstm_forward.1} parent=0 // pred_region
    _
  $region25: #{bilstm_forward.1} parent=0 // pred_fallthru
    _
  // Predicated region
  $region26: #{bilstm_forward.1} parent=0 // pred_check
    _
  $region27: #{bilstm_forward.1} parent=0 // pred_check_branch
    %26 = sbr.rel (0) target = $region29
  $region28: #{bilstm_forward.1} parent=0 // pred_region
    _
  $region29: #{bilstm_forward.1} parent=0 // pred_fallthru
    _
  // Predicated region
  $region30: #{bilstm_forward.1} parent=0 // pred_check
    _
  $region31: #{bilstm_forward.1} parent=0 // pred_check_branch
    %28 = sbr.rel (0) target = $region33
  $region32: #{bilstm_forward.1} parent=0 // pred_region
    _
  $region33: #{bilstm_forward.1} parent=0 // pred_fallthru
    _
  %v29 = vld [vmem:[%s1] sm:$0xff]
  %v30 = vld [vmem:[%s1 + $0x8] sm:$0xff]
  %v31 = vld [vmem:[%s1 + $0x10] sm:$0xff]
  %v32 = vld [vmem:[%s1 + $0x18] sm:$0xff]
  %v33 = vld [vmem:[%s2] sm:$0xf]
  %v34 = vld [vmem:[%s0] sm:$0xff]
  %v36 = vlaneseq
  %v37 = vshrl.u32 %v36, 7
  %v38 = vsub.s32 0, %v37
  %v39 = vrot.slane %v33, %v38
  %v40 = vlaneseq
  %v41 = vshrl.u32 %v40, 7
  %v42 = vsub.s32 1, %v41
  %v43 = vrot.slane %v33, %v42
  %v44 = vlaneseq
  %v45 = vshrl.u32 %v44, 7
  %v46 = vsub.s32 2, %v45
  %v47 = vrot.slane %v33, %v46
  %v48 = vlaneseq
  %v49 = vshrl.u32 %v48, 7
  %v50 = vsub.s32 3, %v49
  %v51 = vrot.slane %v33, %v50
  %vm56 = vcmask 64512
  %v58 = vsel %vm56, %v34, 0
  %60 = vmatprep.subr.mxu0 0.0
  %61 = vmatpush1.msra.mxu0 0.0
  %62 = vmatprep.subr.mxu0 0.0
  %63 = vmatpush1.msra.mxu0 0.0
  %64 = vmatprep.subr.mxu0 0.0
  %65 = vmatpush1.msra.mxu0 0.0
  %66 = vmatprep.subr.mxu0 0.0
  %67 = vmatpush1.msra.mxu0 0.0
  %68 = vmatprep.subr.mxu0 0.0
  %69 = vmatpush1.msra.mxu0 0.0
  %70 = vmatprep.subr.mxu0 0.0
  %71 = vmatpush1.msra.mxu0 0.0
  %72 = vmatprep.subr.mxu0 0.0
  %73 = vmatpush1.msra.mxu0 0.0
  %74 = vmatprep.subr.mxu0 0.0
  %75 = vmatpush1.msra.mxu0 0.0
  %76 = vmatprep.subr.mxu0 0.0
  %77 = vmatpush1.msra.mxu0 0.0
  %78 = vmatprep.subr.mxu0 0.0
  %79 = vmatpush1.msra.mxu0 0.0
  %80 = vmatprep.subr.mxu0 0.0
  %81 = vmatpush1.msra.mxu0 0.0
  %82 = vmatprep.subr.mxu0 0.0
  %83 = vmatpush1.msra.mxu0 0.0
  %84 = vmatprep.subr.mxu0 0.0
  %85 = vmatpush1.msra.mxu0 0.0
  %86 = vmatprep.subr.mxu0 0.0
  %87 = vmatpush1.msra.mxu0 0.0
  %88 = vmatprep.subr.mxu0 0.0
  %89 = vmatpush1.msra.mxu0 0.0
  %90 = vmatprep.subr.mxu0 %v30
  %91 = vmatpush1.msra.mxu0 %v29
  %92 = vmatprep.subr.mxu0 0.0
  %93 = vmatpush2.msra.mxu0 0.0
  %94 = vmatprep.subr.mxu0 0.0
  %95 = vmatpush2.msra.mxu0 0.0
  %96 = vmatprep.subr.mxu0 0.0
  %97 = vmatpush2.msra.mxu0 0.0
  %98 = vmatprep.subr.mxu0 0.0
  %99 = vmatpush2.msra.mxu0 0.0
  %100 = vmatprep.subr.mxu0 0.0
  %101 = vmatpush2.msra.mxu0 0.0
  %102 = vmatprep.subr.mxu0 0.0
  %103 = vmatpush2.msra.mxu0 0.0
  %104 = vmatprep.subr.mxu0 0.0
  %105 = vmatpush2.msra.mxu0 0.0
  %106 = vmatprep.subr.mxu0 0.0
  %107 = vmatpush2.msra.mxu0 0.0
  %108 = vmatprep.subr.mxu0 0.0
  %109 = vmatpush2.msra.mxu0 0.0
  %110 = vmatprep.subr.mxu0 0.0
  %111 = vmatpush2.msra.mxu0 0.0
  %112 = vmatprep.subr.mxu0 0.0
  %113 = vmatpush2.msra.mxu0 0.0
  %114 = vmatprep.subr.mxu0 0.0
  %115 = vmatpush2.msra.mxu0 0.0
  %116 = vmatprep.subr.mxu0 0.0
  %117 = vmatpush2.msra.mxu0 0.0
  %118 = vmatprep.subr.mxu0 0.0
  %119 = vmatpush2.msra.mxu0 0.0
  %120 = vmatprep.subr.mxu0 0.0
  %121 = vmatpush2.msra.mxu0 0.0
  %122 = vmatprep.subr.mxu0 0.0
  %123 = vmatpush2.msra.mxu0 0.0
  %124 = vmatprep.mubr.f32.mxu0 0.0
  %125 = vmatmul.mubr.f32.gmra.mxu0 %v58
  %v126 = vpop.f32.mrf.mxu0
  %v127 = vadd.f32 %v39, %v126
  %v128 = vpop.f32.mrf.mxu0
  %v129 = vadd.f32 %v43, %v128
  %130 = vdwg.mxu0
  %131 = vmatprep.subr.mxu0 0.0
  %132 = vmatpush1.msra.mxu0 0.0
  %133 = vmatprep.subr.mxu0 0.0
  %134 = vmatpush1.msra.mxu0 0.0
  %135 = vmatprep.subr.mxu0 0.0
  %136 = vmatpush1.msra.mxu0 0.0
  %137 = vmatprep.subr.mxu0 0.0
  %138 = vmatpush1.msra.mxu0 0.0
  %139 = vmatprep.subr.mxu0 0.0
  %140 = vmatpush1.msra.mxu0 0.0
  %141 = vmatprep.subr.mxu0 0.0
  %142 = vmatpush1.msra.mxu0 0.0
  %143 = vmatprep.subr.mxu0 0.0
  %144 = vmatpush1.msra.mxu0 0.0
  %145 = vmatprep.subr.mxu0 0.0
  %146 = vmatpush1.msra.mxu0 0.0
  %147 = vmatprep.subr.mxu0 0.0
  %148 = vmatpush1.msra.mxu0 0.0
  %149 = vmatprep.subr.mxu0 0.0
  %150 = vmatpush1.msra.mxu0 0.0
  %151 = vmatprep.subr.mxu0 0.0
  %152 = vmatpush1.msra.mxu0 0.0
  %153 = vmatprep.subr.mxu0 0.0
  %154 = vmatpush1.msra.mxu0 0.0
  %155 = vmatprep.subr.mxu0 0.0
  %156 = vmatpush1.msra.mxu0 0.0
  %157 = vmatprep.subr.mxu0 0.0
  %158 = vmatpush1.msra.mxu0 0.0
  %159 = vmatprep.subr.mxu0 0.0
  %160 = vmatpush1.msra.mxu0 0.0
  %161 = vmatprep.subr.mxu0 %v32
  %162 = vmatpush1.msra.mxu0 %v31
  %163 = vmatprep.subr.mxu0 0.0
  %164 = vmatpush2.msra.mxu0 0.0
  %165 = vmatprep.subr.mxu0 0.0
  %166 = vmatpush2.msra.mxu0 0.0
  %167 = vmatprep.subr.mxu0 0.0
  %168 = vmatpush2.msra.mxu0 0.0
  %169 = vmatprep.subr.mxu0 0.0
  %170 = vmatpush2.msra.mxu0 0.0
  %171 = vmatprep.subr.mxu0 0.0
  %172 = vmatpush2.msra.mxu0 0.0
  %173 = vmatprep.subr.mxu0 0.0
  %174 = vmatpush2.msra.mxu0 0.0
  %175 = vmatprep.subr.mxu0 0.0
  %176 = vmatpush2.msra.mxu0 0.0
  %177 = vmatprep.subr.mxu0 0.0
  %178 = vmatpush2.msra.mxu0 0.0
  %179 = vmatprep.subr.mxu0 0.0
  %180 = vmatpush2.msra.mxu0 0.0
  %181 = vmatprep.subr.mxu0 0.0
  %182 = vmatpush2.msra.mxu0 0.0
  %183 = vmatprep.subr.mxu0 0.0
  %184 = vmatpush2.msra.mxu0 0.0
  %185 = vmatprep.subr.mxu0 0.0
  %186 = vmatpush2.msra.mxu0 0.0
  %187 = vmatprep.subr.mxu0 0.0
  %188 = vmatpush2.msra.mxu0 0.0
  %189 = vmatprep.subr.mxu0 0.0
  %190 = vmatpush2.msra.mxu0 0.0
  %191 = vmatprep.subr.mxu0 0.0
  %192 = vmatpush2.msra.mxu0 0.0
  %193 = vmatprep.subr.mxu0 0.0
  %194 = vmatpush2.msra.mxu0 0.0
  %195 = vmatprep.mubr.f32.mxu0 0.0
  %196 = vmatmul.mubr.f32.gmra.mxu0 %v58
  %v197 = vpop.f32.mrf.mxu0
  %v198 = vadd.f32 %v47, %v197
  %v199 = vpop.f32.mrf.mxu0
  %v200 = vadd.f32 %v51, %v199
  %201 = vdwg.mxu0
  %202 = vst [vmem:[#allocation2] sm:$0xff] %v127
  %203 = vst [vmem:[#allocation2 + $0x8] sm:$0xff] %v129
  %204 = vst [vmem:[#allocation2 + $0x10] sm:$0xff] %v198
  %205 = vst [vmem:[#allocation2 + $0x18] sm:$0xff] %v200
  %s206 = scalar_lea.vmem %s0, 8
  %v207 = vld [vmem:[%s206] sm:$0xff]
  %v209 = vsel %vm56, %v207, 0
  %211 = vmatprep.subr.mxu0 0.0
  %212 = vmatpush1.msra.mxu0 0.0
  %213 = vmatprep.subr.mxu0 0.0
  %214 = vmatpush1.msra.mxu0 0.0
  %215 = vmatprep.subr.mxu0 0.0
  %216 = vmatpush1.msra.mxu0 0.0
  %217 = vmatprep.subr.mxu0 0.0
  %218 = vmatpush1.msra.mxu0 0.0
  %219 = vmatprep.subr.mxu0 0.0
  %220 = vmatpush1.msra.mxu0 0.0
  %221 = vmatprep.subr.mxu0 0.0
  %222 = vmatpush1.msra.mxu0 0.0
  %223 = vmatprep.subr.mxu0 0.0
  %224 = vmatpush1.msra.mxu0 0.0
  %225 = vmatprep.subr.mxu0 0.0
  %226 = vmatpush1.msra.mxu0 0.0
  %227 = vmatprep.subr.mxu0 0.0
  %228 = vmatpush1.msra.mxu0 0.0
  %229 = vmatprep.subr.mxu0 0.0
  %230 = vmatpush1.msra.mxu0 0.0
  %231 = vmatprep.subr.mxu0 0.0
  %232 = vmatpush1.msra.mxu0 0.0
  %233 = vmatprep.subr.mxu0 0.0
  %234 = vmatpush1.msra.mxu0 0.0
  %235 = vmatprep.subr.mxu0 0.0
  %236 = vmatpush1.msra.mxu0 0.0
  %237 = vmatprep.subr.mxu0 0.0
  %238 = vmatpush1.msra.mxu0 0.0
  %239 = vmatprep.subr.mxu0 0.0
  %240 = vmatpush1.msra.mxu0 0.0
  %241 = vmatprep.subr.mxu0 %v30
  %242 = vmatpush1.msra.mxu0 %v29
  %243 = vmatprep.subr.mxu0 0.0
  %244 = vmatpush2.msra.mxu0 0.0
  %245 = vmatprep.subr.mxu0 0.0
  %246 = vmatpush2.msra.mxu0 0.0
  %247 = vmatprep.subr.mxu0 0.0
  %248 = vmatpush2.msra.mxu0 0.0
  %249 = vmatprep.subr.mxu0 0.0
  %250 = vmatpush2.msra.mxu0 0.0
  %251 = vmatprep.subr.mxu0 0.0
  %252 = vmatpush2.msra.mxu0 0.0
  %253 = vmatprep.subr.mxu0 0.0
  %254 = vmatpush2.msra.mxu0 0.0
  %255 = vmatprep.subr.mxu0 0.0
  %256 = vmatpush2.msra.mxu0 0.0
  %257 = vmatprep.subr.mxu0 0.0
  %258 = vmatpush2.msra.mxu0 0.0
  %259 = vmatprep.subr.mxu0 0.0
  %260 = vmatpush2.msra.mxu0 0.0
  %261 = vmatprep.subr.mxu0 0.0
  %262 = vmatpush2.msra.mxu0 0.0
  %263 = vmatprep.subr.mxu0 0.0
  %264 = vmatpush2.msra.mxu0 0.0
  %265 = vmatprep.subr.mxu0 0.0
  %266 = vmatpush2.msra.mxu0 0.0
  %267 = vmatprep.subr.mxu0 0.0
  %268 = vmatpush2.msra.mxu0 0.0
  %269 = vmatprep.subr.mxu0 0.0
  %270 = vmatpush2.msra.mxu0 0.0
  %271 = vmatprep.subr.mxu0 0.0
  %272 = vmatpush2.msra.mxu0 0.0
  %273 = vmatprep.subr.mxu0 0.0
  %274 = vmatpush2.msra.mxu0 0.0
  %275 = vmatprep.mubr.f32.mxu0 0.0
  %276 = vmatmul.mubr.f32.gmra.mxu0 %v209
  %v277 = vpop.f32.mrf.mxu0
  %v278 = vadd.f32 %v39, %v277
  %v279 = vpop.f32.mrf.mxu0
  %v280 = vadd.f32 %v43, %v279
  %281 = vdwg.mxu0
  %282 = vmatprep.subr.mxu0 0.0
  %283 = vmatpush1.msra.mxu0 0.0
  %284 = vmatprep.subr.mxu0 0.0
  %285 = vmatpush1.msra.mxu0 0.0
  %286 = vmatprep.subr.mxu0 0.0
  %287 = vmatpush1.msra.mxu0 0.0
  %288 = vmatprep.subr.mxu0 0.0
  %289 = vmatpush1.msra.mxu0 0.0
  %290 = vmatprep.subr.mxu0 0.0
  %291 = vmatpush1.msra.mxu0 0.0
  %292 = vmatprep.subr.mxu0 0.0
  %293 = vmatpush1.msra.mxu0 0.0
  %294 = vmatprep.subr.mxu0 0.0
  %295 = vmatpush1.msra.mxu0 0.0
  %296 = vmatprep.subr.mxu0 0.0
  %297 = vmatpush1.msra.mxu0 0.0
  %298 = vmatprep.subr.mxu0 0.0
  %299 = vmatpush1.msra.mxu0 0.0
  %300 = vmatprep.subr.mxu0 0.0
  %301 = vmatpush1.msra.mxu0 0.0
  %302 = vmatprep.subr.mxu0 0.0
  %303 = vmatpush1.msra.mxu0 0.0
  %304 = vmatprep.subr.mxu0 0.0
  %305 = vmatpush1.msra.mxu0 0.0
  %306 = vmatprep.subr.mxu0 0.0
  %307 = vmatpush1.msra.mxu0 0.0
  %308 = vmatprep.subr.mxu0 0.0
  %309 = vmatpush1.msra.mxu0 0.0
  %310 = vmatprep.subr.mxu0 0.0
  %311 = vmatpush1.msra.mxu0 0.0
  %312 = vmatprep.subr.mxu0 %v32
  %313 = vmatpush1.msra.mxu0 %v31
  %314 = vmatprep.subr.mxu0 0.0
  %315 = vmatpush2.msra.mxu0 0.0
  %316 = vmatprep.subr.mxu0 0.0
  %317 = vmatpush2.msra.mxu0 0.0
  %318 = vmatprep.subr.mxu0 0.0
  %319 = vmatpush2.msra.mxu0 0.0
  %320 = vmatprep.subr.mxu0 0.0
  %321 = vmatpush2.msra.mxu0 0.0
  %322 = vmatprep.subr.mxu0 0.0
  %323 = vmatpush2.msra.mxu0 0.0
  %324 = vmatprep.subr.mxu0 0.0
  %325 = vmatpush2.msra.mxu0 0.0
  %326 = vmatprep.subr.mxu0 0.0
  %327 = vmatpush2.msra.mxu0 0.0
  %328 = vmatprep.subr.mxu0 0.0
  %329 = vmatpush2.msra.mxu0 0.0
  %330 = vmatprep.subr.mxu0 0.0
  %331 = vmatpush2.msra.mxu0 0.0
  %332 = vmatprep.subr.mxu0 0.0
  %333 = vmatpush2.msra.mxu0 0.0
  %334 = vmatprep.subr.mxu0 0.0
  %335 = vmatpush2.msra.mxu0 0.0
  %336 = vmatprep.subr.mxu0 0.0
  %337 = vmatpush2.msra.mxu0 0.0
  %338 = vmatprep.subr.mxu0 0.0
  %339 = vmatpush2.msra.mxu0 0.0
  %340 = vmatprep.subr.mxu0 0.0
  %341 = vmatpush2.msra.mxu0 0.0
  %342 = vmatprep.subr.mxu0 0.0
  %343 = vmatpush2.msra.mxu0 0.0
  %344 = vmatprep.subr.mxu0 0.0
  %345 = vmatpush2.msra.mxu0 0.0
  %346 = vmatprep.mubr.f32.mxu0 0.0
  %347 = vmatmul.mubr.f32.gmra.mxu0 %v209
  %v348 = vpop.f32.mrf.mxu0
  %v349 = vadd.f32 %v47, %v348
  %v350 = vpop.f32.mrf.mxu0
  %v351 = vadd.f32 %v51, %v350
  %352 = vdwg.mxu0
  %s353 = scalar_lea.vmem [#allocation2], 32
  %354 = vst [vmem:[%s353] sm:$0xff] %v278
  %355 = vst [vmem:[%s353 + $0x8] sm:$0xff] %v280
  %356 = vst [vmem:[%s353 + $0x10] sm:$0xff] %v349
  %357 = vst [vmem:[%s353 + $0x18] sm:$0xff] %v351
  %s358 = scalar_lea.vmem %s0, 16
  %v359 = vld [vmem:[%s358] sm:$0xff]
  %v361 = vsel %vm56, %v359, 0
  %363 = vmatprep.subr.mxu0 0.0
  %364 = vmatpush1.msra.mxu0 0.0
  %365 = vmatprep.subr.mxu0 0.0
  %366 = vmatpush1.msra.mxu0 0.0
  %367 = vmatprep.subr.mxu0 0.0
  %368 = vmatpush1.msra.mxu0 0.0
  %369 = vmatprep.subr.mxu0 0.0
  %370 = vmatpush1.msra.mxu0 0.0
  %371 = vmatprep.subr.mxu0 0.0
  %372 = vmatpush1.msra.mxu0 0.0
  %373 = vmatprep.subr.mxu0 0.0
  %374 = vmatpush1.msra.mxu0 0.0
  %375 = vmatprep.subr.mxu0 0.0
  %376 = vmatpush1.msra.mxu0 0.0
  %377 = vmatprep.subr.mxu0 0.0
  %378 = vmatpush1.msra.mxu0 0.0
  %379 = vmatprep.subr.mxu0 0.0
  %380 = vmatpush1.msra.mxu0 0.0
  %381 = vmatprep.subr.mxu0 0.0
  %382 = vmatpush1.msra.mxu0 0.0
  %383 = vmatprep.subr.mxu0 0.0
  %384 = vmatpush1.msra.mxu0 0.0
  %385 = vmatprep.subr.mxu0 0.0
  %386 = vmatpush1.msra.mxu0 0.0
  %387 = vmatprep.subr.mxu0 0.0
  %388 = vmatpush1.msra.mxu0 0.0
  %389 = vmatprep.subr.mxu0 0.0
  %390 = vmatpush1.msra.mxu0 0.0
  %391 = vmatprep.subr.mxu0 0.0
  %392 = vmatpush1.msra.mxu0 0.0
  %393 = vmatprep.subr.mxu0 %v30
  %394 = vmatpush1.msra.mxu0 %v29
  %395 = vmatprep.subr.mxu0 0.0
  %396 = vmatpush2.msra.mxu0 0.0
  %397 = vmatprep.subr.mxu0 0.0
  %398 = vmatpush2.msra.mxu0 0.0
  %399 = vmatprep.subr.mxu0 0.0
  %400 = vmatpush2.msra.mxu0 0.0
  %401 = vmatprep.subr.mxu0 0.0
  %402 = vmatpush2.msra.mxu0 0.0
  %403 = vmatprep.subr.mxu0 0.0
  %404 = vmatpush2.msra.mxu0 0.0
  %405 = vmatprep.subr.mxu0 0.0
  %406 = vmatpush2.msra.mxu0 0.0
  %407 = vmatprep.subr.mxu0 0.0
  %408 = vmatpush2.msra.mxu0 0.0
  %409 = vmatprep.subr.mxu0 0.0
  %410 = vmatpush2.msra.mxu0 0.0
  %411 = vmatprep.subr.mxu0 0.0
  %412 = vmatpush2.msra.mxu0 0.0
  %413 = vmatprep.subr.mxu0 0.0
  %414 = vmatpush2.msra.mxu0 0.0
  %415 = vmatprep.subr.mxu0 0.0
  %416 = vmatpush2.msra.mxu0 0.0
  %417 = vmatprep.subr.mxu0 0.0
  %418 = vmatpush2.msra.mxu0 0.0
  %419 = vmatprep.subr.mxu0 0.0
  %420 = vmatpush2.msra.mxu0 0.0
  %421 = vmatprep.subr.mxu0 0.0
  %422 = vmatpush2.msra.mxu0 0.0
  %423 = vmatprep.subr.mxu0 0.0
  %424 = vmatpush2.msra.mxu0 0.0
  %425 = vmatprep.subr.mxu0 0.0
  %426 = vmatpush2.msra.mxu0 0.0
  %427 = vmatprep.mubr.f32.mxu0 0.0
  %428 = vmatmul.mubr.f32.gmra.mxu0 %v361
  %v429 = vpop.f32.mrf.mxu0
  %v430 = vadd.f32 %v39, %v429
  %v431 = vpop.f32.mrf.mxu0
  %v432 = vadd.f32 %v43, %v431
  %433 = vdwg.mxu0
  %434 = vmatprep.subr.mxu0 0.0
  %435 = vmatpush1.msra.mxu0 0.0
  %436 = vmatprep.subr.mxu0 0.0
  %437 = vmatpush1.msra.mxu0 0.0
  %438 = vmatprep.subr.mxu0 0.0
  %439 = vmatpush1.msra.mxu0 0.0
  %440 = vmatprep.subr.mxu0 0.0
  %441 = vmatpush1.msra.mxu0 0.0
  %442 = vmatprep.subr.mxu0 0.0
  %443 = vmatpush1.msra.mxu0 0.0
  %444 = vmatprep.subr.mxu0 0.0
  %445 = vmatpush1.msra.mxu0 0.0
  %446 = vmatprep.subr.mxu0 0.0
  %447 = vmatpush1.msra.mxu0 0.0
  %448 = vmatprep.subr.mxu0 0.0
  %449 = vmatpush1.msra.mxu0 0.0
  %450 = vmatprep.subr.mxu0 0.0
  %451 = vmatpush1.msra.mxu0 0.0
  %452 = vmatprep.subr.mxu0 0.0
  %453 = vmatpush1.msra.mxu0 0.0
  %454 = vmatprep.subr.mxu0 0.0
  %455 = vmatpush1.msra.mxu0 0.0
  %456 = vmatprep.subr.mxu0 0.0
  %457 = vmatpush1.msra.mxu0 0.0
  %458 = vmatprep.subr.mxu0 0.0
  %459 = vmatpush1.msra.mxu0 0.0
  %460 = vmatprep.subr.mxu0 0.0
  %461 = vmatpush1.msra.mxu0 0.0
  %462 = vmatprep.subr.mxu0 0.0
  %463 = vmatpush1.msra.mxu0 0.0
  %464 = vmatprep.subr.mxu0 %v32
  %465 = vmatpush1.msra.mxu0 %v31
  %466 = vmatprep.subr.mxu0 0.0
  %467 = vmatpush2.msra.mxu0 0.0
  %468 = vmatprep.subr.mxu0 0.0
  %469 = vmatpush2.msra.mxu0 0.0
  %470 = vmatprep.subr.mxu0 0.0
  %471 = vmatpush2.msra.mxu0 0.0
  %472 = vmatprep.subr.mxu0 0.0
  %473 = vmatpush2.msra.mxu0 0.0
  %474 = vmatprep.subr.mxu0 0.0
  %475 = vmatpush2.msra.mxu0 0.0
  %476 = vmatprep.subr.mxu0 0.0
  %477 = vmatpush2.msra.mxu0 0.0
  %478 = vmatprep.subr.mxu0 0.0
  %479 = vmatpush2.msra.mxu0 0.0
  %480 = vmatprep.subr.mxu0 0.0
  %481 = vmatpush2.msra.mxu0 0.0
  %482 = vmatprep.subr.mxu0 0.0
  %483 = vmatpush2.msra.mxu0 0.0
  %484 = vmatprep.subr.mxu0 0.0
  %485 = vmatpush2.msra.mxu0 0.0
  %486 = vmatprep.subr.mxu0 0.0
  %487 = vmatpush2.msra.mxu0 0.0
  %488 = vmatprep.subr.mxu0 0.0
  %489 = vmatpush2.msra.mxu0 0.0
  %490 = vmatprep.subr.mxu0 0.0
  %491 = vmatpush2.msra.mxu0 0.0
  %492 = vmatprep.subr.mxu0 0.0
  %493 = vmatpush2.msra.mxu0 0.0
  %494 = vmatprep.subr.mxu0 0.0
  %495 = vmatpush2.msra.mxu0 0.0
  %496 = vmatprep.subr.mxu0 0.0
  %497 = vmatpush2.msra.mxu0 0.0
  %498 = vmatprep.mubr.f32.mxu0 0.0
  %499 = vmatmul.mubr.f32.gmra.mxu0 %v361
  %v500 = vpop.f32.mrf.mxu0
  %v501 = vadd.f32 %v47, %v500
  %v502 = vpop.f32.mrf.mxu0
  %v503 = vadd.f32 %v51, %v502
  %504 = vdwg.mxu0
  %s505 = scalar_lea.vmem [#allocation2], 64
  %506 = vst [vmem:[%s505] sm:$0xff] %v430
  %507 = vst [vmem:[%s505 + $0x8] sm:$0xff] %v432
  %508 = vst [vmem:[%s505 + $0x10] sm:$0xff] %v501
  %509 = vst [vmem:[%s505 + $0x18] sm:$0xff] %v503
  %s510 = scalar_lea.vmem %s0, 24
  %v511 = vld [vmem:[%s510] sm:$0xff]
  %v513 = vsel %vm56, %v511, 0
  %515 = vmatprep.subr.mxu0 0.0
  %516 = vmatpush1.msra.mxu0 0.0
  %517 = vmatprep.subr.mxu0 0.0
  %518 = vmatpush1.msra.mxu0 0.0
  %519 = vmatprep.subr.mxu0 0.0
  %520 = vmatpush1.msra.mxu0 0.0
  %521 = vmatprep.subr.mxu0 0.0
  %522 = vmatpush1.msra.mxu0 0.0
  %523 = vmatprep.subr.mxu0 0.0
  %524 = vmatpush1.msra.mxu0 0.0
  %525 = vmatprep.subr.mxu0 0.0
  %526 = vmatpush1.msra.mxu0 0.0
  %527 = vmatprep.subr.mxu0 0.0
  %528 = vmatpush1.msra.mxu0 0.0
  %529 = vmatprep.subr.mxu0 0.0
  %530 = vmatpush1.msra.mxu0 0.0
  %531 = vmatprep.subr.mxu0 0.0
  %532 = vmatpush1.msra.mxu0 0.0
  %533 = vmatprep.subr.mxu0 0.0
  %534 = vmatpush1.msra.mxu0 0.0
  %535 = vmatprep.subr.mxu0 0.0
  %536 = vmatpush1.msra.mxu0 0.0
  %537 = vmatprep.subr.mxu0 0.0
  %538 = vmatpush1.msra.mxu0 0.0
  %539 = vmatprep.subr.mxu0 0.0
  %540 = vmatpush1.msra.mxu0 0.0
  %541 = vmatprep.subr.mxu0 0.0
  %542 = vmatpush1.msra.mxu0 0.0
  %543 = vmatprep.subr.mxu0 0.0
  %544 = vmatpush1.msra.mxu0 0.0
  %545 = vmatprep.subr.mxu0 %v30
  %546 = vmatpush1.msra.mxu0 %v29
  %547 = vmatprep.subr.mxu0 0.0
  %548 = vmatpush2.msra.mxu0 0.0
  %549 = vmatprep.subr.mxu0 0.0
  %550 = vmatpush2.msra.mxu0 0.0
  %551 = vmatprep.subr.mxu0 0.0
  %552 = vmatpush2.msra.mxu0 0.0
  %553 = vmatprep.subr.mxu0 0.0
  %554 = vmatpush2.msra.mxu0 0.0
  %555 = vmatprep.subr.mxu0 0.0
  %556 = vmatpush2.msra.mxu0 0.0
  %557 = vmatprep.subr.mxu0 0.0
  %558 = vmatpush2.msra.mxu0 0.0
  %559 = vmatprep.subr.mxu0 0.0
  %560 = vmatpush2.msra.mxu0 0.0
  %561 = vmatprep.subr.mxu0 0.0
  %562 = vmatpush2.msra.mxu0 0.0
  %563 = vmatprep.subr.mxu0 0.0
  %564 = vmatpush2.msra.mxu0 0.0
  %565 = vmatprep.subr.mxu0 0.0
  %566 = vmatpush2.msra.mxu0 0.0
  %567 = vmatprep.subr.mxu0 0.0
  %568 = vmatpush2.msra.mxu0 0.0
  %569 = vmatprep.subr.mxu0 0.0
  %570 = vmatpush2.msra.mxu0 0.0
  %571 = vmatprep.subr.mxu0 0.0
  %572 = vmatpush2.msra.mxu0 0.0
  %573 = vmatprep.subr.mxu0 0.0
  %574 = vmatpush2.msra.mxu0 0.0
  %575 = vmatprep.subr.mxu0 0.0
  %576 = vmatpush2.msra.mxu0 0.0
  %577 = vmatprep.subr.mxu0 0.0
  %578 = vmatpush2.msra.mxu0 0.0
  %579 = vmatprep.mubr.f32.mxu0 0.0
  %580 = vmatmul.mubr.f32.gmra.mxu0 %v513
  %v581 = vpop.f32.mrf.mxu0
  %v582 = vadd.f32 %v39, %v581
  %v583 = vpop.f32.mrf.mxu0
  %v584 = vadd.f32 %v43, %v583
  %585 = vdwg.mxu0
  %586 = vmatprep.subr.mxu0 0.0
  %587 = vmatpush1.msra.mxu0 0.0
  %588 = vmatprep.subr.mxu0 0.0
  %589 = vmatpush1.msra.mxu0 0.0
  %590 = vmatprep.subr.mxu0 0.0
  %591 = vmatpush1.msra.mxu0 0.0
  %592 = vmatprep.subr.mxu0 0.0
  %593 = vmatpush1.msra.mxu0 0.0
  %594 = vmatprep.subr.mxu0 0.0
  %595 = vmatpush1.msra.mxu0 0.0
  %596 = vmatprep.subr.mxu0 0.0
  %597 = vmatpush1.msra.mxu0 0.0
  %598 = vmatprep.subr.mxu0 0.0
  %599 = vmatpush1.msra.mxu0 0.0
  %600 = vmatprep.subr.mxu0 0.0
  %601 = vmatpush1.msra.mxu0 0.0
  %602 = vmatprep.subr.mxu0 0.0
  %603 = vmatpush1.msra.mxu0 0.0
  %604 = vmatprep.subr.mxu0 0.0
  %605 = vmatpush1.msra.mxu0 0.0
  %606 = vmatprep.subr.mxu0 0.0
  %607 = vmatpush1.msra.mxu0 0.0
  %608 = vmatprep.subr.mxu0 0.0
  %609 = vmatpush1.msra.mxu0 0.0
  %610 = vmatprep.subr.mxu0 0.0
  %611 = vmatpush1.msra.mxu0 0.0
  %612 = vmatprep.subr.mxu0 0.0
  %613 = vmatpush1.msra.mxu0 0.0
  %614 = vmatprep.subr.mxu0 0.0
  %615 = vmatpush1.msra.mxu0 0.0
  %616 = vmatprep.subr.mxu0 %v32
  %617 = vmatpush1.msra.mxu0 %v31
  %618 = vmatprep.subr.mxu0 0.0
  %619 = vmatpush2.msra.mxu0 0.0
  %620 = vmatprep.subr.mxu0 0.0
  %621 = vmatpush2.msra.mxu0 0.0
  %622 = vmatprep.subr.mxu0 0.0
  %623 = vmatpush2.msra.mxu0 0.0
  %624 = vmatprep.subr.mxu0 0.0
  %625 = vmatpush2.msra.mxu0 0.0
  %626 = vmatprep.subr.mxu0 0.0
  %627 = vmatpush2.msra.mxu0 0.0
  %628 = vmatprep.subr.mxu0 0.0
  %629 = vmatpush2.msra.mxu0 0.0
  %630 = vmatprep.subr.mxu0 0.0
  %631 = vmatpush2.msra.mxu0 0.0
  %632 = vmatprep.subr.mxu0 0.0
  %633 = vmatpush2.msra.mxu0 0.0
  %634 = vmatprep.subr.mxu0 0.0
  %635 = vmatpush2.msra.mxu0 0.0
  %636 = vmatprep.subr.mxu0 0.0
  %637 = vmatpush2.msra.mxu0 0.0
  %638 = vmatprep.subr.mxu0 0.0
  %639 = vmatpush2.msra.mxu0 0.0
  %640 = vmatprep.subr.mxu0 0.0
  %641 = vmatpush2.msra.mxu0 0.0
  %642 = vmatprep.subr.mxu0 0.0
  %643 = vmatpush2.msra.mxu0 0.0
  %644 = vmatprep.subr.mxu0 0.0
  %645 = vmatpush2.msra.mxu0 0.0
  %646 = vmatprep.subr.mxu0 0.0
  %647 = vmatpush2.msra.mxu0 0.0
  %648 = vmatprep.subr.mxu0 0.0
  %649 = vmatpush2.msra.mxu0 0.0
  %650 = vmatprep.mubr.f32.mxu0 0.0
  %651 = vmatmul.mubr.f32.gmra.mxu0 %v513
  %v652 = vpop.f32.mrf.mxu0
  %v653 = vadd.f32 %v47, %v652
  %v654 = vpop.f32.mrf.mxu0
  %v655 = vadd.f32 %v51, %v654
  %656 = vdwg.mxu0
  %s657 = scalar_lea.vmem [#allocation2], 96
  %658 = vst [vmem:[%s657] sm:$0xff] %v582
  %659 = vst [vmem:[%s657 + $0x8] sm:$0xff] %v584
  %660 = vst [vmem:[%s657 + $0x10] sm:$0xff] %v653
  %661 = vst [vmem:[%s657 + $0x18] sm:$0xff] %v655
  %s662 = scalar_lea.vmem %s0, 32
  %v663 = vld [vmem:[%s662] sm:$0xff]
  %v665 = vsel %vm56, %v663, 0
  %667 = vmatprep.subr.mxu0 0.0
  %668 = vmatpush1.msra.mxu0 0.0
  %669 = vmatprep.subr.mxu0 0.0
  %670 = vmatpush1.msra.mxu0 0.0
  %671 = vmatprep.subr.mxu0 0.0
  %672 = vmatpush1.msra.mxu0 0.0
  %673 = vmatprep.subr.mxu0 0.0
  %674 = vmatpush1.msra.mxu0 0.0
  %675 = vmatprep.subr.mxu0 0.0
  %676 = vmatpush1.msra.mxu0 0.0
  %677 = vmatprep.subr.mxu0 0.0
  %678 = vmatpush1.msra.mxu0 0.0
  %679 = vmatprep.subr.mxu0 0.0
  %680 = vmatpush1.msra.mxu0 0.0
  %681 = vmatprep.subr.mxu0 0.0
  %682 = vmatpush1.msra.mxu0 0.0
  %683 = vmatprep.subr.mxu0 0.0
  %684 = vmatpush1.msra.mxu0 0.0
  %685 = vmatprep.subr.mxu0 0.0
  %686 = vmatpush1.msra.mxu0 0.0
  %687 = vmatprep.subr.mxu0 0.0
  %688 = vmatpush1.msra.mxu0 0.0
  %689 = vmatprep.subr.mxu0 0.0
  %690 = vmatpush1.msra.mxu0 0.0
  %691 = vmatprep.subr.mxu0 0.0
  %692 = vmatpush1.msra.mxu0 0.0
  %693 = vmatprep.subr.mxu0 0.0
  %694 = vmatpush1.msra.mxu0 0.0
  %695 = vmatprep.subr.mxu0 0.0
  %696 = vmatpush1.msra.mxu0 0.0
  %697 = vmatprep.subr.mxu0 %v30
  %698 = vmatpush1.msra.mxu0 %v29
  %699 = vmatprep.subr.mxu0 0.0
  %700 = vmatpush2.msra.mxu0 0.0
  %701 = vmatprep.subr.mxu0 0.0
  %702 = vmatpush2.msra.mxu0 0.0
  %703 = vmatprep.subr.mxu0 0.0
  %704 = vmatpush2.msra.mxu0 0.0
  %705 = vmatprep.subr.mxu0 0.0
  %706 = vmatpush2.msra.mxu0 0.0
  %707 = vmatprep.subr.mxu0 0.0
  %708 = vmatpush2.msra.mxu0 0.0
  %709 = vmatprep.subr.mxu0 0.0
  %710 = vmatpush2.msra.mxu0 0.0
  %711 = vmatprep.subr.mxu0 0.0
  %712 = vmatpush2.msra.mxu0 0.0
  %713 = vmatprep.subr.mxu0 0.0
  %714 = vmatpush2.msra.mxu0 0.0
  %715 = vmatprep.subr.mxu0 0.0
  %716 = vmatpush2.msra.mxu0 0.0
  %717 = vmatprep.subr.mxu0 0.0
  %718 = vmatpush2.msra.mxu0 0.0
  %719 = vmatprep.subr.mxu0 0.0
  %720 = vmatpush2.msra.mxu0 0.0
  %721 = vmatprep.subr.mxu0 0.0
  %722 = vmatpush2.msra.mxu0 0.0
  %723 = vmatprep.subr.mxu0 0.0
  %724 = vmatpush2.msra.mxu0 0.0
  %725 = vmatprep.subr.mxu0 0.0
  %726 = vmatpush2.msra.mxu0 0.0
  %727 = vmatprep.subr.mxu0 0.0
  %728 = vmatpush2.msra.mxu0 0.0
  %729 = vmatprep.subr.mxu0 0.0
  %730 = vmatpush2.msra.mxu0 0.0
  %731 = vmatprep.mubr.f32.mxu0 0.0
  %732 = vmatmul.mubr.f32.gmra.mxu0 %v665
  %v733 = vpop.f32.mrf.mxu0
  %v734 = vadd.f32 %v39, %v733
  %v735 = vpop.f32.mrf.mxu0
  %v736 = vadd.f32 %v43, %v735
  %737 = vdwg.mxu0
  %738 = vmatprep.subr.mxu0 0.0
  %739 = vmatpush1.msra.mxu0 0.0
  %740 = vmatprep.subr.mxu0 0.0
  %741 = vmatpush1.msra.mxu0 0.0
  %742 = vmatprep.subr.mxu0 0.0
  %743 = vmatpush1.msra.mxu0 0.0
  %744 = vmatprep.subr.mxu0 0.0
  %745 = vmatpush1.msra.mxu0 0.0
  %746 = vmatprep.subr.mxu0 0.0
  %747 = vmatpush1.msra.mxu0 0.0
  %748 = vmatprep.subr.mxu0 0.0
  %749 = vmatpush1.msra.mxu0 0.0
  %750 = vmatprep.subr.mxu0 0.0
  %751 = vmatpush1.msra.mxu0 0.0
  %752 = vmatprep.subr.mxu0 0.0
  %753 = vmatpush1.msra.mxu0 0.0
  %754 = vmatprep.subr.mxu0 0.0
  %755 = vmatpush1.msra.mxu0 0.0
  %756 = vmatprep.subr.mxu0 0.0
  %757 = vmatpush1.msra.mxu0 0.0
  %758 = vmatprep.subr.mxu0 0.0
  %759 = vmatpush1.msra.mxu0 0.0
  %760 = vmatprep.subr.mxu0 0.0
  %761 = vmatpush1.msra.mxu0 0.0
  %762 = vmatprep.subr.mxu0 0.0
  %763 = vmatpush1.msra.mxu0 0.0
  %764 = vmatprep.subr.mxu0 0.0
  %765 = vmatpush1.msra.mxu0 0.0
  %766 = vmatprep.subr.mxu0 0.0
  %767 = vmatpush1.msra.mxu0 0.0
  %768 = vmatprep.subr.mxu0 %v32
  %769 = vmatpush1.msra.mxu0 %v31
  %770 = vmatprep.subr.mxu0 0.0
  %771 = vmatpush2.msra.mxu0 0.0
  %772 = vmatprep.subr.mxu0 0.0
  %773 = vmatpush2.msra.mxu0 0.0
  %774 = vmatprep.subr.mxu0 0.0
  %775 = vmatpush2.msra.mxu0 0.0
  %776 = vmatprep.subr.mxu0 0.0
  %777 = vmatpush2.msra.mxu0 0.0
  %778 = vmatprep.subr.mxu0 0.0
  %779 = vmatpush2.msra.mxu0 0.0
  %780 = vmatprep.subr.mxu0 0.0
  %781 = vmatpush2.msra.mxu0 0.0
  %782 = vmatprep.subr.mxu0 0.0
  %783 = vmatpush2.msra.mxu0 0.0
  %784 = vmatprep.subr.mxu0 0.0
  %785 = vmatpush2.msra.mxu0 0.0
  %786 = vmatprep.subr.mxu0 0.0
  %787 = vmatpush2.msra.mxu0 0.0
  %788 = vmatprep.subr.mxu0 0.0
  %789 = vmatpush2.msra.mxu0 0.0
  %790 = vmatprep.subr.mxu0 0.0
  %791 = vmatpush2.msra.mxu0 0.0
  %792 = vmatprep.subr.mxu0 0.0
  %793 = vmatpush2.msra.mxu0 0.0
  %794 = vmatprep.subr.mxu0 0.0
  %795 = vmatpush2.msra.mxu0 0.0
  %796 = vmatprep.subr.mxu0 0.0
  %797 = vmatpush2.msra.mxu0 0.0
  %798 = vmatprep.subr.mxu0 0.0
  %799 = vmatpush2.msra.mxu0 0.0
  %800 = vmatprep.subr.mxu0 0.0
  %801 = vmatpush2.msra.mxu0 0.0
  %802 = vmatprep.mubr.f32.mxu0 0.0
  %803 = vmatmul.mubr.f32.gmra.mxu0 %v665
  %v804 = vpop.f32.mrf.mxu0
  %v805 = vadd.f32 %v47, %v804
  %v806 = vpop.f32.mrf.mxu0
  %v807 = vadd.f32 %v51, %v806
  %808 = vdwg.mxu0
  %s809 = scalar_lea.vmem [#allocation2], 128
  %810 = vst [vmem:[%s809] sm:$0xff] %v734
  %811 = vst [vmem:[%s809 + $0x8] sm:$0xff] %v736
  %812 = vst [vmem:[%s809 + $0x10] sm:$0xff] %v805
  %813 = vst [vmem:[%s809 + $0x18] sm:$0xff] %v807
  %s814 = scalar_lea.vmem %s0, 40
  %v815 = vld [vmem:[%s814] sm:$0xff]
  %v817 = vsel %vm56, %v815, 0
  %819 = vmatprep.subr.mxu0 0.0
  %820 = vmatpush1.msra.mxu0 0.0
  %821 = vmatprep.subr.mxu0 0.0
  %822 = vmatpush1.msra.mxu0 0.0
  %823 = vmatprep.subr.mxu0 0.0
  %824 = vmatpush1.msra.mxu0 0.0
  %825 = vmatprep.subr.mxu0 0.0
  %826 = vmatpush1.msra.mxu0 0.0
  %827 = vmatprep.subr.mxu0 0.0
  %828 = vmatpush1.msra.mxu0 0.0
  %829 = vmatprep.subr.mxu0 0.0
  %830 = vmatpush1.msra.mxu0 0.0
  %831 = vmatprep.subr.mxu0 0.0
  %832 = vmatpush1.msra.mxu0 0.0
  %833 = vmatprep.subr.mxu0 0.0
  %834 = vmatpush1.msra.mxu0 0.0
  %835 = vmatprep.subr.mxu0 0.0
  %836 = vmatpush1.msra.mxu0 0.0
  %837 = vmatprep.subr.mxu0 0.0
  %838 = vmatpush1.msra.mxu0 0.0
  %839 = vmatprep.subr.mxu0 0.0
  %840 = vmatpush1.msra.mxu0 0.0
  %841 = vmatprep.subr.mxu0 0.0
  %842 = vmatpush1.msra.mxu0 0.0
  %843 = vmatprep.subr.mxu0 0.0
  %844 = vmatpush1.msra.mxu0 0.0
  %845 = vmatprep.subr.mxu0 0.0
  %846 = vmatpush1.msra.mxu0 0.0
  %847 = vmatprep.subr.mxu0 0.0
  %848 = vmatpush1.msra.mxu0 0.0
  %849 = vmatprep.subr.mxu0 %v30
  %850 = vmatpush1.msra.mxu0 %v29
  %851 = vmatprep.subr.mxu0 0.0
  %852 = vmatpush2.msra.mxu0 0.0
  %853 = vmatprep.subr.mxu0 0.0
  %854 = vmatpush2.msra.mxu0 0.0
  %855 = vmatprep.subr.mxu0 0.0
  %856 = vmatpush2.msra.mxu0 0.0
  %857 = vmatprep.subr.mxu0 0.0
  %858 = vmatpush2.msra.mxu0 0.0
  %859 = vmatprep.subr.mxu0 0.0
  %860 = vmatpush2.msra.mxu0 0.0
  %861 = vmatprep.subr.mxu0 0.0
  %862 = vmatpush2.msra.mxu0 0.0
  %863 = vmatprep.subr.mxu0 0.0
  %864 = vmatpush2.msra.mxu0 0.0
  %865 = vmatprep.subr.mxu0 0.0
  %866 = vmatpush2.msra.mxu0 0.0
  %867 = vmatprep.subr.mxu0 0.0
  %868 = vmatpush2.msra.mxu0 0.0
  %869 = vmatprep.subr.mxu0 0.0
  %870 = vmatpush2.msra.mxu0 0.0
  %871 = vmatprep.subr.mxu0 0.0
  %872 = vmatpush2.msra.mxu0 0.0
  %873 = vmatprep.subr.mxu0 0.0
  %874 = vmatpush2.msra.mxu0 0.0
  %875 = vmatprep.subr.mxu0 0.0
  %876 = vmatpush2.msra.mxu0 0.0
  %877 = vmatprep.subr.mxu0 0.0
  %878 = vmatpush2.msra.mxu0 0.0
  %879 = vmatprep.subr.mxu0 0.0
  %880 = vmatpush2.msra.mxu0 0.0
  %881 = vmatprep.subr.mxu0 0.0
  %882 = vmatpush2.msra.mxu0 0.0
  %883 = vmatprep.mubr.f32.mxu0 0.0
  %884 = vmatmul.mubr.f32.gmra.mxu0 %v817
  %v885 = vpop.f32.mrf.mxu0
  %v886 = vadd.f32 %v39, %v885
  %v887 = vpop.f32.mrf.mxu0
  %v888 = vadd.f32 %v43, %v887
  %889 = vdwg.mxu0
  %890 = vmatprep.subr.mxu0 0.0
  %891 = vmatpush1.msra.mxu0 0.0
  %892 = vmatprep.subr.mxu0 0.0
  %893 = vmatpush1.msra.mxu0 0.0
  %894 = vmatprep.subr.mxu0 0.0
  %895 = vmatpush1.msra.mxu0 0.0
  %896 = vmatprep.subr.mxu0 0.0
  %897 = vmatpush1.msra.mxu0 0.0
  %898 = vmatprep.subr.mxu0 0.0
  %899 = vmatpush1.msra.mxu0 0.0
  %900 = vmatprep.subr.mxu0 0.0
  %901 = vmatpush1.msra.mxu0 0.0
  %902 = vmatprep.subr.mxu0 0.0
  %903 = vmatpush1.msra.mxu0 0.0
  %904 = vmatprep.subr.mxu0 0.0
  %905 = vmatpush1.msra.mxu0 0.0
  %906 = vmatprep.subr.mxu0 0.0
  %907 = vmatpush1.msra.mxu0 0.0
  %908 = vmatprep.subr.mxu0 0.0
  %909 = vmatpush1.msra.mxu0 0.0
  %910 = vmatprep.subr.mxu0 0.0
  %911 = vmatpush1.msra.mxu0 0.0
  %912 = vmatprep.subr.mxu0 0.0
  %913 = vmatpush1.msra.mxu0 0.0
  %914 = vmatprep.subr.mxu0 0.0
  %915 = vmatpush1.msra.mxu0 0.0
  %916 = vmatprep.subr.mxu0 0.0
  %917 = vmatpush1.msra.mxu0 0.0
  %918 = vmatprep.subr.mxu0 0.0
  %919 = vmatpush1.msra.mxu0 0.0
  %920 = vmatprep.subr.mxu0 %v32
  %921 = vmatpush1.msra.mxu0 %v31
  %922 = vmatprep.subr.mxu0 0.0
  %923 = vmatpush2.msra.mxu0 0.0
  %924 = vmatprep.subr.mxu0 0.0
  %925 = vmatpush2.msra.mxu0 0.0
  %926 = vmatprep.subr.mxu0 0.0
  %927 = vmatpush2.msra.mxu0 0.0
  %928 = vmatprep.subr.mxu0 0.0
  %929 = vmatpush2.msra.mxu0 0.0
  %930 = vmatprep.subr.mxu0 0.0
  %931 = vmatpush2.msra.mxu0 0.0
  %932 = vmatprep.subr.mxu0 0.0
  %933 = vmatpush2.msra.mxu0 0.0
  %934 = vmatprep.subr.mxu0 0.0
  %935 = vmatpush2.msra.mxu0 0.0
  %936 = vmatprep.subr.mxu0 0.0
  %937 = vmatpush2.msra.mxu0 0.0
  %938 = vmatprep.subr.mxu0 0.0
  %939 = vmatpush2.msra.mxu0 0.0
  %940 = vmatprep.subr.mxu0 0.0
  %941 = vmatpush2.msra.mxu0 0.0
  %942 = vmatprep.subr.mxu0 0.0
  %943 = vmatpush2.msra.mxu0 0.0
  %944 = vmatprep.subr.mxu0 0.0
  %945 = vmatpush2.msra.mxu0 0.0
  %946 = vmatprep.subr.mxu0 0.0
  %947 = vmatpush2.msra.mxu0 0.0
  %948 = vmatprep.subr.mxu0 0.0
  %949 = vmatpush2.msra.mxu0 0.0
  %950 = vmatprep.subr.mxu0 0.0
  %951 = vmatpush2.msra.mxu0 0.0
  %952 = vmatprep.subr.mxu0 0.0
  %953 = vmatpush2.msra.mxu0 0.0
  %954 = vmatprep.mubr.f32.mxu0 0.0
  %955 = vmatmul.mubr.f32.gmra.mxu0 %v817
  %v956 = vpop.f32.mrf.mxu0
  %v957 = vadd.f32 %v47, %v956
  %v958 = vpop.f32.mrf.mxu0
  %v959 = vadd.f32 %v51, %v958
  %960 = vdwg.mxu0
  %s961 = scalar_lea.vmem [#allocation2], 160
  %962 = vst [vmem:[%s961] sm:$0xff] %v886
  %963 = vst [vmem:[%s961 + $0x8] sm:$0xff] %v888
  %964 = vst [vmem:[%s961 + $0x10] sm:$0xff] %v957
  %965 = vst [vmem:[%s961 + $0x18] sm:$0xff] %v959
  %s966 = scalar_lea.vmem %s0, 48
  %v967 = vld [vmem:[%s966] sm:$0xff]
  %v969 = vsel %vm56, %v967, 0
  %971 = vmatprep.subr.mxu0 0.0
  %972 = vmatpush1.msra.mxu0 0.0
  %973 = vmatprep.subr.mxu0 0.0
  %974 = vmatpush1.msra.mxu0 0.0
  %975 = vmatprep.subr.mxu0 0.0
  %976 = vmatpush1.msra.mxu0 0.0
  %977 = vmatprep.subr.mxu0 0.0
  %978 = vmatpush1.msra.mxu0 0.0
  %979 = vmatprep.subr.mxu0 0.0
  %980 = vmatpush1.msra.mxu0 0.0
  %981 = vmatprep.subr.mxu0 0.0
  %982 = vmatpush1.msra.mxu0 0.0
  %983 = vmatprep.subr.mxu0 0.0
  %984 = vmatpush1.msra.mxu0 0.0
  %985 = vmatprep.subr.mxu0 0.0
  %986 = vmatpush1.msra.mxu0 0.0
  %987 = vmatprep.subr.mxu0 0.0
  %988 = vmatpush1.msra.mxu0 0.0
  %989 = vmatprep.subr.mxu0 0.0
  %990 = vmatpush1.msra.mxu0 0.0
  %991 = vmatprep.subr.mxu0 0.0
  %992 = vmatpush1.msra.mxu0 0.0
  %993 = vmatprep.subr.mxu0 0.0
  %994 = vmatpush1.msra.mxu0 0.0
  %995 = vmatprep.subr.mxu0 0.0
  %996 = vmatpush1.msra.mxu0 0.0
  %997 = vmatprep.subr.mxu0 0.0
  %998 = vmatpush1.msra.mxu0 0.0
  %999 = vmatprep.subr.mxu0 0.0
  %1000 = vmatpush1.msra.mxu0 0.0
  %1001 = vmatprep.subr.mxu0 %v30
  %1002 = vmatpush1.msra.mxu0 %v29
  %1003 = vmatprep.subr.mxu0 0.0
  %1004 = vmatpush2.msra.mxu0 0.0
  %1005 = vmatprep.subr.mxu0 0.0
  %1006 = vmatpush2.msra.mxu0 0.0
  %1007 = vmatprep.subr.mxu0 0.0
  %1008 = vmatpush2.msra.mxu0 0.0
  %1009 = vmatprep.subr.mxu0 0.0
  %1010 = vmatpush2.msra.mxu0 0.0
  %1011 = vmatprep.subr.mxu0 0.0
  %1012 = vmatpush2.msra.mxu0 0.0
  %1013 = vmatprep.subr.mxu0 0.0
  %1014 = vmatpush2.msra.mxu0 0.0
  %1015 = vmatprep.subr.mxu0 0.0
  %1016 = vmatpush2.msra.mxu0 0.0
  %1017 = vmatprep.subr.mxu0 0.0
  %1018 = vmatpush2.msra.mxu0 0.0
  %1019 = vmatprep.subr.mxu0 0.0
  %1020 = vmatpush2.msra.mxu0 0.0
  %1021 = vmatprep.subr.mxu0 0.0
  %1022 = vmatpush2.msra.mxu0 0.0
  %1023 = vmatprep.subr.mxu0 0.0
  %1024 = vmatpush2.msra.mxu0 0.0
  %1025 = vmatprep.subr.mxu0 0.0
  %1026 = vmatpush2.msra.mxu0 0.0
  %1027 = vmatprep.subr.mxu0 0.0
  %1028 = vmatpush2.msra.mxu0 0.0
  %1029 = vmatprep.subr.mxu0 0.0
  %1030 = vmatpush2.msra.mxu0 0.0
  %1031 = vmatprep.subr.mxu0 0.0
  %1032 = vmatpush2.msra.mxu0 0.0
  %1033 = vmatprep.subr.mxu0 0.0
  %1034 = vmatpush2.msra.mxu0 0.0
  %1035 = vmatprep.mubr.f32.mxu0 0.0
  %1036 = vmatmul.mubr.f32.gmra.mxu0 %v969
  %v1037 = vpop.f32.mrf.mxu0
  %v1038 = vadd.f32 %v39, %v1037
  %v1039 = vpop.f32.mrf.mxu0
  %v1040 = vadd.f32 %v43, %v1039
  %1041 = vdwg.mxu0
  %1042 = vmatprep.subr.mxu0 0.0
  %1043 = vmatpush1.msra.mxu0 0.0
  %1044 = vmatprep.subr.mxu0 0.0
  %1045 = vmatpush1.msra.mxu0 0.0
  %1046 = vmatprep.subr.mxu0 0.0
  %1047 = vmatpush1.msra.mxu0 0.0
  %1048 = vmatprep.subr.mxu0 0.0
  %1049 = vmatpush1.msra.mxu0 0.0
  %1050 = vmatprep.subr.mxu0 0.0
  %1051 = vmatpush1.msra.mxu0 0.0
  %1052 = vmatprep.subr.mxu0 0.0
  %1053 = vmatpush1.msra.mxu0 0.0
  %1054 = vmatprep.subr.mxu0 0.0
  %1055 = vmatpush1.msra.mxu0 0.0
  %1056 = vmatprep.subr.mxu0 0.0
  %1057 = vmatpush1.msra.mxu0 0.0
  %1058 = vmatprep.subr.mxu0 0.0
  %1059 = vmatpush1.msra.mxu0 0.0
  %1060 = vmatprep.subr.mxu0 0.0
  %1061 = vmatpush1.msra.mxu0 0.0
  %1062 = vmatprep.subr.mxu0 0.0
  %1063 = vmatpush1.msra.mxu0 0.0
  %1064 = vmatprep.subr.mxu0 0.0
  %1065 = vmatpush1.msra.mxu0 0.0
  %1066 = vmatprep.subr.mxu0 0.0
  %1067 = vmatpush1.msra.mxu0 0.0
  %1068 = vmatprep.subr.mxu0 0.0
  %1069 = vmatpush1.msra.mxu0 0.0
  %1070 = vmatprep.subr.mxu0 0.0
  %1071 = vmatpush1.msra.mxu0 0.0
  %1072 = vmatprep.subr.mxu0 %v32
  %1073 = vmatpush1.msra.mxu0 %v31
  %1074 = vmatprep.subr.mxu0 0.0
  %1075 = vmatpush2.msra.mxu0 0.0
  %1076 = vmatprep.subr.mxu0 0.0
  %1077 = vmatpush2.msra.mxu0 0.0
  %1078 = vmatprep.subr.mxu0 0.0
  %1079 = vmatpush2.msra.mxu0 0.0
  %1080 = vmatprep.subr.mxu0 0.0
  %1081 = vmatpush2.msra.mxu0 0.0
  %1082 = vmatprep.subr.mxu0 0.0
  %1083 = vmatpush2.msra.mxu0 0.0
  %1084 = vmatprep.subr.mxu0 0.0
  %1085 = vmatpush2.msra.mxu0 0.0
  %1086 = vmatprep.subr.mxu0 0.0
  %1087 = vmatpush2.msra.mxu0 0.0
  %1088 = vmatprep.subr.mxu0 0.0
  %1089 = vmatpush2.msra.mxu0 0.0
  %1090 = vmatprep.subr.mxu0 0.0
  %1091 = vmatpush2.msra.mxu0 0.0
  %1092 = vmatprep.subr.mxu0 0.0
  %1093 = vmatpush2.msra.mxu0 0.0
  %1094 = vmatprep.subr.mxu0 0.0
  %1095 = vmatpush2.msra.mxu0 0.0
  %1096 = vmatprep.subr.mxu0 0.0
  %1097 = vmatpush2.msra.mxu0 0.0
  %1098 = vmatprep.subr.mxu0 0.0
  %1099 = vmatpush2.msra.mxu0 0.0
  %1100 = vmatprep.subr.mxu0 0.0
  %1101 = vmatpush2.msra.mxu0 0.0
  %1102 = vmatprep.subr.mxu0 0.0
  %1103 = vmatpush2.msra.mxu0 0.0
  %1104 = vmatprep.subr.mxu0 0.0
  %1105 = vmatpush2.msra.mxu0 0.0
  %1106 = vmatprep.mubr.f32.mxu0 0.0
  %1107 = vmatmul.mubr.f32.gmra.mxu0 %v969
  %v1108 = vpop.f32.mrf.mxu0
  %v1109 = vadd.f32 %v47, %v1108
  %v1110 = vpop.f32.mrf.mxu0
  %v1111 = vadd.f32 %v51, %v1110
  %1112 = vdwg.mxu0
  %s1113 = scalar_lea.vmem [#allocation2], 192
  %1114 = vst [vmem:[%s1113] sm:$0xff] %v1038
  %1115 = vst [vmem:[%s1113 + $0x8] sm:$0xff] %v1040
  %1116 = vst [vmem:[%s1113 + $0x10] sm:$0xff] %v1109
  %1117 = vst [vmem:[%s1113 + $0x18] sm:$0xff] %v1111
  %s1118 = scalar_lea.vmem %s0, 56
  %v1119 = vld [vmem:[%s1118] sm:$0xff]
  %v1121 = vsel %vm56, %v1119, 0
  %1123 = vmatprep.subr.mxu0 0.0
  %1124 = vmatpush1.msra.mxu0 0.0
  %1125 = vmatprep.subr.mxu0 0.0
  %1126 = vmatpush1.msra.mxu0 0.0
  %1127 = vmatprep.subr.mxu0 0.0
  %1128 = vmatpush1.msra.mxu0 0.0
  %1129 = vmatprep.subr.mxu0 0.0
  %1130 = vmatpush1.msra.mxu0 0.0
  %1131 = vmatprep.subr.mxu0 0.0
  %1132 = vmatpush1.msra.mxu0 0.0
  %1133 = vmatprep.subr.mxu0 0.0
  %1134 = vmatpush1.msra.mxu0 0.0
  %1135 = vmatprep.subr.mxu0 0.0
  %1136 = vmatpush1.msra.mxu0 0.0
  %1137 = vmatprep.subr.mxu0 0.0
  %1138 = vmatpush1.msra.mxu0 0.0
  %1139 = vmatprep.subr.mxu0 0.0
  %1140 = vmatpush1.msra.mxu0 0.0
  %1141 = vmatprep.subr.mxu0 0.0
  %1142 = vmatpush1.msra.mxu0 0.0
  %1143 = vmatprep.subr.mxu0 0.0
  %1144 = vmatpush1.msra.mxu0 0.0
  %1145 = vmatprep.subr.mxu0 0.0
  %1146 = vmatpush1.msra.mxu0 0.0
  %1147 = vmatprep.subr.mxu0 0.0
  %1148 = vmatpush1.msra.mxu0 0.0
  %1149 = vmatprep.subr.mxu0 0.0
  %1150 = vmatpush1.msra.mxu0 0.0
  %1151 = vmatprep.subr.mxu0 0.0
  %1152 = vmatpush1.msra.mxu0 0.0
  %1153 = vmatprep.subr.mxu0 %v30
  %1154 = vmatpush1.msra.mxu0 %v29
  %1155 = vmatprep.subr.mxu0 0.0
  %1156 = vmatpush2.msra.mxu0 0.0
  %1157 = vmatprep.subr.mxu0 0.0
  %1158 = vmatpush2.msra.mxu0 0.0
  %1159 = vmatprep.subr.mxu0 0.0
  %1160 = vmatpush2.msra.mxu0 0.0
  %1161 = vmatprep.subr.mxu0 0.0
  %1162 = vmatpush2.msra.mxu0 0.0
  %1163 = vmatprep.subr.mxu0 0.0
  %1164 = vmatpush2.msra.mxu0 0.0
  %1165 = vmatprep.subr.mxu0 0.0
  %1166 = vmatpush2.msra.mxu0 0.0
  %1167 = vmatprep.subr.mxu0 0.0
  %1168 = vmatpush2.msra.mxu0 0.0
  %1169 = vmatprep.subr.mxu0 0.0
  %1170 = vmatpush2.msra.mxu0 0.0
  %1171 = vmatprep.subr.mxu0 0.0
  %1172 = vmatpush2.msra.mxu0 0.0
  %1173 = vmatprep.subr.mxu0 0.0
  %1174 = vmatpush2.msra.mxu0 0.0
  %1175 = vmatprep.subr.mxu0 0.0
  %1176 = vmatpush2.msra.mxu0 0.0
  %1177 = vmatprep.subr.mxu0 0.0
  %1178 = vmatpush2.msra.mxu0 0.0
  %1179 = vmatprep.subr.mxu0 0.0
  %1180 = vmatpush2.msra.mxu0 0.0
  %1181 = vmatprep.subr.mxu0 0.0
  %1182 = vmatpush2.msra.mxu0 0.0
  %1183 = vmatprep.subr.mxu0 0.0
  %1184 = vmatpush2.msra.mxu0 0.0
  %1185 = vmatprep.subr.mxu0 0.0
  %1186 = vmatpush2.msra.mxu0 0.0
  %1187 = vmatprep.mubr.f32.mxu0 0.0
  %1188 = vmatmul.mubr.f32.gmra.mxu0 %v1121
  %v1189 = vpop.f32.mrf.mxu0
  %v1190 = vadd.f32 %v39, %v1189
  %v1191 = vpop.f32.mrf.mxu0
  %v1192 = vadd.f32 %v43, %v1191
  %1193 = vdwg.mxu0
  %1194 = vmatprep.subr.mxu0 0.0
  %1195 = vmatpush1.msra.mxu0 0.0
  %1196 = vmatprep.subr.mxu0 0.0
  %1197 = vmatpush1.msra.mxu0 0.0
  %1198 = vmatprep.subr.mxu0 0.0
  %1199 = vmatpush1.msra.mxu0 0.0
  %1200 = vmatprep.subr.mxu0 0.0
  %1201 = vmatpush1.msra.mxu0 0.0
  %1202 = vmatprep.subr.mxu0 0.0
  %1203 = vmatpush1.msra.mxu0 0.0
  %1204 = vmatprep.subr.mxu0 0.0
  %1205 = vmatpush1.msra.mxu0 0.0
  %1206 = vmatprep.subr.mxu0 0.0
  %1207 = vmatpush1.msra.mxu0 0.0
  %1208 = vmatprep.subr.mxu0 0.0
  %1209 = vmatpush1.msra.mxu0 0.0
  %1210 = vmatprep.subr.mxu0 0.0
  %1211 = vmatpush1.msra.mxu0 0.0
  %1212 = vmatprep.subr.mxu0 0.0
  %1213 = vmatpush1.msra.mxu0 0.0
  %1214 = vmatprep.subr.mxu0 0.0
  %1215 = vmatpush1.msra.mxu0 0.0
  %1216 = vmatprep.subr.mxu0 0.0
  %1217 = vmatpush1.msra.mxu0 0.0
  %1218 = vmatprep.subr.mxu0 0.0
  %1219 = vmatpush1.msra.mxu0 0.0
  %1220 = vmatprep.subr.mxu0 0.0
  %1221 = vmatpush1.msra.mxu0 0.0
  %1222 = vmatprep.subr.mxu0 0.0
  %1223 = vmatpush1.msra.mxu0 0.0
  %1224 = vmatprep.subr.mxu0 %v32
  %1225 = vmatpush1.msra.mxu0 %v31
  %1226 = vmatprep.subr.mxu0 0.0
  %1227 = vmatpush2.msra.mxu0 0.0
  %1228 = vmatprep.subr.mxu0 0.0
  %1229 = vmatpush2.msra.mxu0 0.0
  %1230 = vmatprep.subr.mxu0 0.0
  %1231 = vmatpush2.msra.mxu0 0.0
  %1232 = vmatprep.subr.mxu0 0.0
  %1233 = vmatpush2.msra.mxu0 0.0
  %1234 = vmatprep.subr.mxu0 0.0
  %1235 = vmatpush2.msra.mxu0 0.0
  %1236 = vmatprep.subr.mxu0 0.0
  %1237 = vmatpush2.msra.mxu0 0.0
  %1238 = vmatprep.subr.mxu0 0.0
  %1239 = vmatpush2.msra.mxu0 0.0
  %1240 = vmatprep.subr.mxu0 0.0
  %1241 = vmatpush2.msra.mxu0 0.0
  %1242 = vmatprep.subr.mxu0 0.0
  %1243 = vmatpush2.msra.mxu0 0.0
  %1244 = vmatprep.subr.mxu0 0.0
  %1245 = vmatpush2.msra.mxu0 0.0
  %1246 = vmatprep.subr.mxu0 0.0
  %1247 = vmatpush2.msra.mxu0 0.0
  %1248 = vmatprep.subr.mxu0 0.0
  %1249 = vmatpush2.msra.mxu0 0.0
  %1250 = vmatprep.subr.mxu0 0.0
  %1251 = vmatpush2.msra.mxu0 0.0
  %1252 = vmatprep.subr.mxu0 0.0
  %1253 = vmatpush2.msra.mxu0 0.0
  %1254 = vmatprep.subr.mxu0 0.0
  %1255 = vmatpush2.msra.mxu0 0.0
  %1256 = vmatprep.subr.mxu0 0.0
  %1257 = vmatpush2.msra.mxu0 0.0
  %1258 = vmatprep.mubr.f32.mxu0 0.0
  %1259 = vmatmul.mubr.f32.gmra.mxu0 %v1121
  %v1260 = vpop.f32.mrf.mxu0
  %v1261 = vadd.f32 %v47, %v1260
  %v1262 = vpop.f32.mrf.mxu0
  %v1263 = vadd.f32 %v51, %v1262
  %1264 = vdwg.mxu0
  %s1265 = scalar_lea.vmem [#allocation2], 224
  %1266 = vst [vmem:[%s1265] sm:$0xff] %v1190
  %1267 = vst [vmem:[%s1265 + $0x8] sm:$0xff] %v1192
  %1268 = vst [vmem:[%s1265 + $0x10] sm:$0xff] %v1261
  %1269 = vst [vmem:[%s1265 + $0x18] sm:$0xff] %v1263
  %v1270 = vld [vmem:[#allocation2] sm:$0xff]
  %v1271 = vld [vmem:[#allocation2 + $0x8] sm:$0xff]
  %v1272 = vld [vmem:[#allocation2 + $0x10] sm:$0xff]
  %v1273 = vld [vmem:[#allocation2 + $0x18] sm:$0xff]
  %v1274 = vld [vmem:[%s3] sm:$0xff]
  %v1275 = vld [vmem:[%s3 + $0x8] sm:$0xff]
  %v1276 = vld [vmem:[%s3 + $0x10] sm:$0xff]
  %v1277 = vld [vmem:[%s3 + $0x18] sm:$0xff]
  %v1278 = vld [vmem:[%s3 + $0x20] sm:$0xff]
  %v1279 = vld [vmem:[%s3 + $0x28] sm:$0xff]
  %v1280 = vld [vmem:[%s3 + $0x30] sm:$0xff]
  %v1281 = vld [vmem:[%s3 + $0x38] sm:$0xff]
  %v1282 = vld [vmem:[%s3 + $0x40] sm:$0xff]
  %v1283 = vld [vmem:[%s3 + $0x48] sm:$0xff]
  %v1284 = vld [vmem:[%s3 + $0x50] sm:$0xff]
  %v1285 = vld [vmem:[%s3 + $0x58] sm:$0xff]
  %v1286 = vld [vmem:[%s3 + $0x60] sm:$0xff]
  %v1287 = vld [vmem:[%s3 + $0x68] sm:$0xff]
  %v1288 = vld [vmem:[%s3 + $0x70] sm:$0xff]
  %v1289 = vld [vmem:[%s3 + $0x78] sm:$0xff]
  %v1290 = vld [vmem:[%s3 + $0x80] sm:$0xff]
  %v1291 = vld [vmem:[%s3 + $0x88] sm:$0xff]
  %v1292 = vld [vmem:[%s3 + $0x90] sm:$0xff]
  %v1293 = vld [vmem:[%s3 + $0x98] sm:$0xff]
  %v1294 = vld [vmem:[%s3 + $0xa0] sm:$0xff]
  %v1295 = vld [vmem:[%s3 + $0xa8] sm:$0xff]
  %v1296 = vld [vmem:[%s3 + $0xb0] sm:$0xff]
  %v1297 = vld [vmem:[%s3 + $0xb8] sm:$0xff]
  %v1298 = vld [vmem:[%s3 + $0xc0] sm:$0xff]
  %v1299 = vld [vmem:[%s3 + $0xc8] sm:$0xff]
  %v1300 = vld [vmem:[%s3 + $0xd0] sm:$0xff]
  %v1301 = vld [vmem:[%s3 + $0xd8] sm:$0xff]
  %v1302 = vld [vmem:[%s3 + $0xe0] sm:$0xff]
  %v1303 = vld [vmem:[%s3 + $0xe8] sm:$0xff]
  %v1304 = vld [vmem:[%s3 + $0xf0] sm:$0xff]
  %v1305 = vld [vmem:[%s3 + $0xf8] sm:$0xff]
  %vm1306 = vcmask 523264
  %v1308 = vsel %vm1306, 0.0, 0
  %1310 = vmatprep.subr.mxu0 0.0
  %1311 = vmatpush1.msra.mxu0 0.0
  %1312 = vmatprep.subr.mxu0 0.0
  %1313 = vmatpush1.msra.mxu0 0.0
  %1314 = vmatprep.subr.mxu0 0.0
  %1315 = vmatpush1.msra.mxu0 0.0
  %1316 = vmatprep.subr.mxu0 0.0
  %1317 = vmatpush1.msra.mxu0 0.0
  %1318 = vmatprep.subr.mxu0 0.0
  %1319 = vmatpush1.msra.mxu0 0.0
  %1320 = vmatprep.subr.mxu0 0.0
  %1321 = vmatpush1.msra.mxu0 0.0
  %1322 = vmatprep.subr.mxu0 0.0
  %1323 = vmatpush1.msra.mxu0 0.0
  %1324 = vmatprep.subr.mxu0 0.0
  %1325 = vmatpush1.msra.mxu0 0.0
  %1326 = vmatprep.subr.mxu0 %v1303
  %1327 = vmatpush1.msra.mxu0 %v1302
  %1328 = vmatprep.subr.mxu0 %v1299
  %1329 = vmatpush1.msra.mxu0 %v1298
  %1330 = vmatprep.subr.mxu0 %v1295
  %1331 = vmatpush1.msra.mxu0 %v1294
  %1332 = vmatprep.subr.mxu0 %v1291
  %1333 = vmatpush1.msra.mxu0 %v1290
  %1334 = vmatprep.subr.mxu0 %v1287
  %1335 = vmatpush1.msra.mxu0 %v1286
  %1336 = vmatprep.subr.mxu0 %v1283
  %1337 = vmatpush1.msra.mxu0 %v1282
  %1338 = vmatprep.subr.mxu0 %v1279
  %1339 = vmatpush1.msra.mxu0 %v1278
  %1340 = vmatprep.subr.mxu0 %v1275
  %1341 = vmatpush1.msra.mxu0 %v1274
  %1342 = vmatprep.subr.mxu0 0.0
  %1343 = vmatpush2.msra.mxu0 0.0
  %1344 = vmatprep.subr.mxu0 0.0
  %1345 = vmatpush2.msra.mxu0 0.0
  %1346 = vmatprep.subr.mxu0 0.0
  %1347 = vmatpush2.msra.mxu0 0.0
  %1348 = vmatprep.subr.mxu0 0.0
  %1349 = vmatpush2.msra.mxu0 0.0
  %1350 = vmatprep.subr.mxu0 0.0
  %1351 = vmatpush2.msra.mxu0 0.0
  %1352 = vmatprep.subr.mxu0 0.0
  %1353 = vmatpush2.msra.mxu0 0.0
  %1354 = vmatprep.subr.mxu0 0.0
  %1355 = vmatpush2.msra.mxu0 0.0
  %1356 = vmatprep.subr.mxu0 0.0
  %1357 = vmatpush2.msra.mxu0 0.0
  %1358 = vmatprep.subr.mxu0 0.0
  %1359 = vmatpush2.msra.mxu0 0.0
  %1360 = vmatprep.subr.mxu0 0.0
  %1361 = vmatpush2.msra.mxu0 0.0
  %1362 = vmatprep.subr.mxu0 0.0
  %1363 = vmatpush2.msra.mxu0 0.0
  %1364 = vmatprep.subr.mxu0 0.0
  %1365 = vmatpush2.msra.mxu0 0.0
  %1366 = vmatprep.subr.mxu0 0.0
  %1367 = vmatpush2.msra.mxu0 0.0
  %1368 = vmatprep.subr.mxu0 0.0
  %1369 = vmatpush2.msra.mxu0 0.0
  %1370 = vmatprep.subr.mxu0 0.0
  %1371 = vmatpush2.msra.mxu0 0.0
  %1372 = vmatprep.subr.mxu0 0.0
  %1373 = vmatpush2.msra.mxu0 0.0
  %1374 = vmatprep.mubr.f32.mxu0 0.0
  %1375 = vmatmul.mubr.f32.gmra.mxu0 %v1308
  %v1376 = vpop.f32.mrf.mxu0
  %v1377 = vadd.f32 0.0, %v1376
  %v1378 = vpop.f32.mrf.mxu0
  %v1379 = vadd.f32 0.0, %v1378
  %1380 = vdwg.mxu0
  %1381 = vmatprep.subr.mxu0 0.0
  %1382 = vmatpush1.msra.mxu0 0.0
  %1383 = vmatprep.subr.mxu0 0.0
  %1384 = vmatpush1.msra.mxu0 0.0
  %1385 = vmatprep.subr.mxu0 0.0
  %1386 = vmatpush1.msra.mxu0 0.0
  %1387 = vmatprep.subr.mxu0 0.0
  %1388 = vmatpush1.msra.mxu0 0.0
  %1389 = vmatprep.subr.mxu0 0.0
  %1390 = vmatpush1.msra.mxu0 0.0
  %1391 = vmatprep.subr.mxu0 0.0
  %1392 = vmatpush1.msra.mxu0 0.0
  %1393 = vmatprep.subr.mxu0 0.0
  %1394 = vmatpush1.msra.mxu0 0.0
  %1395 = vmatprep.subr.mxu0 0.0
  %1396 = vmatpush1.msra.mxu0 0.0
  %1397 = vmatprep.subr.mxu0 %v1305
  %1398 = vmatpush1.msra.mxu0 %v1304
  %1399 = vmatprep.subr.mxu0 %v1301
  %1400 = vmatpush1.msra.mxu0 %v1300
  %1401 = vmatprep.subr.mxu0 %v1297
  %1402 = vmatpush1.msra.mxu0 %v1296
  %1403 = vmatprep.subr.mxu0 %v1293
  %1404 = vmatpush1.msra.mxu0 %v1292
  %1405 = vmatprep.subr.mxu0 %v1289
  %1406 = vmatpush1.msra.mxu0 %v1288
  %1407 = vmatprep.subr.mxu0 %v1285
  %1408 = vmatpush1.msra.mxu0 %v1284
  %1409 = vmatprep.subr.mxu0 %v1281
  %1410 = vmatpush1.msra.mxu0 %v1280
  %1411 = vmatprep.subr.mxu0 %v1277
  %1412 = vmatpush1.msra.mxu0 %v1276
  %1413 = vmatprep.subr.mxu0 0.0
  %1414 = vmatpush2.msra.mxu0 0.0
  %1415 = vmatprep.subr.mxu0 0.0
  %1416 = vmatpush2.msra.mxu0 0.0
  %1417 = vmatprep.subr.mxu0 0.0
  %1418 = vmatpush2.msra.mxu0 0.0
  %1419 = vmatprep.subr.mxu0 0.0
  %1420 = vmatpush2.msra.mxu0 0.0
  %1421 = vmatprep.subr.mxu0 0.0
  %1422 = vmatpush2.msra.mxu0 0.0
  %1423 = vmatprep.subr.mxu0 0.0
  %1424 = vmatpush2.msra.mxu0 0.0
  %1425 = vmatprep.subr.mxu0 0.0
  %1426 = vmatpush2.msra.mxu0 0.0
  %1427 = vmatprep.subr.mxu0 0.0
  %1428 = vmatpush2.msra.mxu0 0.0
  %1429 = vmatprep.subr.mxu0 0.0
  %1430 = vmatpush2.msra.mxu0 0.0
  %1431 = vmatprep.subr.mxu0 0.0
  %1432 = vmatpush2.msra.mxu0 0.0
  %1433 = vmatprep.subr.mxu0 0.0
  %1434 = vmatpush2.msra.mxu0 0.0
  %1435 = vmatprep.subr.mxu0 0.0
  %1436 = vmatpush2.msra.mxu0 0.0
  %1437 = vmatprep.subr.mxu0 0.0
  %1438 = vmatpush2.msra.mxu0 0.0
  %1439 = vmatprep.subr.mxu0 0.0
  %1440 = vmatpush2.msra.mxu0 0.0
  %1441 = vmatprep.subr.mxu0 0.0
  %1442 = vmatpush2.msra.mxu0 0.0
  %1443 = vmatprep.subr.mxu0 0.0
  %1444 = vmatpush2.msra.mxu0 0.0
  %1445 = vmatprep.mubr.f32.mxu0 0.0
  %1446 = vmatmul.mubr.f32.gmra.mxu0 %v1308
  %v1447 = vpop.f32.mrf.mxu0
  %v1448 = vadd.f32 0.0, %v1447
  %v1449 = vpop.f32.mrf.mxu0
  %v1450 = vadd.f32 0.0, %v1449
  %1451 = vdwg.mxu0
  %v1452 = vadd.f32 %v1270, %v1377
  %v1453 = vadd.f32 %v1271, %v1379
  %v1454 = vadd.f32 %v1272, %v1448
  %v1455 = vadd.f32 %v1273, %v1450
  %v1456 = vxor.u32 %v1452, 2147483648
  %v1457 = vmul.f32 %v1456, 1.442695
  %v1458 = vpow.pop %v1457
  %v1459 = vadd.f32 %v1458, 1.0
  %v1460 = vrcp.pop %v1459
  %v1461 = vmul.f32 1.0, %v1460
  %v1462 = vxor.u32 %v1453, 2147483648
  %v1463 = vmul.f32 %v1462, 1.442695
  %v1464 = vpow.pop %v1463
  %v1465 = vadd.f32 %v1464, 1.0
  %v1466 = vrcp.pop %v1465
  %v1467 = vmul.f32 1.0, %v1466
  %v1468 = vtanh.pop %v1454
  %v1469 = vxor.u32 %v1455, 2147483648
  %v1470 = vmul.f32 %v1469, 1.442695
  %v1471 = vpow.pop %v1470
  %v1472 = vadd.f32 %v1471, 1.0
  %v1473 = vrcp.pop %v1472
  %v1474 = vmul.f32 1.0, %v1473
  %v1475 = vmul.f32 %v1467, 0.0
  %v1476 = vmul.f32 %v1461, %v1468
  %v1477 = vadd.f32 %v1475, %v1476
  %v1478 = vtanh.pop %v1477
  %v1479 = vmul.f32 %v1474, %v1478
  %1480 = vst.msk [vmem:[#allocation3] sm:$0xff] %vm1306, %v1479
  %v1481 = vld [vmem:[%s353] sm:$0xff]
  %v1482 = vld [vmem:[%s353 + $0x8] sm:$0xff]
  %v1483 = vld [vmem:[%s353 + $0x10] sm:$0xff]
  %v1484 = vld [vmem:[%s353 + $0x18] sm:$0xff]
  %v1485 = vld [vmem:[%s3] sm:$0xff]
  %v1486 = vld [vmem:[%s3 + $0x8] sm:$0xff]
  %v1487 = vld [vmem:[%s3 + $0x10] sm:$0xff]
  %v1488 = vld [vmem:[%s3 + $0x18] sm:$0xff]
  %v1489 = vld [vmem:[%s3 + $0x20] sm:$0xff]
  %v1490 = vld [vmem:[%s3 + $0x28] sm:$0xff]
  %v1491 = vld [vmem:[%s3 + $0x30] sm:$0xff]
  %v1492 = vld [vmem:[%s3 + $0x38] sm:$0xff]
  %v1493 = vld [vmem:[%s3 + $0x40] sm:$0xff]
  %v1494 = vld [vmem:[%s3 + $0x48] sm:$0xff]
  %v1495 = vld [vmem:[%s3 + $0x50] sm:$0xff]
  %v1496 = vld [vmem:[%s3 + $0x58] sm:$0xff]
  %v1497 = vld [vmem:[%s3 + $0x60] sm:$0xff]
  %v1498 = vld [vmem:[%s3 + $0x68] sm:$0xff]
  %v1499 = vld [vmem:[%s3 + $0x70] sm:$0xff]
  %v1500 = vld [vmem:[%s3 + $0x78] sm:$0xff]
  %v1501 = vld [vmem:[%s3 + $0x80] sm:$0xff]
  %v1502 = vld [vmem:[%s3 + $0x88] sm:$0xff]
  %v1503 = vld [vmem:[%s3 + $0x90] sm:$0xff]
  %v1504 = vld [vmem:[%s3 + $0x98] sm:$0xff]
  %v1505 = vld [vmem:[%s3 + $0xa0] sm:$0xff]
  %v1506 = vld [vmem:[%s3 + $0xa8] sm:$0xff]
  %v1507 = vld [vmem:[%s3 + $0xb0] sm:$0xff]
  %v1508 = vld [vmem:[%s3 + $0xb8] sm:$0xff]
  %v1509 = vld [vmem:[%s3 + $0xc0] sm:$0xff]
  %v1510 = vld [vmem:[%s3 + $0xc8] sm:$0xff]
  %v1511 = vld [vmem:[%s3 + $0xd0] sm:$0xff]
  %v1512 = vld [vmem:[%s3 + $0xd8] sm:$0xff]
  %v1513 = vld [vmem:[%s3 + $0xe0] sm:$0xff]
  %v1514 = vld [vmem:[%s3 + $0xe8] sm:$0xff]
  %v1515 = vld [vmem:[%s3 + $0xf0] sm:$0xff]
  %v1516 = vld [vmem:[%s3 + $0xf8] sm:$0xff]
  %v1518 = vsel %vm1306, %v1479, 0
  %1520 = vmatprep.subr.mxu0 0.0
  %1521 = vmatpush1.msra.mxu0 0.0
  %1522 = vmatprep.subr.mxu0 0.0
  %1523 = vmatpush1.msra.mxu0 0.0
  %1524 = vmatprep.subr.mxu0 0.0
  %1525 = vmatpush1.msra.mxu0 0.0
  %1526 = vmatprep.subr.mxu0 0.0
  %1527 = vmatpush1.msra.mxu0 0.0
  %1528 = vmatprep.subr.mxu0 0.0
  %1529 = vmatpush1.msra.mxu0 0.0
  %1530 = vmatprep.subr.mxu0 0.0
  %1531 = vmatpush1.msra.mxu0 0.0
  %1532 = vmatprep.subr.mxu0 0.0
  %1533 = vmatpush1.msra.mxu0 0.0
  %1534 = vmatprep.subr.mxu0 0.0
  %1535 = vmatpush1.msra.mxu0 0.0
  %1536 = vmatprep.subr.mxu0 %v1514
  %1537 = vmatpush1.msra.mxu0 %v1513
  %1538 = vmatprep.subr.mxu0 %v1510
  %1539 = vmatpush1.msra.mxu0 %v1509
  %1540 = vmatprep.subr.mxu0 %v1506
  %1541 = vmatpush1.msra.mxu0 %v1505
  %1542 = vmatprep.subr.mxu0 %v1502
  %1543 = vmatpush1.msra.mxu0 %v1501
  %1544 = vmatprep.subr.mxu0 %v1498
  %1545 = vmatpush1.msra.mxu0 %v1497
  %1546 = vmatprep.subr.mxu0 %v1494
  %1547 = vmatpush1.msra.mxu0 %v1493
  %1548 = vmatprep.subr.mxu0 %v1490
  %1549 = vmatpush1.msra.mxu0 %v1489
  %1550 = vmatprep.subr.mxu0 %v1486
  %1551 = vmatpush1.msra.mxu0 %v1485
  %1552 = vmatprep.subr.mxu0 0.0
  %1553 = vmatpush2.msra.mxu0 0.0
  %1554 = vmatprep.subr.mxu0 0.0
  %1555 = vmatpush2.msra.mxu0 0.0
  %1556 = vmatprep.subr.mxu0 0.0
  %1557 = vmatpush2.msra.mxu0 0.0
  %1558 = vmatprep.subr.mxu0 0.0
  %1559 = vmatpush2.msra.mxu0 0.0
  %1560 = vmatprep.subr.mxu0 0.0
  %1561 = vmatpush2.msra.mxu0 0.0
  %1562 = vmatprep.subr.mxu0 0.0
  %1563 = vmatpush2.msra.mxu0 0.0
  %1564 = vmatprep.subr.mxu0 0.0
  %1565 = vmatpush2.msra.mxu0 0.0
  %1566 = vmatprep.subr.mxu0 0.0
  %1567 = vmatpush2.msra.mxu0 0.0
  %1568 = vmatprep.subr.mxu0 0.0
  %1569 = vmatpush2.msra.mxu0 0.0
  %1570 = vmatprep.subr.mxu0 0.0
  %1571 = vmatpush2.msra.mxu0 0.0
  %1572 = vmatprep.subr.mxu0 0.0
  %1573 = vmatpush2.msra.mxu0 0.0
  %1574 = vmatprep.subr.mxu0 0.0
  %1575 = vmatpush2.msra.mxu0 0.0
  %1576 = vmatprep.subr.mxu0 0.0
  %1577 = vmatpush2.msra.mxu0 0.0
  %1578 = vmatprep.subr.mxu0 0.0
  %1579 = vmatpush2.msra.mxu0 0.0
  %1580 = vmatprep.subr.mxu0 0.0
  %1581 = vmatpush2.msra.mxu0 0.0
  %1582 = vmatprep.subr.mxu0 0.0
  %1583 = vmatpush2.msra.mxu0 0.0
  %1584 = vmatprep.mubr.f32.mxu0 0.0
  %1585 = vmatmul.mubr.f32.gmra.mxu0 %v1518
  %v1586 = vpop.f32.mrf.mxu0
  %v1587 = vadd.f32 0.0, %v1586
  %v1588 = vpop.f32.mrf.mxu0
  %v1589 = vadd.f32 0.0, %v1588
  %1590 = vdwg.mxu0
  %1591 = vmatprep.subr.mxu0 0.0
  %1592 = vmatpush1.msra.mxu0 0.0
  %1593 = vmatprep.subr.mxu0 0.0
  %1594 = vmatpush1.msra.mxu0 0.0
  %1595 = vmatprep.subr.mxu0 0.0
  %1596 = vmatpush1.msra.mxu0 0.0
  %1597 = vmatprep.subr.mxu0 0.0
  %1598 = vmatpush1.msra.mxu0 0.0
  %1599 = vmatprep.subr.mxu0 0.0
  %1600 = vmatpush1.msra.mxu0 0.0
  %1601 = vmatprep.subr.mxu0 0.0
  %1602 = vmatpush1.msra.mxu0 0.0
  %1603 = vmatprep.subr.mxu0 0.0
  %1604 = vmatpush1.msra.mxu0 0.0
  %1605 = vmatprep.subr.mxu0 0.0
  %1606 = vmatpush1.msra.mxu0 0.0
  %1607 = vmatprep.subr.mxu0 %v1516
  %1608 = vmatpush1.msra.mxu0 %v1515
  %1609 = vmatprep.subr.mxu0 %v1512
  %1610 = vmatpush1.msra.mxu0 %v1511
  %1611 = vmatprep.subr.mxu0 %v1508
  %1612 = vmatpush1.msra.mxu0 %v1507
  %1613 = vmatprep.subr.mxu0 %v1504
  %1614 = vmatpush1.msra.mxu0 %v1503
  %1615 = vmatprep.subr.mxu0 %v1500
  %1616 = vmatpush1.msra.mxu0 %v1499
  %1617 = vmatprep.subr.mxu0 %v1496
  %1618 = vmatpush1.msra.mxu0 %v1495
  %1619 = vmatprep.subr.mxu0 %v1492
  %1620 = vmatpush1.msra.mxu0 %v1491
  %1621 = vmatprep.subr.mxu0 %v1488
  %1622 = vmatpush1.msra.mxu0 %v1487
  %1623 = vmatprep.subr.mxu0 0.0
  %1624 = vmatpush2.msra.mxu0 0.0
  %1625 = vmatprep.subr.mxu0 0.0
  %1626 = vmatpush2.msra.mxu0 0.0
  %1627 = vmatprep.subr.mxu0 0.0
  %1628 = vmatpush2.msra.mxu0 0.0
  %1629 = vmatprep.subr.mxu0 0.0
  %1630 = vmatpush2.msra.mxu0 0.0
  %1631 = vmatprep.subr.mxu0 0.0
  %1632 = vmatpush2.msra.mxu0 0.0
  %1633 = vmatprep.subr.mxu0 0.0
  %1634 = vmatpush2.msra.mxu0 0.0
  %1635 = vmatprep.subr.mxu0 0.0
  %1636 = vmatpush2.msra.mxu0 0.0
  %1637 = vmatprep.subr.mxu0 0.0
  %1638 = vmatpush2.msra.mxu0 0.0
  %1639 = vmatprep.subr.mxu0 0.0
  %1640 = vmatpush2.msra.mxu0 0.0
  %1641 = vmatprep.subr.mxu0 0.0
  %1642 = vmatpush2.msra.mxu0 0.0
  %1643 = vmatprep.subr.mxu0 0.0
  %1644 = vmatpush2.msra.mxu0 0.0
  %1645 = vmatprep.subr.mxu0 0.0
  %1646 = vmatpush2.msra.mxu0 0.0
  %1647 = vmatprep.subr.mxu0 0.0
  %1648 = vmatpush2.msra.mxu0 0.0
  %1649 = vmatprep.subr.mxu0 0.0
  %1650 = vmatpush2.msra.mxu0 0.0
  %1651 = vmatprep.subr.mxu0 0.0
  %1652 = vmatpush2.msra.mxu0 0.0
  %1653 = vmatprep.subr.mxu0 0.0
  %1654 = vmatpush2.msra.mxu0 0.0
  %1655 = vmatprep.mubr.f32.mxu0 0.0
  %1656 = vmatmul.mubr.f32.gmra.mxu0 %v1518
  %v1657 = vpop.f32.mrf.mxu0
  %v1658 = vadd.f32 0.0, %v1657
  %v1659 = vpop.f32.mrf.mxu0
  %v1660 = vadd.f32 0.0, %v1659
  %1661 = vdwg.mxu0
  %v1662 = vadd.f32 %v1481, %v1587
  %v1663 = vadd.f32 %v1482, %v1589
  %v1664 = vadd.f32 %v1483, %v1658
  %v1665 = vadd.f32 %v1484, %v1660
  %v1666 = vxor.u32 %v1662, 2147483648
  %v1667 = vmul.f32 %v1666, 1.442695
  %v1668 = vpow.pop %v1667
  %v1669 = vadd.f32 %v1668, 1.0
  %v1670 = vrcp.pop %v1669
  %v1671 = vmul.f32 1.0, %v1670
  %v1672 = vxor.u32 %v1663, 2147483648
  %v1673 = vmul.f32 %v1672, 1.442695
  %v1674 = vpow.pop %v1673
  %v1675 = vadd.f32 %v1674, 1.0
  %v1676 = vrcp.pop %v1675
  %v1677 = vmul.f32 1.0, %v1676
  %v1678 = vtanh.pop %v1664
  %v1679 = vxor.u32 %v1665, 2147483648
  %v1680 = vmul.f32 %v1679, 1.442695
  %v1681 = vpow.pop %v1680
  %v1682 = vadd.f32 %v1681, 1.0
  %v1683 = vrcp.pop %v1682
  %v1684 = vmul.f32 1.0, %v1683
  %v1685 = vmul.f32 %v1677, %v1477
  %v1686 = vmul.f32 %v1671, %v1678
  %v1687 = vadd.f32 %v1685, %v1686
  %v1688 = vtanh.pop %v1687
  %v1689 = vmul.f32 %v1684, %v1688
  %s1690 = scalar_lea.vmem [#allocation3], 8
  %1691 = vst.msk [vmem:[%s1690] sm:$0xff] %vm1306, %v1689
  %v1692 = vld [vmem:[%s505] sm:$0xff]
  %v1693 = vld [vmem:[%s505 + $0x8] sm:$0xff]
  %v1694 = vld [vmem:[%s505 + $0x10] sm:$0xff]
  %v1695 = vld [vmem:[%s505 + $0x18] sm:$0xff]
  %v1696 = vld [vmem:[%s3] sm:$0xff]
  %v1697 = vld [vmem:[%s3 + $0x8] sm:$0xff]
  %v1698 = vld [vmem:[%s3 + $0x10] sm:$0xff]
  %v1699 = vld [vmem:[%s3 + $0x18] sm:$0xff]
  %v1700 = vld [vmem:[%s3 + $0x20] sm:$0xff]
  %v1701 = vld [vmem:[%s3 + $0x28] sm:$0xff]
  %v1702 = vld [vmem:[%s3 + $0x30] sm:$0xff]
  %v1703 = vld [vmem:[%s3 + $0x38] sm:$0xff]
  %v1704 = vld [vmem:[%s3 + $0x40] sm:$0xff]
  %v1705 = vld [vmem:[%s3 + $0x48] sm:$0xff]
  %v1706 = vld [vmem:[%s3 + $0x50] sm:$0xff]
  %v1707 = vld [vmem:[%s3 + $0x58] sm:$0xff]
  %v1708 = vld [vmem:[%s3 + $0x60] sm:$0xff]
  %v1709 = vld [vmem:[%s3 + $0x68] sm:$0xff]
  %v1710 = vld [vmem:[%s3 + $0x70] sm:$0xff]
  %v1711 = vld [vmem:[%s3 + $0x78] sm:$0xff]
  %v1712 = vld [vmem:[%s3 + $0x80] sm:$0xff]
  %v1713 = vld [vmem:[%s3 + $0x88] sm:$0xff]
  %v1714 = vld [vmem:[%s3 + $0x90] sm:$0xff]
  %v1715 = vld [vmem:[%s3 + $0x98] sm:$0xff]
  %v1716 = vld [vmem:[%s3 + $0xa0] sm:$0xff]
  %v1717 = vld [vmem:[%s3 + $0xa8] sm:$0xff]
  %v1718 = vld [vmem:[%s3 + $0xb0] sm:$0xff]
  %v1719 = vld [vmem:[%s3 + $0xb8] sm:$0xff]
  %v1720 = vld [vmem:[%s3 + $0xc0] sm:$0xff]
  %v1721 = vld [vmem:[%s3 + $0xc8] sm:$0xff]
  %v1722 = vld [vmem:[%s3 + $0xd0] sm:$0xff]
  %v1723 = vld [vmem:[%s3 + $0xd8] sm:$0xff]
  %v1724 = vld [vmem:[%s3 + $0xe0] sm:$0xff]
  %v1725 = vld [vmem:[%s3 + $0xe8] sm:$0xff]
  %v1726 = vld [vmem:[%s3 + $0xf0] sm:$0xff]
  %v1727 = vld [vmem:[%s3 + $0xf8] sm:$0xff]
  %v1729 = vsel %vm1306, %v1689, 0
  %1731 = vmatprep.subr.mxu0 0.0
  %1732 = vmatpush1.msra.mxu0 0.0
  %1733 = vmatprep.subr.mxu0 0.0
  %1734 = vmatpush1.msra.mxu0 0.0
  %1735 = vmatprep.subr.mxu0 0.0
  %1736 = vmatpush1.msra.mxu0 0.0
  %1737 = vmatprep.subr.mxu0 0.0
  %1738 = vmatpush1.msra.mxu0 0.0
  %1739 = vmatprep.subr.mxu0 0.0
  %1740 = vmatpush1.msra.mxu0 0.0
  %1741 = vmatprep.subr.mxu0 0.0
  %1742 = vmatpush1.msra.mxu0 0.0
  %1743 = vmatprep.subr.mxu0 0.0
  %1744 = vmatpush1.msra.mxu0 0.0
  %1745 = vmatprep.subr.mxu0 0.0
  %1746 = vmatpush1.msra.mxu0 0.0
  %1747 = vmatprep.subr.mxu0 %v1725
  %1748 = vmatpush1.msra.mxu0 %v1724
  %1749 = vmatprep.subr.mxu0 %v1721
  %1750 = vmatpush1.msra.mxu0 %v1720
  %1751 = vmatprep.subr.mxu0 %v1717
  %1752 = vmatpush1.msra.mxu0 %v1716
  %1753 = vmatprep.subr.mxu0 %v1713
  %1754 = vmatpush1.msra.mxu0 %v1712
  %1755 = vmatprep.subr.mxu0 %v1709
  %1756 = vmatpush1.msra.mxu0 %v1708
  %1757 = vmatprep.subr.mxu0 %v1705
  %1758 = vmatpush1.msra.mxu0 %v1704
  %1759 = vmatprep.subr.mxu0 %v1701
  %1760 = vmatpush1.msra.mxu0 %v1700
  %1761 = vmatprep.subr.mxu0 %v1697
  %1762 = vmatpush1.msra.mxu0 %v1696
  %1763 = vmatprep.subr.mxu0 0.0
  %1764 = vmatpush2.msra.mxu0 0.0
  %1765 = vmatprep.subr.mxu0 0.0
  %1766 = vmatpush2.msra.mxu0 0.0
  %1767 = vmatprep.subr.mxu0 0.0
  %1768 = vmatpush2.msra.mxu0 0.0
  %1769 = vmatprep.subr.mxu0 0.0
  %1770 = vmatpush2.msra.mxu0 0.0
  %1771 = vmatprep.subr.mxu0 0.0
  %1772 = vmatpush2.msra.mxu0 0.0
  %1773 = vmatprep.subr.mxu0 0.0
  %1774 = vmatpush2.msra.mxu0 0.0
  %1775 = vmatprep.subr.mxu0 0.0
  %1776 = vmatpush2.msra.mxu0 0.0
  %1777 = vmatprep.subr.mxu0 0.0
  %1778 = vmatpush2.msra.mxu0 0.0
  %1779 = vmatprep.subr.mxu0 0.0
  %1780 = vmatpush2.msra.mxu0 0.0
  %1781 = vmatprep.subr.mxu0 0.0
  %1782 = vmatpush2.msra.mxu0 0.0
  %1783 = vmatprep.subr.mxu0 0.0
  %1784 = vmatpush2.msra.mxu0 0.0
  %1785 = vmatprep.subr.mxu0 0.0
  %1786 = vmatpush2.msra.mxu0 0.0
  %1787 = vmatprep.subr.mxu0 0.0
  %1788 = vmatpush2.msra.mxu0 0.0
  %1789 = vmatprep.subr.mxu0 0.0
  %1790 = vmatpush2.msra.mxu0 0.0
  %1791 = vmatprep.subr.mxu0 0.0
  %1792 = vmatpush2.msra.mxu0 0.0
  %1793 = vmatprep.subr.mxu0 0.0
  %1794 = vmatpush2.msra.mxu0 0.0
  %1795 = vmatprep.mubr.f32.mxu0 0.0
  %1796 = vmatmul.mubr.f32.gmra.mxu0 %v1729
  %v1797 = vpop.f32.mrf.mxu0
  %v1798 = vadd.f32 0.0, %v1797
  %v1799 = vpop.f32.mrf.mxu0
  %v1800 = vadd.f32 0.0, %v1799
  %1801 = vdwg.mxu0
  %1802 = vmatprep.subr.mxu0 0.0
  %1803 = vmatpush1.msra.mxu0 0.0
  %1804 = vmatprep.subr.mxu0 0.0
  %1805 = vmatpush1.msra.mxu0 0.0
  %1806 = vmatprep.subr.mxu0 0.0
  %1807 = vmatpush1.msra.mxu0 0.0
  %1808 = vmatprep.subr.mxu0 0.0
  %1809 = vmatpush1.msra.mxu0 0.0
  %1810 = vmatprep.subr.mxu0 0.0
  %1811 = vmatpush1.msra.mxu0 0.0
  %1812 = vmatprep.subr.mxu0 0.0
  %1813 = vmatpush1.msra.mxu0 0.0
  %1814 = vmatprep.subr.mxu0 0.0
  %1815 = vmatpush1.msra.mxu0 0.0
  %1816 = vmatprep.subr.mxu0 0.0
  %1817 = vmatpush1.msra.mxu0 0.0
  %1818 = vmatprep.subr.mxu0 %v1727
  %1819 = vmatpush1.msra.mxu0 %v1726
  %1820 = vmatprep.subr.mxu0 %v1723
  %1821 = vmatpush1.msra.mxu0 %v1722
  %1822 = vmatprep.subr.mxu0 %v1719
  %1823 = vmatpush1.msra.mxu0 %v1718
  %1824 = vmatprep.subr.mxu0 %v1715
  %1825 = vmatpush1.msra.mxu0 %v1714
  %1826 = vmatprep.subr.mxu0 %v1711
  %1827 = vmatpush1.msra.mxu0 %v1710
  %1828 = vmatprep.subr.mxu0 %v1707
  %1829 = vmatpush1.msra.mxu0 %v1706
  %1830 = vmatprep.subr.mxu0 %v1703
  %1831 = vmatpush1.msra.mxu0 %v1702
  %1832 = vmatprep.subr.mxu0 %v1699
  %1833 = vmatpush1.msra.mxu0 %v1698
  %1834 = vmatprep.subr.mxu0 0.0
  %1835 = vmatpush2.msra.mxu0 0.0
  %1836 = vmatprep.subr.mxu0 0.0
  %1837 = vmatpush2.msra.mxu0 0.0
  %1838 = vmatprep.subr.mxu0 0.0
  %1839 = vmatpush2.msra.mxu0 0.0
  %1840 = vmatprep.subr.mxu0 0.0
  %1841 = vmatpush2.msra.mxu0 0.0
  %1842 = vmatprep.subr.mxu0 0.0
  %1843 = vmatpush2.msra.mxu0 0.0
  %1844 = vmatprep.subr.mxu0 0.0
  %1845 = vmatpush2.msra.mxu0 0.0
  %1846 = vmatprep.subr.mxu0 0.0
  %1847 = vmatpush2.msra.mxu0 0.0
  %1848 = vmatprep.subr.mxu0 0.0
  %1849 = vmatpush2.msra.mxu0 0.0
  %1850 = vmatprep.subr.mxu0 0.0
  %1851 = vmatpush2.msra.mxu0 0.0
  %1852 = vmatprep.subr.mxu0 0.0
  %1853 = vmatpush2.msra.mxu0 0.0
  %1854 = vmatprep.subr.mxu0 0.0
  %1855 = vmatpush2.msra.mxu0 0.0
  %1856 = vmatprep.subr.mxu0 0.0
  %1857 = vmatpush2.msra.mxu0 0.0
  %1858 = vmatprep.subr.mxu0 0.0
  %1859 = vmatpush2.msra.mxu0 0.0
  %1860 = vmatprep.subr.mxu0 0.0
  %1861 = vmatpush2.msra.mxu0 0.0
  %1862 = vmatprep.subr.mxu0 0.0
  %1863 = vmatpush2.msra.mxu0 0.0
  %1864 = vmatprep.subr.mxu0 0.0
  %1865 = vmatpush2.msra.mxu0 0.0
  %1866 = vmatprep.mubr.f32.mxu0 0.0
  %1867 = vmatmul.mubr.f32.gmra.mxu0 %v1729
  %v1868 = vpop.f32.mrf.mxu0
  %v1869 = vadd.f32 0.0, %v1868
  %v1870 = vpop.f32.mrf.mxu0
  %v1871 = vadd.f32 0.0, %v1870
  %1872 = vdwg.mxu0
  %v1873 = vadd.f32 %v1692, %v1798
  %v1874 = vadd.f32 %v1693, %v1800
  %v1875 = vadd.f32 %v1694, %v1869
  %v1876 = vadd.f32 %v1695, %v1871
  %v1877 = vxor.u32 %v1873, 2147483648
  %v1878 = vmul.f32 %v1877, 1.442695
  %v1879 = vpow.pop %v1878
  %v1880 = vadd.f32 %v1879, 1.0
  %v1881 = vrcp.pop %v1880
  %v1882 = vmul.f32 1.0, %v1881
  %v1883 = vxor.u32 %v1874, 2147483648
  %v1884 = vmul.f32 %v1883, 1.442695
  %v1885 = vpow.pop %v1884
  %v1886 = vadd.f32 %v1885, 1.0
  %v1887 = vrcp.pop %v1886
  %v1888 = vmul.f32 1.0, %v1887
  %v1889 = vtanh.pop %v1875
  %v1890 = vxor.u32 %v1876, 2147483648
  %v1891 = vmul.f32 %v1890, 1.442695
  %v1892 = vpow.pop %v1891
  %v1893 = vadd.f32 %v1892, 1.0
  %v1894 = vrcp.pop %v1893
  %v1895 = vmul.f32 1.0, %v1894
  %v1896 = vmul.f32 %v1888, %v1687
  %v1897 = vmul.f32 %v1882, %v1889
  %v1898 = vadd.f32 %v1896, %v1897
  %v1899 = vtanh.pop %v1898
  %v1900 = vmul.f32 %v1895, %v1899
  %s1901 = scalar_lea.vmem [#allocation3], 16
  %1902 = vst.msk [vmem:[%s1901] sm:$0xff] %vm1306, %v1900
  %v1903 = vld [vmem:[%s657] sm:$0xff]
  %v1904 = vld [vmem:[%s657 + $0x8] sm:$0xff]
  %v1905 = vld [vmem:[%s657 + $0x10] sm:$0xff]
  %v1906 = vld [vmem:[%s657 + $0x18] sm:$0xff]
  %v1907 = vld [vmem:[%s3] sm:$0xff]
  %v1908 = vld [vmem:[%s3 + $0x8] sm:$0xff]
  %v1909 = vld [vmem:[%s3 + $0x10] sm:$0xff]
  %v1910 = vld [vmem:[%s3 + $0x18] sm:$0xff]
  %v1911 = vld [vmem:[%s3 + $0x20] sm:$0xff]
  %v1912 = vld [vmem:[%s3 + $0x28] sm:$0xff]
  %v1913 = vld [vmem:[%s3 + $0x30] sm:$0xff]
  %v1914 = vld [vmem:[%s3 + $0x38] sm:$0xff]
  %v1915 = vld [vmem:[%s3 + $0x40] sm:$0xff]
  %v1916 = vld [vmem:[%s3 + $0x48] sm:$0xff]
  %v1917 = vld [vmem:[%s3 + $0x50] sm:$0xff]
  %v1918 = vld [vmem:[%s3 + $0x58] sm:$0xff]
  %v1919 = vld [vmem:[%s3 + $0x60] sm:$0xff]
  %v1920 = vld [vmem:[%s3 + $0x68] sm:$0xff]
  %v1921 = vld [vmem:[%s3 + $0x70] sm:$0xff]
  %v1922 = vld [vmem:[%s3 + $0x78] sm:$0xff]
  %v1923 = vld [vmem:[%s3 + $0x80] sm:$0xff]
  %v1924 = vld [vmem:[%s3 + $0x88] sm:$0xff]
  %v1925 = vld [vmem:[%s3 + $0x90] sm:$0xff]
  %v1926 = vld [vmem:[%s3 + $0x98] sm:$0xff]
  %v1927 = vld [vmem:[%s3 + $0xa0] sm:$0xff]
  %v1928 = vld [vmem:[%s3 + $0xa8] sm:$0xff]
  %v1929 = vld [vmem:[%s3 + $0xb0] sm:$0xff]
  %v1930 = vld [vmem:[%s3 + $0xb8] sm:$0xff]
  %v1931 = vld [vmem:[%s3 + $0xc0] sm:$0xff]
  %v1932 = vld [vmem:[%s3 + $0xc8] sm:$0xff]
  %v1933 = vld [vmem:[%s3 + $0xd0] sm:$0xff]
  %v1934 = vld [vmem:[%s3 + $0xd8] sm:$0xff]
  %v1935 = vld [vmem:[%s3 + $0xe0] sm:$0xff]
  %v1936 = vld [vmem:[%s3 + $0xe8] sm:$0xff]
  %v1937 = vld [vmem:[%s3 + $0xf0] sm:$0xff]
  %v1938 = vld [vmem:[%s3 + $0xf8] sm:$0xff]
  %v1940 = vsel %vm1306, %v1900, 0
  %1942 = vmatprep.subr.mxu0 0.0
  %1943 = vmatpush1.msra.mxu0 0.0
  %1944 = vmatprep.subr.mxu0 0.0
  %1945 = vmatpush1.msra.mxu0 0.0
  %1946 = vmatprep.subr.mxu0 0.0
  %1947 = vmatpush1.msra.mxu0 0.0
  %1948 = vmatprep.subr.mxu0 0.0
  %1949 = vmatpush1.msra.mxu0 0.0
  %1950 = vmatprep.subr.mxu0 0.0
  %1951 = vmatpush1.msra.mxu0 0.0
  %1952 = vmatprep.subr.mxu0 0.0
  %1953 = vmatpush1.msra.mxu0 0.0
  %1954 = vmatprep.subr.mxu0 0.0
  %1955 = vmatpush1.msra.mxu0 0.0
  %1956 = vmatprep.subr.mxu0 0.0
  %1957 = vmatpush1.msra.mxu0 0.0
  %1958 = vmatprep.subr.mxu0 %v1936
  %1959 = vmatpush1.msra.mxu0 %v1935
  %1960 = vmatprep.subr.mxu0 %v1932
  %1961 = vmatpush1.msra.mxu0 %v1931
  %1962 = vmatprep.subr.mxu0 %v1928
  %1963 = vmatpush1.msra.mxu0 %v1927
  %1964 = vmatprep.subr.mxu0 %v1924
  %1965 = vmatpush1.msra.mxu0 %v1923
  %1966 = vmatprep.subr.mxu0 %v1920
  %1967 = vmatpush1.msra.mxu0 %v1919
  %1968 = vmatprep.subr.mxu0 %v1916
  %1969 = vmatpush1.msra.mxu0 %v1915
  %1970 = vmatprep.subr.mxu0 %v1912
  %1971 = vmatpush1.msra.mxu0 %v1911
  %1972 = vmatprep.subr.mxu0 %v1908
  %1973 = vmatpush1.msra.mxu0 %v1907
  %1974 = vmatprep.subr.mxu0 0.0
  %1975 = vmatpush2.msra.mxu0 0.0
  %1976 = vmatprep.subr.mxu0 0.0
  %1977 = vmatpush2.msra.mxu0 0.0
  %1978 = vmatprep.subr.mxu0 0.0
  %1979 = vmatpush2.msra.mxu0 0.0
  %1980 = vmatprep.subr.mxu0 0.0
  %1981 = vmatpush2.msra.mxu0 0.0
  %1982 = vmatprep.subr.mxu0 0.0
  %1983 = vmatpush2.msra.mxu0 0.0
  %1984 = vmatprep.subr.mxu0 0.0
  %1985 = vmatpush2.msra.mxu0 0.0
  %1986 = vmatprep.subr.mxu0 0.0
  %1987 = vmatpush2.msra.mxu0 0.0
  %1988 = vmatprep.subr.mxu0 0.0
  %1989 = vmatpush2.msra.mxu0 0.0
  %1990 = vmatprep.subr.mxu0 0.0
  %1991 = vmatpush2.msra.mxu0 0.0
  %1992 = vmatprep.subr.mxu0 0.0
  %1993 = vmatpush2.msra.mxu0 0.0
  %1994 = vmatprep.subr.mxu0 0.0
  %1995 = vmatpush2.msra.mxu0 0.0
  %1996 = vmatprep.subr.mxu0 0.0
  %1997 = vmatpush2.msra.mxu0 0.0
  %1998 = vmatprep.subr.mxu0 0.0
  %1999 = vmatpush2.msra.mxu0 0.0
  %2000 = vmatprep.subr.mxu0 0.0
  %2001 = vmatpush2.msra.mxu0 0.0
  %2002 = vmatprep.subr.mxu0 0.0
  %2003 = vmatpush2.msra.mxu0 0.0
  %2004 = vmatprep.subr.mxu0 0.0
  %2005 = vmatpush2.msra.mxu0 0.0
  %2006 = vmatprep.mubr.f32.mxu0 0.0
  %2007 = vmatmul.mubr.f32.gmra.mxu0 %v1940
  %v2008 = vpop.f32.mrf.mxu0
  %v2009 = vadd.f32 0.0, %v2008
  %v2010 = vpop.f32.mrf.mxu0
  %v2011 = vadd.f32 0.0, %v2010
  %2012 = vdwg.mxu0
  %2013 = vmatprep.subr.mxu0 0.0
  %2014 = vmatpush1.msra.mxu0 0.0
  %2015 = vmatprep.subr.mxu0 0.0
  %2016 = vmatpush1.msra.mxu0 0.0
  %2017 = vmatprep.subr.mxu0 0.0
  %2018 = vmatpush1.msra.mxu0 0.0
  %2019 = vmatprep.subr.mxu0 0.0
  %2020 = vmatpush1.msra.mxu0 0.0
  %2021 = vmatprep.subr.mxu0 0.0
  %2022 = vmatpush1.msra.mxu0 0.0
  %2023 = vmatprep.subr.mxu0 0.0
  %2024 = vmatpush1.msra.mxu0 0.0
  %2025 = vmatprep.subr.mxu0 0.0
  %2026 = vmatpush1.msra.mxu0 0.0
  %2027 = vmatprep.subr.mxu0 0.0
  %2028 = vmatpush1.msra.mxu0 0.0
  %2029 = vmatprep.subr.mxu0 %v1938
  %2030 = vmatpush1.msra.mxu0 %v1937
  %2031 = vmatprep.subr.mxu0 %v1934
  %2032 = vmatpush1.msra.mxu0 %v1933
  %2033 = vmatprep.subr.mxu0 %v1930
  %2034 = vmatpush1.msra.mxu0 %v1929
  %2035 = vmatprep.subr.mxu0 %v1926
  %2036 = vmatpush1.msra.mxu0 %v1925
  %2037 = vmatprep.subr.mxu0 %v1922
  %2038 = vmatpush1.msra.mxu0 %v1921
  %2039 = vmatprep.subr.mxu0 %v1918
  %2040 = vmatpush1.msra.mxu0 %v1917
  %2041 = vmatprep.subr.mxu0 %v1914
  %2042 = vmatpush1.msra.mxu0 %v1913
  %2043 = vmatprep.subr.mxu0 %v1910
  %2044 = vmatpush1.msra.mxu0 %v1909
  %2045 = vmatprep.subr.mxu0 0.0
  %2046 = vmatpush2.msra.mxu0 0.0
  %2047 = vmatprep.subr.mxu0 0.0
  %2048 = vmatpush2.msra.mxu0 0.0
  %2049 = vmatprep.subr.mxu0 0.0
  %2050 = vmatpush2.msra.mxu0 0.0
  %2051 = vmatprep.subr.mxu0 0.0
  %2052 = vmatpush2.msra.mxu0 0.0
  %2053 = vmatprep.subr.mxu0 0.0
  %2054 = vmatpush2.msra.mxu0 0.0
  %2055 = vmatprep.subr.mxu0 0.0
  %2056 = vmatpush2.msra.mxu0 0.0
  %2057 = vmatprep.subr.mxu0 0.0
  %2058 = vmatpush2.msra.mxu0 0.0
  %2059 = vmatprep.subr.mxu0 0.0
  %2060 = vmatpush2.msra.mxu0 0.0
  %2061 = vmatprep.subr.mxu0 0.0
  %2062 = vmatpush2.msra.mxu0 0.0
  %2063 = vmatprep.subr.mxu0 0.0
  %2064 = vmatpush2.msra.mxu0 0.0
  %2065 = vmatprep.subr.mxu0 0.0
  %2066 = vmatpush2.msra.mxu0 0.0
  %2067 = vmatprep.subr.mxu0 0.0
  %2068 = vmatpush2.msra.mxu0 0.0
  %2069 = vmatprep.subr.mxu0 0.0
  %2070 = vmatpush2.msra.mxu0 0.0
  %2071 = vmatprep.subr.mxu0 0.0
  %2072 = vmatpush2.msra.mxu0 0.0
  %2073 = vmatprep.subr.mxu0 0.0
  %2074 = vmatpush2.msra.mxu0 0.0
  %2075 = vmatprep.subr.mxu0 0.0
  %2076 = vmatpush2.msra.mxu0 0.0
  %2077 = vmatprep.mubr.f32.mxu0 0.0
  %2078 = vmatmul.mubr.f32.gmra.mxu0 %v1940
  %v2079 = vpop.f32.mrf.mxu0
  %v2080 = vadd.f32 0.0, %v2079
  %v2081 = vpop.f32.mrf.mxu0
  %v2082 = vadd.f32 0.0, %v2081
  %2083 = vdwg.mxu0
  %v2084 = vadd.f32 %v1903, %v2009
  %v2085 = vadd.f32 %v1904, %v2011
  %v2086 = vadd.f32 %v1905, %v2080
  %v2087 = vadd.f32 %v1906, %v2082
  %v2088 = vxor.u32 %v2084, 2147483648
  %v2089 = vmul.f32 %v2088, 1.442695
  %v2090 = vpow.pop %v2089
  %v2091 = vadd.f32 %v2090, 1.0
  %v2092 = vrcp.pop %v2091
  %v2093 = vmul.f32 1.0, %v2092
  %v2094 = vxor.u32 %v2085, 2147483648
  %v2095 = vmul.f32 %v2094, 1.442695
  %v2096 = vpow.pop %v2095
  %v2097 = vadd.f32 %v2096, 1.0
  %v2098 = vrcp.pop %v2097
  %v2099 = vmul.f32 1.0, %v2098
  %v2100 = vtanh.pop %v2086
  %v2101 = vxor.u32 %v2087, 2147483648
  %v2102 = vmul.f32 %v2101, 1.442695
  %v2103 = vpow.pop %v2102
  %v2104 = vadd.f32 %v2103, 1.0
  %v2105 = vrcp.pop %v2104
  %v2106 = vmul.f32 1.0, %v2105
  %v2107 = vmul.f32 %v2099, %v1898
  %v2108 = vmul.f32 %v2093, %v2100
  %v2109 = vadd.f32 %v2107, %v2108
  %v2110 = vtanh.pop %v2109
  %v2111 = vmul.f32 %v2106, %v2110
  %s2112 = scalar_lea.vmem [#allocation3], 24
  %2113 = vst.msk [vmem:[%s2112] sm:$0xff] %vm1306, %v2111
  %v2114 = vld [vmem:[%s809] sm:$0xff]
  %v2115 = vld [vmem:[%s809 + $0x8] sm:$0xff]
  %v2116 = vld [vmem:[%s809 + $0x10] sm:$0xff]
  %v2117 = vld [vmem:[%s809 + $0x18] sm:$0xff]
  %v2118 = vld [vmem:[%s3] sm:$0xff]
  %v2119 = vld [vmem:[%s3 + $0x8] sm:$0xff]
  %v2120 = vld [vmem:[%s3 + $0x10] sm:$0xff]
  %v2121 = vld [vmem:[%s3 + $0x18] sm:$0xff]
  %v2122 = vld [vmem:[%s3 + $0x20] sm:$0xff]
  %v2123 = vld [vmem:[%s3 + $0x28] sm:$0xff]
  %v2124 = vld [vmem:[%s3 + $0x30] sm:$0xff]
  %v2125 = vld [vmem:[%s3 + $0x38] sm:$0xff]
  %v2126 = vld [vmem:[%s3 + $0x40] sm:$0xff]
  %v2127 = vld [vmem:[%s3 + $0x48] sm:$0xff]
  %v2128 = vld [vmem:[%s3 + $0x50] sm:$0xff]
  %v2129 = vld [vmem:[%s3 + $0x58] sm:$0xff]
  %v2130 = vld [vmem:[%s3 + $0x60] sm:$0xff]
  %v2131 = vld [vmem:[%s3 + $0x68] sm:$0xff]
  %v2132 = vld [vmem:[%s3 + $0x70] sm:$0xff]
  %v2133 = vld [vmem:[%s3 + $0x78] sm:$0xff]
  %v2134 = vld [vmem:[%s3 + $0x80] sm:$0xff]
  %v2135 = vld [vmem:[%s3 + $0x88] sm:$0xff]
  %v2136 = vld [vmem:[%s3 + $0x90] sm:$0xff]
  %v2137 = vld [vmem:[%s3 + $0x98] sm:$0xff]
  %v2138 = vld [vmem:[%s3 + $0xa0] sm:$0xff]
  %v2139 = vld [vmem:[%s3 + $0xa8] sm:$0xff]
  %v2140 = vld [vmem:[%s3 + $0xb0] sm:$0xff]
  %v2141 = vld [vmem:[%s3 + $0xb8] sm:$0xff]
  %v2142 = vld [vmem:[%s3 + $0xc0] sm:$0xff]
  %v2143 = vld [vmem:[%s3 + $0xc8] sm:$0xff]
  %v2144 = vld [vmem:[%s3 + $0xd0] sm:$0xff]
  %v2145 = vld [vmem:[%s3 + $0xd8] sm:$0xff]
  %v2146 = vld [vmem:[%s3 + $0xe0] sm:$0xff]
  %v2147 = vld [vmem:[%s3 + $0xe8] sm:$0xff]
  %v2148 = vld [vmem:[%s3 + $0xf0] sm:$0xff]
  %v2149 = vld [vmem:[%s3 + $0xf8] sm:$0xff]
  %v2151 = vsel %vm1306, %v2111, 0
  %2153 = vmatprep.subr.mxu0 0.0
  %2154 = vmatpush1.msra.mxu0 0.0
  %2155 = vmatprep.subr.mxu0 0.0
  %2156 = vmatpush1.msra.mxu0 0.0
  %2157 = vmatprep.subr.mxu0 0.0
  %2158 = vmatpush1.msra.mxu0 0.0
  %2159 = vmatprep.subr.mxu0 0.0
  %2160 = vmatpush1.msra.mxu0 0.0
  %2161 = vmatprep.subr.mxu0 0.0
  %2162 = vmatpush1.msra.mxu0 0.0
  %2163 = vmatprep.subr.mxu0 0.0
  %2164 = vmatpush1.msra.mxu0 0.0
  %2165 = vmatprep.subr.mxu0 0.0
  %2166 = vmatpush1.msra.mxu0 0.0
  %2167 = vmatprep.subr.mxu0 0.0
  %2168 = vmatpush1.msra.mxu0 0.0
  %2169 = vmatprep.subr.mxu0 %v2147
  %2170 = vmatpush1.msra.mxu0 %v2146
  %2171 = vmatprep.subr.mxu0 %v2143
  %2172 = vmatpush1.msra.mxu0 %v2142
  %2173 = vmatprep.subr.mxu0 %v2139
  %2174 = vmatpush1.msra.mxu0 %v2138
  %2175 = vmatprep.subr.mxu0 %v2135
  %2176 = vmatpush1.msra.mxu0 %v2134
  %2177 = vmatprep.subr.mxu0 %v2131
  %2178 = vmatpush1.msra.mxu0 %v2130
  %2179 = vmatprep.subr.mxu0 %v2127
  %2180 = vmatpush1.msra.mxu0 %v2126
  %2181 = vmatprep.subr.mxu0 %v2123
  %2182 = vmatpush1.msra.mxu0 %v2122
  %2183 = vmatprep.subr.mxu0 %v2119
  %2184 = vmatpush1.msra.mxu0 %v2118
  %2185 = vmatprep.subr.mxu0 0.0
  %2186 = vmatpush2.msra.mxu0 0.0
  %2187 = vmatprep.subr.mxu0 0.0
  %2188 = vmatpush2.msra.mxu0 0.0
  %2189 = vmatprep.subr.mxu0 0.0
  %2190 = vmatpush2.msra.mxu0 0.0
  %2191 = vmatprep.subr.mxu0 0.0
  %2192 = vmatpush2.msra.mxu0 0.0
  %2193 = vmatprep.subr.mxu0 0.0
  %2194 = vmatpush2.msra.mxu0 0.0
  %2195 = vmatprep.subr.mxu0 0.0
  %2196 = vmatpush2.msra.mxu0 0.0
  %2197 = vmatprep.subr.mxu0 0.0
  %2198 = vmatpush2.msra.mxu0 0.0
  %2199 = vmatprep.subr.mxu0 0.0
  %2200 = vmatpush2.msra.mxu0 0.0
  %2201 = vmatprep.subr.mxu0 0.0
  %2202 = vmatpush2.msra.mxu0 0.0
  %2203 = vmatprep.subr.mxu0 0.0
  %2204 = vmatpush2.msra.mxu0 0.0
  %2205 = vmatprep.subr.mxu0 0.0
  %2206 = vmatpush2.msra.mxu0 0.0
  %2207 = vmatprep.subr.mxu0 0.0
  %2208 = vmatpush2.msra.mxu0 0.0
  %2209 = vmatprep.subr.mxu0 0.0
  %2210 = vmatpush2.msra.mxu0 0.0
  %2211 = vmatprep.subr.mxu0 0.0
  %2212 = vmatpush2.msra.mxu0 0.0
  %2213 = vmatprep.subr.mxu0 0.0
  %2214 = vmatpush2.msra.mxu0 0.0
  %2215 = vmatprep.subr.mxu0 0.0
  %2216 = vmatpush2.msra.mxu0 0.0
  %2217 = vmatprep.mubr.f32.mxu0 0.0
  %2218 = vmatmul.mubr.f32.gmra.mxu0 %v2151
  %v2219 = vpop.f32.mrf.mxu0
  %v2220 = vadd.f32 0.0, %v2219
  %v2221 = vpop.f32.mrf.mxu0
  %v2222 = vadd.f32 0.0, %v2221
  %2223 = vdwg.mxu0
  %2224 = vmatprep.subr.mxu0 0.0
  %2225 = vmatpush1.msra.mxu0 0.0
  %2226 = vmatprep.subr.mxu0 0.0
  %2227 = vmatpush1.msra.mxu0 0.0
  %2228 = vmatprep.subr.mxu0 0.0
  %2229 = vmatpush1.msra.mxu0 0.0
  %2230 = vmatprep.subr.mxu0 0.0
  %2231 = vmatpush1.msra.mxu0 0.0
  %2232 = vmatprep.subr.mxu0 0.0
  %2233 = vmatpush1.msra.mxu0 0.0
  %2234 = vmatprep.subr.mxu0 0.0
  %2235 = vmatpush1.msra.mxu0 0.0
  %2236 = vmatprep.subr.mxu0 0.0
  %2237 = vmatpush1.msra.mxu0 0.0
  %2238 = vmatprep.subr.mxu0 0.0
  %2239 = vmatpush1.msra.mxu0 0.0
  %2240 = vmatprep.subr.mxu0 %v2149
  %2241 = vmatpush1.msra.mxu0 %v2148
  %2242 = vmatprep.subr.mxu0 %v2145
  %2243 = vmatpush1.msra.mxu0 %v2144
  %2244 = vmatprep.subr.mxu0 %v2141
  %2245 = vmatpush1.msra.mxu0 %v2140
  %2246 = vmatprep.subr.mxu0 %v2137
  %2247 = vmatpush1.msra.mxu0 %v2136
  %2248 = vmatprep.subr.mxu0 %v2133
  %2249 = vmatpush1.msra.mxu0 %v2132
  %2250 = vmatprep.subr.mxu0 %v2129
  %2251 = vmatpush1.msra.mxu0 %v2128
  %2252 = vmatprep.subr.mxu0 %v2125
  %2253 = vmatpush1.msra.mxu0 %v2124
  %2254 = vmatprep.subr.mxu0 %v2121
  %2255 = vmatpush1.msra.mxu0 %v2120
  %2256 = vmatprep.subr.mxu0 0.0
  %2257 = vmatpush2.msra.mxu0 0.0
  %2258 = vmatprep.subr.mxu0 0.0
  %2259 = vmatpush2.msra.mxu0 0.0
  %2260 = vmatprep.subr.mxu0 0.0
  %2261 = vmatpush2.msra.mxu0 0.0
  %2262 = vmatprep.subr.mxu0 0.0
  %2263 = vmatpush2.msra.mxu0 0.0
  %2264 = vmatprep.subr.mxu0 0.0
  %2265 = vmatpush2.msra.mxu0 0.0
  %2266 = vmatprep.subr.mxu0 0.0
  %2267 = vmatpush2.msra.mxu0 0.0
  %2268 = vmatprep.subr.mxu0 0.0
  %2269 = vmatpush2.msra.mxu0 0.0
  %2270 = vmatprep.subr.mxu0 0.0
  %2271 = vmatpush2.msra.mxu0 0.0
  %2272 = vmatprep.subr.mxu0 0.0
  %2273 = vmatpush2.msra.mxu0 0.0
  %2274 = vmatprep.subr.mxu0 0.0
  %2275 = vmatpush2.msra.mxu0 0.0
  %2276 = vmatprep.subr.mxu0 0.0
  %2277 = vmatpush2.msra.mxu0 0.0
  %2278 = vmatprep.subr.mxu0 0.0
  %2279 = vmatpush2.msra.mxu0 0.0
  %2280 = vmatprep.subr.mxu0 0.0
  %2281 = vmatpush2.msra.mxu0 0.0
  %2282 = vmatprep.subr.mxu0 0.0
  %2283 = vmatpush2.msra.mxu0 0.0
  %2284 = vmatprep.subr.mxu0 0.0
  %2285 = vmatpush2.msra.mxu0 0.0
  %2286 = vmatprep.subr.mxu0 0.0
  %2287 = vmatpush2.msra.mxu0 0.0
  %2288 = vmatprep.mubr.f32.mxu0 0.0
  %2289 = vmatmul.mubr.f32.gmra.mxu0 %v2151
  %v2290 = vpop.f32.mrf.mxu0
  %v2291 = vadd.f32 0.0, %v2290
  %v2292 = vpop.f32.mrf.mxu0
  %v2293 = vadd.f32 0.0, %v2292
  %2294 = vdwg.mxu0
  %v2295 = vadd.f32 %v2114, %v2220
  %v2296 = vadd.f32 %v2115, %v2222
  %v2297 = vadd.f32 %v2116, %v2291
  %v2298 = vadd.f32 %v2117, %v2293
  %v2299 = vxor.u32 %v2295, 2147483648
  %v2300 = vmul.f32 %v2299, 1.442695
  %v2301 = vpow.pop %v2300
  %v2302 = vadd.f32 %v2301, 1.0
  %v2303 = vrcp.pop %v2302
  %v2304 = vmul.f32 1.0, %v2303
  %v2305 = vxor.u32 %v2296, 2147483648
  %v2306 = vmul.f32 %v2305, 1.442695
  %v2307 = vpow.pop %v2306
  %v2308 = vadd.f32 %v2307, 1.0
  %v2309 = vrcp.pop %v2308
  %v2310 = vmul.f32 1.0, %v2309
  %v2311 = vtanh.pop %v2297
  %v2312 = vxor.u32 %v2298, 2147483648
  %v2313 = vmul.f32 %v2312, 1.442695
  %v2314 = vpow.pop %v2313
  %v2315 = vadd.f32 %v2314, 1.0
  %v2316 = vrcp.pop %v2315
  %v2317 = vmul.f32 1.0, %v2316
  %v2318 = vmul.f32 %v2310, %v2109
  %v2319 = vmul.f32 %v2304, %v2311
  %v2320 = vadd.f32 %v2318, %v2319
  %v2321 = vtanh.pop %v2320
  %v2322 = vmul.f32 %v2317, %v2321
  %s2323 = scalar_lea.vmem [#allocation3], 32
  %2324 = vst.msk [vmem:[%s2323] sm:$0xff] %vm1306, %v2322
  %v2325 = vld [vmem:[%s961] sm:$0xff]
  %v2326 = vld [vmem:[%s961 + $0x8] sm:$0xff]
  %v2327 = vld [vmem:[%s961 + $0x10] sm:$0xff]
  %v2328 = vld [vmem:[%s961 + $0x18] sm:$0xff]
  %v2329 = vld [vmem:[%s3] sm:$0xff]
  %v2330 = vld [vmem:[%s3 + $0x8] sm:$0xff]
  %v2331 = vld [vmem:[%s3 + $0x10] sm:$0xff]
  %v2332 = vld [vmem:[%s3 + $0x18] sm:$0xff]
  %v2333 = vld [vmem:[%s3 + $0x20] sm:$0xff]
  %v2334 = vld [vmem:[%s3 + $0x28] sm:$0xff]
  %v2335 = vld [vmem:[%s3 + $0x30] sm:$0xff]
  %v2336 = vld [vmem:[%s3 + $0x38] sm:$0xff]
  %v2337 = vld [vmem:[%s3 + $0x40] sm:$0xff]
  %v2338 = vld [vmem:[%s3 + $0x48] sm:$0xff]
  %v2339 = vld [vmem:[%s3 + $0x50] sm:$0xff]
  %v2340 = vld [vmem:[%s3 + $0x58] sm:$0xff]
  %v2341 = vld [vmem:[%s3 + $0x60] sm:$0xff]
  %v2342 = vld [vmem:[%s3 + $0x68] sm:$0xff]
  %v2343 = vld [vmem:[%s3 + $0x70] sm:$0xff]
  %v2344 = vld [vmem:[%s3 + $0x78] sm:$0xff]
  %v2345 = vld [vmem:[%s3 + $0x80] sm:$0xff]
  %v2346 = vld [vmem:[%s3 + $0x88] sm:$0xff]
  %v2347 = vld [vmem:[%s3 + $0x90] sm:$0xff]
  %v2348 = vld [vmem:[%s3 + $0x98] sm:$0xff]
  %v2349 = vld [vmem:[%s3 + $0xa0] sm:$0xff]
  %v2350 = vld [vmem:[%s3 + $0xa8] sm:$0xff]
  %v2351 = vld [vmem:[%s3 + $0xb0] sm:$0xff]
  %v2352 = vld [vmem:[%s3 + $0xb8] sm:$0xff]
  %v2353 = vld [vmem:[%s3 + $0xc0] sm:$0xff]
  %v2354 = vld [vmem:[%s3 + $0xc8] sm:$0xff]
  %v2355 = vld [vmem:[%s3 + $0xd0] sm:$0xff]
  %v2356 = vld [vmem:[%s3 + $0xd8] sm:$0xff]
  %v2357 = vld [vmem:[%s3 + $0xe0] sm:$0xff]
  %v2358 = vld [vmem:[%s3 + $0xe8] sm:$0xff]
  %v2359 = vld [vmem:[%s3 + $0xf0] sm:$0xff]
  %v2360 = vld [vmem:[%s3 + $0xf8] sm:$0xff]
  %v2362 = vsel %vm1306, %v2322, 0
  %2364 = vmatprep.subr.mxu0 0.0
  %2365 = vmatpush1.msra.mxu0 0.0
  %2366 = vmatprep.subr.mxu0 0.0
  %2367 = vmatpush1.msra.mxu0 0.0
  %2368 = vmatprep.subr.mxu0 0.0
  %2369 = vmatpush1.msra.mxu0 0.0
  %2370 = vmatprep.subr.mxu0 0.0
  %2371 = vmatpush1.msra.mxu0 0.0
  %2372 = vmatprep.subr.mxu0 0.0
  %2373 = vmatpush1.msra.mxu0 0.0
  %2374 = vmatprep.subr.mxu0 0.0
  %2375 = vmatpush1.msra.mxu0 0.0
  %2376 = vmatprep.subr.mxu0 0.0
  %2377 = vmatpush1.msra.mxu0 0.0
  %2378 = vmatprep.subr.mxu0 0.0
  %2379 = vmatpush1.msra.mxu0 0.0
  %2380 = vmatprep.subr.mxu0 %v2358
  %2381 = vmatpush1.msra.mxu0 %v2357
  %2382 = vmatprep.subr.mxu0 %v2354
  %2383 = vmatpush1.msra.mxu0 %v2353
  %2384 = vmatprep.subr.mxu0 %v2350
  %2385 = vmatpush1.msra.mxu0 %v2349
  %2386 = vmatprep.subr.mxu0 %v2346
  %2387 = vmatpush1.msra.mxu0 %v2345
  %2388 = vmatprep.subr.mxu0 %v2342
  %2389 = vmatpush1.msra.mxu0 %v2341
  %2390 = vmatprep.subr.mxu0 %v2338
  %2391 = vmatpush1.msra.mxu0 %v2337
  %2392 = vmatprep.subr.mxu0 %v2334
  %2393 = vmatpush1.msra.mxu0 %v2333
  %2394 = vmatprep.subr.mxu0 %v2330
  %2395 = vmatpush1.msra.mxu0 %v2329
  %2396 = vmatprep.subr.mxu0 0.0
  %2397 = vmatpush2.msra.mxu0 0.0
  %2398 = vmatprep.subr.mxu0 0.0
  %2399 = vmatpush2.msra.mxu0 0.0
  %2400 = vmatprep.subr.mxu0 0.0
  %2401 = vmatpush2.msra.mxu0 0.0
  %2402 = vmatprep.subr.mxu0 0.0
  %2403 = vmatpush2.msra.mxu0 0.0
  %2404 = vmatprep.subr.mxu0 0.0
  %2405 = vmatpush2.msra.mxu0 0.0
  %2406 = vmatprep.subr.mxu0 0.0
  %2407 = vmatpush2.msra.mxu0 0.0
  %2408 = vmatprep.subr.mxu0 0.0
  %2409 = vmatpush2.msra.mxu0 0.0
  %2410 = vmatprep.subr.mxu0 0.0
  %2411 = vmatpush2.msra.mxu0 0.0
  %2412 = vmatprep.subr.mxu0 0.0
  %2413 = vmatpush2.msra.mxu0 0.0
  %2414 = vmatprep.subr.mxu0 0.0
  %2415 = vmatpush2.msra.mxu0 0.0
  %2416 = vmatprep.subr.mxu0 0.0
  %2417 = vmatpush2.msra.mxu0 0.0
  %2418 = vmatprep.subr.mxu0 0.0
  %2419 = vmatpush2.msra.mxu0 0.0
  %2420 = vmatprep.subr.mxu0 0.0
  %2421 = vmatpush2.msra.mxu0 0.0
  %2422 = vmatprep.subr.mxu0 0.0
  %2423 = vmatpush2.msra.mxu0 0.0
  %2424 = vmatprep.subr.mxu0 0.0
  %2425 = vmatpush2.msra.mxu0 0.0
  %2426 = vmatprep.subr.mxu0 0.0
  %2427 = vmatpush2.msra.mxu0 0.0
  %2428 = vmatprep.mubr.f32.mxu0 0.0
  %2429 = vmatmul.mubr.f32.gmra.mxu0 %v2362
  %v2430 = vpop.f32.mrf.mxu0
  %v2431 = vadd.f32 0.0, %v2430
  %v2432 = vpop.f32.mrf.mxu0
  %v2433 = vadd.f32 0.0, %v2432
  %2434 = vdwg.mxu0
  %2435 = vmatprep.subr.mxu0 0.0
  %2436 = vmatpush1.msra.mxu0 0.0
  %2437 = vmatprep.subr.mxu0 0.0
  %2438 = vmatpush1.msra.mxu0 0.0
  %2439 = vmatprep.subr.mxu0 0.0
  %2440 = vmatpush1.msra.mxu0 0.0
  %2441 = vmatprep.subr.mxu0 0.0
  %2442 = vmatpush1.msra.mxu0 0.0
  %2443 = vmatprep.subr.mxu0 0.0
  %2444 = vmatpush1.msra.mxu0 0.0
  %2445 = vmatprep.subr.mxu0 0.0
  %2446 = vmatpush1.msra.mxu0 0.0
  %2447 = vmatprep.subr.mxu0 0.0
  %2448 = vmatpush1.msra.mxu0 0.0
  %2449 = vmatprep.subr.mxu0 0.0
  %2450 = vmatpush1.msra.mxu0 0.0
  %2451 = vmatprep.subr.mxu0 %v2360
  %2452 = vmatpush1.msra.mxu0 %v2359
  %2453 = vmatprep.subr.mxu0 %v2356
  %2454 = vmatpush1.msra.mxu0 %v2355
  %2455 = vmatprep.subr.mxu0 %v2352
  %2456 = vmatpush1.msra.mxu0 %v2351
  %2457 = vmatprep.subr.mxu0 %v2348
  %2458 = vmatpush1.msra.mxu0 %v2347
  %2459 = vmatprep.subr.mxu0 %v2344
  %2460 = vmatpush1.msra.mxu0 %v2343
  %2461 = vmatprep.subr.mxu0 %v2340
  %2462 = vmatpush1.msra.mxu0 %v2339
  %2463 = vmatprep.subr.mxu0 %v2336
  %2464 = vmatpush1.msra.mxu0 %v2335
  %2465 = vmatprep.subr.mxu0 %v2332
  %2466 = vmatpush1.msra.mxu0 %v2331
  %2467 = vmatprep.subr.mxu0 0.0
  %2468 = vmatpush2.msra.mxu0 0.0
  %2469 = vmatprep.subr.mxu0 0.0
  %2470 = vmatpush2.msra.mxu0 0.0
  %2471 = vmatprep.subr.mxu0 0.0
  %2472 = vmatpush2.msra.mxu0 0.0
  %2473 = vmatprep.subr.mxu0 0.0
  %2474 = vmatpush2.msra.mxu0 0.0
  %2475 = vmatprep.subr.mxu0 0.0
  %2476 = vmatpush2.msra.mxu0 0.0
  %2477 = vmatprep.subr.mxu0 0.0
  %2478 = vmatpush2.msra.mxu0 0.0
  %2479 = vmatprep.subr.mxu0 0.0
  %2480 = vmatpush2.msra.mxu0 0.0
  %2481 = vmatprep.subr.mxu0 0.0
  %2482 = vmatpush2.msra.mxu0 0.0
  %2483 = vmatprep.subr.mxu0 0.0
  %2484 = vmatpush2.msra.mxu0 0.0
  %2485 = vmatprep.subr.mxu0 0.0
  %2486 = vmatpush2.msra.mxu0 0.0
  %2487 = vmatprep.subr.mxu0 0.0
  %2488 = vmatpush2.msra.mxu0 0.0
  %2489 = vmatprep.subr.mxu0 0.0
  %2490 = vmatpush2.msra.mxu0 0.0
  %2491 = vmatprep.subr.mxu0 0.0
  %2492 = vmatpush2.msra.mxu0 0.0
  %2493 = vmatprep.subr.mxu0 0.0
  %2494 = vmatpush2.msra.mxu0 0.0
  %2495 = vmatprep.subr.mxu0 0.0
  %2496 = vmatpush2.msra.mxu0 0.0
  %2497 = vmatprep.subr.mxu0 0.0
  %2498 = vmatpush2.msra.mxu0 0.0
  %2499 = vmatprep.mubr.f32.mxu0 0.0
  %2500 = vmatmul.mubr.f32.gmra.mxu0 %v2362
  %v2501 = vpop.f32.mrf.mxu0
  %v2502 = vadd.f32 0.0, %v2501
  %v2503 = vpop.f32.mrf.mxu0
  %v2504 = vadd.f32 0.0, %v2503
  %2505 = vdwg.mxu0
  %v2506 = vadd.f32 %v2325, %v2431
  %v2507 = vadd.f32 %v2326, %v2433
  %v2508 = vadd.f32 %v2327, %v2502
  %v2509 = vadd.f32 %v2328, %v2504
  %v2510 = vxor.u32 %v2506, 2147483648
  %v2511 = vmul.f32 %v2510, 1.442695
  %v2512 = vpow.pop %v2511
  %v2513 = vadd.f32 %v2512, 1.0
  %v2514 = vrcp.pop %v2513
  %v2515 = vmul.f32 1.0, %v2514
  %v2516 = vxor.u32 %v2507, 2147483648
  %v2517 = vmul.f32 %v2516, 1.442695
  %v2518 = vpow.pop %v2517
  %v2519 = vadd.f32 %v2518, 1.0
  %v2520 = vrcp.pop %v2519
  %v2521 = vmul.f32 1.0, %v2520
  %v2522 = vtanh.pop %v2508
  %v2523 = vxor.u32 %v2509, 2147483648
  %v2524 = vmul.f32 %v2523, 1.442695
  %v2525 = vpow.pop %v2524
  %v2526 = vadd.f32 %v2525, 1.0
  %v2527 = vrcp.pop %v2526
  %v2528 = vmul.f32 1.0, %v2527
  %v2529 = vmul.f32 %v2521, %v2320
  %v2530 = vmul.f32 %v2515, %v2522
  %v2531 = vadd.f32 %v2529, %v2530
  %v2532 = vtanh.pop %v2531
  %v2533 = vmul.f32 %v2528, %v2532
  %s2534 = scalar_lea.vmem [#allocation3], 40
  %2535 = vst.msk [vmem:[%s2534] sm:$0xff] %vm1306, %v2533
  %v2536 = vld [vmem:[%s1113] sm:$0xff]
  %v2537 = vld [vmem:[%s1113 + $0x8] sm:$0xff]
  %v2538 = vld [vmem:[%s1113 + $0x10] sm:$0xff]
  %v2539 = vld [vmem:[%s1113 + $0x18] sm:$0xff]
  %v2540 = vld [vmem:[%s3] sm:$0xff]
  %v2541 = vld [vmem:[%s3 + $0x8] sm:$0xff]
  %v2542 = vld [vmem:[%s3 + $0x10] sm:$0xff]
  %v2543 = vld [vmem:[%s3 + $0x18] sm:$0xff]
  %v2544 = vld [vmem:[%s3 + $0x20] sm:$0xff]
  %v2545 = vld [vmem:[%s3 + $0x28] sm:$0xff]
  %v2546 = vld [vmem:[%s3 + $0x30] sm:$0xff]
  %v2547 = vld [vmem:[%s3 + $0x38] sm:$0xff]
  %v2548 = vld [vmem:[%s3 + $0x40] sm:$0xff]
  %v2549 = vld [vmem:[%s3 + $0x48] sm:$0xff]
  %v2550 = vld [vmem:[%s3 + $0x50] sm:$0xff]
  %v2551 = vld [vmem:[%s3 + $0x58] sm:$0xff]
  %v2552 = vld [vmem:[%s3 + $0x60] sm:$0xff]
  %v2553 = vld [vmem:[%s3 + $0x68] sm:$0xff]
  %v2554 = vld [vmem:[%s3 + $0x70] sm:$0xff]
  %v2555 = vld [vmem:[%s3 + $0x78] sm:$0xff]
  %v2556 = vld [vmem:[%s3 + $0x80] sm:$0xff]
  %v2557 = vld [vmem:[%s3 + $0x88] sm:$0xff]
  %v2558 = vld [vmem:[%s3 + $0x90] sm:$0xff]
  %v2559 = vld [vmem:[%s3 + $0x98] sm:$0xff]
  %v2560 = vld [vmem:[%s3 + $0xa0] sm:$0xff]
  %v2561 = vld [vmem:[%s3 + $0xa8] sm:$0xff]
  %v2562 = vld [vmem:[%s3 + $0xb0] sm:$0xff]
  %v2563 = vld [vmem:[%s3 + $0xb8] sm:$0xff]
  %v2564 = vld [vmem:[%s3 + $0xc0] sm:$0xff]
  %v2565 = vld [vmem:[%s3 + $0xc8] sm:$0xff]
  %v2566 = vld [vmem:[%s3 + $0xd0] sm:$0xff]
  %v2567 = vld [vmem:[%s3 + $0xd8] sm:$0xff]
  %v2568 = vld [vmem:[%s3 + $0xe0] sm:$0xff]
  %v2569 = vld [vmem:[%s3 + $0xe8] sm:$0xff]
  %v2570 = vld [vmem:[%s3 + $0xf0] sm:$0xff]
  %v2571 = vld [vmem:[%s3 + $0xf8] sm:$0xff]
  %v2573 = vsel %vm1306, %v2533, 0
  %2575 = vmatprep.subr.mxu0 0.0
  %2576 = vmatpush1.msra.mxu0 0.0
  %2577 = vmatprep.subr.mxu0 0.0
  %2578 = vmatpush1.msra.mxu0 0.0
  %2579 = vmatprep.subr.mxu0 0.0
  %2580 = vmatpush1.msra.mxu0 0.0
  %2581 = vmatprep.subr.mxu0 0.0
  %2582 = vmatpush1.msra.mxu0 0.0
  %2583 = vmatprep.subr.mxu0 0.0
  %2584 = vmatpush1.msra.mxu0 0.0
  %2585 = vmatprep.subr.mxu0 0.0
  %2586 = vmatpush1.msra.mxu0 0.0
  %2587 = vmatprep.subr.mxu0 0.0
  %2588 = vmatpush1.msra.mxu0 0.0
  %2589 = vmatprep.subr.mxu0 0.0
  %2590 = vmatpush1.msra.mxu0 0.0
  %2591 = vmatprep.subr.mxu0 %v2569
  %2592 = vmatpush1.msra.mxu0 %v2568
  %2593 = vmatprep.subr.mxu0 %v2565
  %2594 = vmatpush1.msra.mxu0 %v2564
  %2595 = vmatprep.subr.mxu0 %v2561
  %2596 = vmatpush1.msra.mxu0 %v2560
  %2597 = vmatprep.subr.mxu0 %v2557
  %2598 = vmatpush1.msra.mxu0 %v2556
  %2599 = vmatprep.subr.mxu0 %v2553
  %2600 = vmatpush1.msra.mxu0 %v2552
  %2601 = vmatprep.subr.mxu0 %v2549
  %2602 = vmatpush1.msra.mxu0 %v2548
  %2603 = vmatprep.subr.mxu0 %v2545
  %2604 = vmatpush1.msra.mxu0 %v2544
  %2605 = vmatprep.subr.mxu0 %v2541
  %2606 = vmatpush1.msra.mxu0 %v2540
  %2607 = vmatprep.subr.mxu0 0.0
  %2608 = vmatpush2.msra.mxu0 0.0
  %2609 = vmatprep.subr.mxu0 0.0
  %2610 = vmatpush2.msra.mxu0 0.0
  %2611 = vmatprep.subr.mxu0 0.0
  %2612 = vmatpush2.msra.mxu0 0.0
  %2613 = vmatprep.subr.mxu0 0.0
  %2614 = vmatpush2.msra.mxu0 0.0
  %2615 = vmatprep.subr.mxu0 0.0
  %2616 = vmatpush2.msra.mxu0 0.0
  %2617 = vmatprep.subr.mxu0 0.0
  %2618 = vmatpush2.msra.mxu0 0.0
  %2619 = vmatprep.subr.mxu0 0.0
  %2620 = vmatpush2.msra.mxu0 0.0
  %2621 = vmatprep.subr.mxu0 0.0
  %2622 = vmatpush2.msra.mxu0 0.0
  %2623 = vmatprep.subr.mxu0 0.0
  %2624 = vmatpush2.msra.mxu0 0.0
  %2625 = vmatprep.subr.mxu0 0.0
  %2626 = vmatpush2.msra.mxu0 0.0
  %2627 = vmatprep.subr.mxu0 0.0
  %2628 = vmatpush2.msra.mxu0 0.0
  %2629 = vmatprep.subr.mxu0 0.0
  %2630 = vmatpush2.msra.mxu0 0.0
  %2631 = vmatprep.subr.mxu0 0.0
  %2632 = vmatpush2.msra.mxu0 0.0
  %2633 = vmatprep.subr.mxu0 0.0
  %2634 = vmatpush2.msra.mxu0 0.0
  %2635 = vmatprep.subr.mxu0 0.0
  %2636 = vmatpush2.msra.mxu0 0.0
  %2637 = vmatprep.subr.mxu0 0.0
  %2638 = vmatpush2.msra.mxu0 0.0
  %2639 = vmatprep.mubr.f32.mxu0 0.0
  %2640 = vmatmul.mubr.f32.gmra.mxu0 %v2573
  %v2641 = vpop.f32.mrf.mxu0
  %v2642 = vadd.f32 0.0, %v2641
  %v2643 = vpop.f32.mrf.mxu0
  %v2644 = vadd.f32 0.0, %v2643
  %2645 = vdwg.mxu0
  %2646 = vmatprep.subr.mxu0 0.0
  %2647 = vmatpush1.msra.mxu0 0.0
  %2648 = vmatprep.subr.mxu0 0.0
  %2649 = vmatpush1.msra.mxu0 0.0
  %2650 = vmatprep.subr.mxu0 0.0
  %2651 = vmatpush1.msra.mxu0 0.0
  %2652 = vmatprep.subr.mxu0 0.0
  %2653 = vmatpush1.msra.mxu0 0.0
  %2654 = vmatprep.subr.mxu0 0.0
  %2655 = vmatpush1.msra.mxu0 0.0
  %2656 = vmatprep.subr.mxu0 0.0
  %2657 = vmatpush1.msra.mxu0 0.0
  %2658 = vmatprep.subr.mxu0 0.0
  %2659 = vmatpush1.msra.mxu0 0.0
  %2660 = vmatprep.subr.mxu0 0.0
  %2661 = vmatpush1.msra.mxu0 0.0
  %2662 = vmatprep.subr.mxu0 %v2571
  %2663 = vmatpush1.msra.mxu0 %v2570
  %2664 = vmatprep.subr.mxu0 %v2567
  %2665 = vmatpush1.msra.mxu0 %v2566
  %2666 = vmatprep.subr.mxu0 %v2563
  %2667 = vmatpush1.msra.mxu0 %v2562
  %2668 = vmatprep.subr.mxu0 %v2559
  %2669 = vmatpush1.msra.mxu0 %v2558
  %2670 = vmatprep.subr.mxu0 %v2555
  %2671 = vmatpush1.msra.mxu0 %v2554
  %2672 = vmatprep.subr.mxu0 %v2551
  %2673 = vmatpush1.msra.mxu0 %v2550
  %2674 = vmatprep.subr.mxu0 %v2547
  %2675 = vmatpush1.msra.mxu0 %v2546
  %2676 = vmatprep.subr.mxu0 %v2543
  %2677 = vmatpush1.msra.mxu0 %v2542
  %2678 = vmatprep.subr.mxu0 0.0
  %2679 = vmatpush2.msra.mxu0 0.0
  %2680 = vmatprep.subr.mxu0 0.0
  %2681 = vmatpush2.msra.mxu0 0.0
  %2682 = vmatprep.subr.mxu0 0.0
  %2683 = vmatpush2.msra.mxu0 0.0
  %2684 = vmatprep.subr.mxu0 0.0
  %2685 = vmatpush2.msra.mxu0 0.0
  %2686 = vmatprep.subr.mxu0 0.0
  %2687 = vmatpush2.msra.mxu0 0.0
  %2688 = vmatprep.subr.mxu0 0.0
  %2689 = vmatpush2.msra.mxu0 0.0
  %2690 = vmatprep.subr.mxu0 0.0
  %2691 = vmatpush2.msra.mxu0 0.0
  %2692 = vmatprep.subr.mxu0 0.0
  %2693 = vmatpush2.msra.mxu0 0.0
  %2694 = vmatprep.subr.mxu0 0.0
  %2695 = vmatpush2.msra.mxu0 0.0
  %2696 = vmatprep.subr.mxu0 0.0
  %2697 = vmatpush2.msra.mxu0 0.0
  %2698 = vmatprep.subr.mxu0 0.0
  %2699 = vmatpush2.msra.mxu0 0.0
  %2700 = vmatprep.subr.mxu0 0.0
  %2701 = vmatpush2.msra.mxu0 0.0
  %2702 = vmatprep.subr.mxu0 0.0
  %2703 = vmatpush2.msra.mxu0 0.0
  %2704 = vmatprep.subr.mxu0 0.0
  %2705 = vmatpush2.msra.mxu0 0.0
  %2706 = vmatprep.subr.mxu0 0.0
  %2707 = vmatpush2.msra.mxu0 0.0
  %2708 = vmatprep.subr.mxu0 0.0
  %2709 = vmatpush2.msra.mxu0 0.0
  %2710 = vmatprep.mubr.f32.mxu0 0.0
  %2711 = vmatmul.mubr.f32.gmra.mxu0 %v2573
  %v2712 = vpop.f32.mrf.mxu0
  %v2713 = vadd.f32 0.0, %v2712
  %v2714 = vpop.f32.mrf.mxu0
  %v2715 = vadd.f32 0.0, %v2714
  %2716 = vdwg.mxu0
  %v2717 = vadd.f32 %v2536, %v2642
  %v2718 = vadd.f32 %v2537, %v2644
  %v2719 = vadd.f32 %v2538, %v2713
  %v2720 = vadd.f32 %v2539, %v2715
  %v2721 = vxor.u32 %v2717, 2147483648
  %v2722 = vmul.f32 %v2721, 1.442695
  %v2723 = vpow.pop %v2722
  %v2724 = vadd.f32 %v2723, 1.0
  %v2725 = vrcp.pop %v2724
  %v2726 = vmul.f32 1.0, %v2725
  %v2727 = vxor.u32 %v2718, 2147483648
  %v2728 = vmul.f32 %v2727, 1.442695
  %v2729 = vpow.pop %v2728
  %v2730 = vadd.f32 %v2729, 1.0
  %v2731 = vrcp.pop %v2730
  %v2732 = vmul.f32 1.0, %v2731
  %v2733 = vtanh.pop %v2719
  %v2734 = vxor.u32 %v2720, 2147483648
  %v2735 = vmul.f32 %v2734, 1.442695
  %v2736 = vpow.pop %v2735
  %v2737 = vadd.f32 %v2736, 1.0
  %v2738 = vrcp.pop %v2737
  %v2739 = vmul.f32 1.0, %v2738
  %v2740 = vmul.f32 %v2732, %v2531
  %v2741 = vmul.f32 %v2726, %v2733
  %v2742 = vadd.f32 %v2740, %v2741
  %v2743 = vtanh.pop %v2742
  %v2744 = vmul.f32 %v2739, %v2743
  %s2745 = scalar_lea.vmem [#allocation3], 48
  %2746 = vst.msk [vmem:[%s2745] sm:$0xff] %vm1306, %v2744
  %v2747 = vld [vmem:[%s1265] sm:$0xff]
  %v2748 = vld [vmem:[%s1265 + $0x8] sm:$0xff]
  %v2749 = vld [vmem:[%s1265 + $0x10] sm:$0xff]
  %v2750 = vld [vmem:[%s1265 + $0x18] sm:$0xff]
  %v2751 = vld [vmem:[%s3] sm:$0xff]
  %v2752 = vld [vmem:[%s3 + $0x8] sm:$0xff]
  %v2753 = vld [vmem:[%s3 + $0x10] sm:$0xff]
  %v2754 = vld [vmem:[%s3 + $0x18] sm:$0xff]
  %v2755 = vld [vmem:[%s3 + $0x20] sm:$0xff]
  %v2756 = vld [vmem:[%s3 + $0x28] sm:$0xff]
  %v2757 = vld [vmem:[%s3 + $0x30] sm:$0xff]
  %v2758 = vld [vmem:[%s3 + $0x38] sm:$0xff]
  %v2759 = vld [vmem:[%s3 + $0x40] sm:$0xff]
  %v2760 = vld [vmem:[%s3 + $0x48] sm:$0xff]
  %v2761 = vld [vmem:[%s3 + $0x50] sm:$0xff]
  %v2762 = vld [vmem:[%s3 + $0x58] sm:$0xff]
  %v2763 = vld [vmem:[%s3 + $0x60] sm:$0xff]
  %v2764 = vld [vmem:[%s3 + $0x68] sm:$0xff]
  %v2765 = vld [vmem:[%s3 + $0x70] sm:$0xff]
  %v2766 = vld [vmem:[%s3 + $0x78] sm:$0xff]
  %v2767 = vld [vmem:[%s3 + $0x80] sm:$0xff]
  %v2768 = vld [vmem:[%s3 + $0x88] sm:$0xff]
  %v2769 = vld [vmem:[%s3 + $0x90] sm:$0xff]
  %v2770 = vld [vmem:[%s3 + $0x98] sm:$0xff]
  %v2771 = vld [vmem:[%s3 + $0xa0] sm:$0xff]
  %v2772 = vld [vmem:[%s3 + $0xa8] sm:$0xff]
  %v2773 = vld [vmem:[%s3 + $0xb0] sm:$0xff]
  %v2774 = vld [vmem:[%s3 + $0xb8] sm:$0xff]
  %v2775 = vld [vmem:[%s3 + $0xc0] sm:$0xff]
  %v2776 = vld [vmem:[%s3 + $0xc8] sm:$0xff]
  %v2777 = vld [vmem:[%s3 + $0xd0] sm:$0xff]
  %v2778 = vld [vmem:[%s3 + $0xd8] sm:$0xff]
  %v2779 = vld [vmem:[%s3 + $0xe0] sm:$0xff]
  %v2780 = vld [vmem:[%s3 + $0xe8] sm:$0xff]
  %v2781 = vld [vmem:[%s3 + $0xf0] sm:$0xff]
  %v2782 = vld [vmem:[%s3 + $0xf8] sm:$0xff]
  %v2784 = vsel %vm1306, %v2744, 0
  %2786 = vmatprep.subr.mxu0 0.0
  %2787 = vmatpush1.msra.mxu0 0.0
  %2788 = vmatprep.subr.mxu0 0.0
  %2789 = vmatpush1.msra.mxu0 0.0
  %2790 = vmatprep.subr.mxu0 0.0
  %2791 = vmatpush1.msra.mxu0 0.0
  %2792 = vmatprep.subr.mxu0 0.0
  %2793 = vmatpush1.msra.mxu0 0.0
  %2794 = vmatprep.subr.mxu0 0.0
  %2795 = vmatpush1.msra.mxu0 0.0
  %2796 = vmatprep.subr.mxu0 0.0
  %2797 = vmatpush1.msra.mxu0 0.0
  %2798 = vmatprep.subr.mxu0 0.0
  %2799 = vmatpush1.msra.mxu0 0.0
  %2800 = vmatprep.subr.mxu0 0.0
  %2801 = vmatpush1.msra.mxu0 0.0
  %2802 = vmatprep.subr.mxu0 %v2780
  %2803 = vmatpush1.msra.mxu0 %v2779
  %2804 = vmatprep.subr.mxu0 %v2776
  %2805 = vmatpush1.msra.mxu0 %v2775
  %2806 = vmatprep.subr.mxu0 %v2772
  %2807 = vmatpush1.msra.mxu0 %v2771
  %2808 = vmatprep.subr.mxu0 %v2768
  %2809 = vmatpush1.msra.mxu0 %v2767
  %2810 = vmatprep.subr.mxu0 %v2764
  %2811 = vmatpush1.msra.mxu0 %v2763
  %2812 = vmatprep.subr.mxu0 %v2760
  %2813 = vmatpush1.msra.mxu0 %v2759
  %2814 = vmatprep.subr.mxu0 %v2756
  %2815 = vmatpush1.msra.mxu0 %v2755
  %2816 = vmatprep.subr.mxu0 %v2752
  %2817 = vmatpush1.msra.mxu0 %v2751
  %2818 = vmatprep.subr.mxu0 0.0
  %2819 = vmatpush2.msra.mxu0 0.0
  %2820 = vmatprep.subr.mxu0 0.0
  %2821 = vmatpush2.msra.mxu0 0.0
  %2822 = vmatprep.subr.mxu0 0.0
  %2823 = vmatpush2.msra.mxu0 0.0
  %2824 = vmatprep.subr.mxu0 0.0
  %2825 = vmatpush2.msra.mxu0 0.0
  %2826 = vmatprep.subr.mxu0 0.0
  %2827 = vmatpush2.msra.mxu0 0.0
  %2828 = vmatprep.subr.mxu0 0.0
  %2829 = vmatpush2.msra.mxu0 0.0
  %2830 = vmatprep.subr.mxu0 0.0
  %2831 = vmatpush2.msra.mxu0 0.0
  %2832 = vmatprep.subr.mxu0 0.0
  %2833 = vmatpush2.msra.mxu0 0.0
  %2834 = vmatprep.subr.mxu0 0.0
  %2835 = vmatpush2.msra.mxu0 0.0
  %2836 = vmatprep.subr.mxu0 0.0
  %2837 = vmatpush2.msra.mxu0 0.0
  %2838 = vmatprep.subr.mxu0 0.0
  %2839 = vmatpush2.msra.mxu0 0.0
  %2840 = vmatprep.subr.mxu0 0.0
  %2841 = vmatpush2.msra.mxu0 0.0
  %2842 = vmatprep.subr.mxu0 0.0
  %2843 = vmatpush2.msra.mxu0 0.0
  %2844 = vmatprep.subr.mxu0 0.0
  %2845 = vmatpush2.msra.mxu0 0.0
  %2846 = vmatprep.subr.mxu0 0.0
  %2847 = vmatpush2.msra.mxu0 0.0
  %2848 = vmatprep.subr.mxu0 0.0
  %2849 = vmatpush2.msra.mxu0 0.0
  %2850 = vmatprep.mubr.f32.mxu0 0.0
  %2851 = vmatmul.mubr.f32.gmra.mxu0 %v2784
  %v2852 = vpop.f32.mrf.mxu0
  %v2853 = vadd.f32 0.0, %v2852
  %v2854 = vpop.f32.mrf.mxu0
  %v2855 = vadd.f32 0.0, %v2854
  %2856 = vdwg.mxu0
  %2857 = vmatprep.subr.mxu0 0.0
  %2858 = vmatpush1.msra.mxu0 0.0
  %2859 = vmatprep.subr.mxu0 0.0
  %2860 = vmatpush1.msra.mxu0 0.0
  %2861 = vmatprep.subr.mxu0 0.0
  %2862 = vmatpush1.msra.mxu0 0.0
  %2863 = vmatprep.subr.mxu0 0.0
  %2864 = vmatpush1.msra.mxu0 0.0
  %2865 = vmatprep.subr.mxu0 0.0
  %2866 = vmatpush1.msra.mxu0 0.0
  %2867 = vmatprep.subr.mxu0 0.0
  %2868 = vmatpush1.msra.mxu0 0.0
  %2869 = vmatprep.subr.mxu0 0.0
  %2870 = vmatpush1.msra.mxu0 0.0
  %2871 = vmatprep.subr.mxu0 0.0
  %2872 = vmatpush1.msra.mxu0 0.0
  %2873 = vmatprep.subr.mxu0 %v2782
  %2874 = vmatpush1.msra.mxu0 %v2781
  %2875 = vmatprep.subr.mxu0 %v2778
  %2876 = vmatpush1.msra.mxu0 %v2777
  %2877 = vmatprep.subr.mxu0 %v2774
  %2878 = vmatpush1.msra.mxu0 %v2773
  %2879 = vmatprep.subr.mxu0 %v2770
  %2880 = vmatpush1.msra.mxu0 %v2769
  %2881 = vmatprep.subr.mxu0 %v2766
  %2882 = vmatpush1.msra.mxu0 %v2765
  %2883 = vmatprep.subr.mxu0 %v2762
  %2884 = vmatpush1.msra.mxu0 %v2761
  %2885 = vmatprep.subr.mxu0 %v2758
  %2886 = vmatpush1.msra.mxu0 %v2757
  %2887 = vmatprep.subr.mxu0 %v2754
  %2888 = vmatpush1.msra.mxu0 %v2753
  %2889 = vmatprep.subr.mxu0 0.0
  %2890 = vmatpush2.msra.mxu0 0.0
  %2891 = vmatprep.subr.mxu0 0.0
  %2892 = vmatpush2.msra.mxu0 0.0
  %2893 = vmatprep.subr.mxu0 0.0
  %2894 = vmatpush2.msra.mxu0 0.0
  %2895 = vmatprep.subr.mxu0 0.0
  %2896 = vmatpush2.msra.mxu0 0.0
  %2897 = vmatprep.subr.mxu0 0.0
  %2898 = vmatpush2.msra.mxu0 0.0
  %2899 = vmatprep.subr.mxu0 0.0
  %2900 = vmatpush2.msra.mxu0 0.0
  %2901 = vmatprep.subr.mxu0 0.0
  %2902 = vmatpush2.msra.mxu0 0.0
  %2903 = vmatprep.subr.mxu0 0.0
  %2904 = vmatpush2.msra.mxu0 0.0
  %2905 = vmatprep.subr.mxu0 0.0
  %2906 = vmatpush2.msra.mxu0 0.0
  %2907 = vmatprep.subr.mxu0 0.0
  %2908 = vmatpush2.msra.mxu0 0.0
  %2909 = vmatprep.subr.mxu0 0.0
  %2910 = vmatpush2.msra.mxu0 0.0
  %2911 = vmatprep.subr.mxu0 0.0
  %2912 = vmatpush2.msra.mxu0 0.0
  %2913 = vmatprep.subr.mxu0 0.0
  %2914 = vmatpush2.msra.mxu0 0.0
  %2915 = vmatprep.subr.mxu0 0.0
  %2916 = vmatpush2.msra.mxu0 0.0
  %2917 = vmatprep.subr.mxu0 0.0
  %2918 = vmatpush2.msra.mxu0 0.0
  %2919 = vmatprep.subr.mxu0 0.0
  %2920 = vmatpush2.msra.mxu0 0.0
  %2921 = vmatprep.mubr.f32.mxu0 0.0
  %2922 = vmatmul.mubr.f32.gmra.mxu0 %v2784
  %v2923 = vpop.f32.mrf.mxu0
  %v2924 = vadd.f32 0.0, %v2923
  %v2925 = vpop.f32.mrf.mxu0
  %v2926 = vadd.f32 0.0, %v2925
  %2927 = vdwg.mxu0
  %v2928 = vadd.f32 %v2747, %v2853
  %v2929 = vadd.f32 %v2748, %v2855
  %v2930 = vadd.f32 %v2749, %v2924
  %v2931 = vadd.f32 %v2750, %v2926
  %v2932 = vxor.u32 %v2928, 2147483648
  %v2933 = vmul.f32 %v2932, 1.442695
  %v2934 = vpow.pop %v2933
  %v2935 = vadd.f32 %v2934, 1.0
  %v2936 = vrcp.pop %v2935
  %v2937 = vmul.f32 1.0, %v2936
  %v2938 = vxor.u32 %v2929, 2147483648
  %v2939 = vmul.f32 %v2938, 1.442695
  %v2940 = vpow.pop %v2939
  %v2941 = vadd.f32 %v2940, 1.0
  %v2942 = vrcp.pop %v2941
  %v2943 = vmul.f32 1.0, %v2942
  %v2944 = vtanh.pop %v2930
  %v2945 = vxor.u32 %v2931, 2147483648
  %v2946 = vmul.f32 %v2945, 1.442695
  %v2947 = vpow.pop %v2946
  %v2948 = vadd.f32 %v2947, 1.0
  %v2949 = vrcp.pop %v2948
  %v2950 = vmul.f32 1.0, %v2949
  %v2951 = vmul.f32 %v2943, %v2742
  %v2952 = vmul.f32 %v2937, %v2944
  %v2953 = vadd.f32 %v2951, %v2952
  %v2954 = vtanh.pop %v2953
  %v2955 = vmul.f32 %v2950, %v2954
  %s2956 = scalar_lea.vmem [#allocation3], 56
  %2957 = vst.msk [vmem:[%s2956] sm:$0xff] %vm1306, %v2955
  %v2958 = vld [vmem:[#allocation3] sm:$0xff]
  %v2959 = vld [vmem:[%s4] sm:$0xff]
  %v2960 = vld [vmem:[%s4 + $0x8] sm:$0xff]
  %v2961 = vld [vmem:[%s4 + $0x10] sm:$0xff]
  %v2962 = vld [vmem:[%s4 + $0x18] sm:$0xff]
  %v2963 = vld [vmem:[%s4 + $0x20] sm:$0xff]
  %v2964 = vld [vmem:[%s4 + $0x28] sm:$0xff]
  %v2965 = vld [vmem:[%s4 + $0x30] sm:$0xff]
  %v2966 = vld [vmem:[%s4 + $0x38] sm:$0xff]
  %v2967 = vld [vmem:[%s1690] sm:$0xff]
  %s2968 = scalar_lea.vmem %s4, 64
  %v2969 = vld [vmem:[%s2968] sm:$0xff]
  %v2970 = vld [vmem:[%s2968 + $0x8] sm:$0xff]
  %v2971 = vld [vmem:[%s2968 + $0x10] sm:$0xff]
  %v2972 = vld [vmem:[%s2968 + $0x18] sm:$0xff]
  %v2973 = vld [vmem:[%s2968 + $0x20] sm:$0xff]
  %v2974 = vld [vmem:[%s2968 + $0x28] sm:$0xff]
  %v2975 = vld [vmem:[%s2968 + $0x30] sm:$0xff]
  %v2976 = vld [vmem:[%s2968 + $0x38] sm:$0xff]
  %v2978 = vsel %vm1306, %v2967, 0
  %2980 = vmatprep.subr.mxu0 0.0
  %2981 = vmatpush1.msra.mxu0 0.0
  %2982 = vmatprep.subr.mxu0 0.0
  %2983 = vmatpush1.msra.mxu0 0.0
  %2984 = vmatprep.subr.mxu0 0.0
  %2985 = vmatpush1.msra.mxu0 0.0
  %2986 = vmatprep.subr.mxu0 0.0
  %2987 = vmatpush1.msra.mxu0 0.0
  %2988 = vmatprep.subr.mxu0 0.0
  %2989 = vmatpush1.msra.mxu0 0.0
  %2990 = vmatprep.subr.mxu0 0.0
  %2991 = vmatpush1.msra.mxu0 0.0
  %2992 = vmatprep.subr.mxu0 0.0
  %2993 = vmatpush1.msra.mxu0 0.0
  %2994 = vmatprep.subr.mxu0 0.0
  %2995 = vmatpush1.msra.mxu0 0.0
  %2996 = vmatprep.subr.mxu0 0.0
  %2997 = vmatpush1.msra.mxu0 %v2976
  %2998 = vmatprep.subr.mxu0 0.0
  %2999 = vmatpush1.msra.mxu0 %v2975
  %3000 = vmatprep.subr.mxu0 0.0
  %3001 = vmatpush1.msra.mxu0 %v2974
  %3002 = vmatprep.subr.mxu0 0.0
  %3003 = vmatpush1.msra.mxu0 %v2973
  %3004 = vmatprep.subr.mxu0 0.0
  %3005 = vmatpush1.msra.mxu0 %v2972
  %3006 = vmatprep.subr.mxu0 0.0
  %3007 = vmatpush1.msra.mxu0 %v2971
  %3008 = vmatprep.subr.mxu0 0.0
  %3009 = vmatpush1.msra.mxu0 %v2970
  %3010 = vmatprep.subr.mxu0 0.0
  %3011 = vmatpush1.msra.mxu0 %v2969
  %3012 = vmatprep.subr.mxu0 0.0
  %3013 = vmatpush2.msra.mxu0 0.0
  %3014 = vmatprep.subr.mxu0 0.0
  %3015 = vmatpush2.msra.mxu0 0.0
  %3016 = vmatprep.subr.mxu0 0.0
  %3017 = vmatpush2.msra.mxu0 0.0
  %3018 = vmatprep.subr.mxu0 0.0
  %3019 = vmatpush2.msra.mxu0 0.0
  %3020 = vmatprep.subr.mxu0 0.0
  %3021 = vmatpush2.msra.mxu0 0.0
  %3022 = vmatprep.subr.mxu0 0.0
  %3023 = vmatpush2.msra.mxu0 0.0
  %3024 = vmatprep.subr.mxu0 0.0
  %3025 = vmatpush2.msra.mxu0 0.0
  %3026 = vmatprep.subr.mxu0 0.0
  %3027 = vmatpush2.msra.mxu0 0.0
  %3028 = vmatprep.subr.mxu0 0.0
  %3029 = vmatpush2.msra.mxu0 0.0
  %3030 = vmatprep.subr.mxu0 0.0
  %3031 = vmatpush2.msra.mxu0 0.0
  %3032 = vmatprep.subr.mxu0 0.0
  %3033 = vmatpush2.msra.mxu0 0.0
  %3034 = vmatprep.subr.mxu0 0.0
  %3035 = vmatpush2.msra.mxu0 0.0
  %3036 = vmatprep.subr.mxu0 0.0
  %3037 = vmatpush2.msra.mxu0 0.0
  %3038 = vmatprep.subr.mxu0 0.0
  %3039 = vmatpush2.msra.mxu0 0.0
  %3040 = vmatprep.subr.mxu0 0.0
  %3041 = vmatpush2.msra.mxu0 0.0
  %3042 = vmatprep.subr.mxu0 0.0
  %3043 = vmatpush2.msra.mxu0 0.0
  %3044 = vmatprep.mubr.f32.mxu0 0.0
  %3045 = vmatmul.mubr.f32.gmra.mxu0 %v2978
  %v3046 = vpop.f32.mrf.mxu0
  %v3047 = vadd.f32 0.0, %v3046
  %v3048 = vpop.f32.mrf.mxu0
  %3049 = vdwg.mxu0
  %v3051 = vsel %vm1306, %v2958, 0
  %3053 = vmatprep.subr.mxu0 0.0
  %3054 = vmatpush1.msra.mxu0 0.0
  %3055 = vmatprep.subr.mxu0 0.0
  %3056 = vmatpush1.msra.mxu0 0.0
  %3057 = vmatprep.subr.mxu0 0.0
  %3058 = vmatpush1.msra.mxu0 0.0
  %3059 = vmatprep.subr.mxu0 0.0
  %3060 = vmatpush1.msra.mxu0 0.0
  %3061 = vmatprep.subr.mxu0 0.0
  %3062 = vmatpush1.msra.mxu0 0.0
  %3063 = vmatprep.subr.mxu0 0.0
  %3064 = vmatpush1.msra.mxu0 0.0
  %3065 = vmatprep.subr.mxu0 0.0
  %3066 = vmatpush1.msra.mxu0 0.0
  %3067 = vmatprep.subr.mxu0 0.0
  %3068 = vmatpush1.msra.mxu0 0.0
  %3069 = vmatprep.subr.mxu0 0.0
  %3070 = vmatpush1.msra.mxu0 %v2966
  %3071 = vmatprep.subr.mxu0 0.0
  %3072 = vmatpush1.msra.mxu0 %v2965
  %3073 = vmatprep.subr.mxu0 0.0
  %3074 = vmatpush1.msra.mxu0 %v2964
  %3075 = vmatprep.subr.mxu0 0.0
  %3076 = vmatpush1.msra.mxu0 %v2963
  %3077 = vmatprep.subr.mxu0 0.0
  %3078 = vmatpush1.msra.mxu0 %v2962
  %3079 = vmatprep.subr.mxu0 0.0
  %3080 = vmatpush1.msra.mxu0 %v2961
  %3081 = vmatprep.subr.mxu0 0.0
  %3082 = vmatpush1.msra.mxu0 %v2960
  %3083 = vmatprep.subr.mxu0 0.0
  %3084 = vmatpush1.msra.mxu0 %v2959
  %3085 = vmatprep.subr.mxu0 0.0
  %3086 = vmatpush2.msra.mxu0 0.0
  %3087 = vmatprep.subr.mxu0 0.0
  %3088 = vmatpush2.msra.mxu0 0.0
  %3089 = vmatprep.subr.mxu0 0.0
  %3090 = vmatpush2.msra.mxu0 0.0
  %3091 = vmatprep.subr.mxu0 0.0
  %3092 = vmatpush2.msra.mxu0 0.0
  %3093 = vmatprep.subr.mxu0 0.0
  %3094 = vmatpush2.msra.mxu0 0.0
  %3095 = vmatprep.subr.mxu0 0.0
  %3096 = vmatpush2.msra.mxu0 0.0
  %3097 = vmatprep.subr.mxu0 0.0
  %3098 = vmatpush2.msra.mxu0 0.0
  %3099 = vmatprep.subr.mxu0 0.0
  %3100 = vmatpush2.msra.mxu0 0.0
  %3101 = vmatprep.subr.mxu0 0.0
  %3102 = vmatpush2.msra.mxu0 0.0
  %3103 = vmatprep.subr.mxu0 0.0
  %3104 = vmatpush2.msra.mxu0 0.0
  %3105 = vmatprep.subr.mxu0 0.0
  %3106 = vmatpush2.msra.mxu0 0.0
  %3107 = vmatprep.subr.mxu0 0.0
  %3108 = vmatpush2.msra.mxu0 0.0
  %3109 = vmatprep.subr.mxu0 0.0
  %3110 = vmatpush2.msra.mxu0 0.0
  %3111 = vmatprep.subr.mxu0 0.0
  %3112 = vmatpush2.msra.mxu0 0.0
  %3113 = vmatprep.subr.mxu0 0.0
  %3114 = vmatpush2.msra.mxu0 0.0
  %3115 = vmatprep.subr.mxu0 0.0
  %3116 = vmatpush2.msra.mxu0 0.0
  %3117 = vmatprep.mubr.f32.mxu0 0.0
  %3118 = vmatmul.mubr.f32.gmra.mxu0 %v3051
  %v3119 = vpop.f32.mrf.mxu0
  %v3120 = vadd.f32 %v3047, %v3119
  %v3121 = vpop.f32.mrf.mxu0
  %3122 = vdwg.mxu0
  %v3123 = vld [vmem:[%s1901] sm:$0xff]
  %s3124 = scalar_lea.vmem %s4, 128
  %v3125 = vld [vmem:[%s3124] sm:$0xff]
  %v3126 = vld [vmem:[%s3124 + $0x8] sm:$0xff]
  %v3127 = vld [vmem:[%s3124 + $0x10] sm:$0xff]
  %v3128 = vld [vmem:[%s3124 + $0x18] sm:$0xff]
  %v3129 = vld [vmem:[%s3124 + $0x20] sm:$0xff]
  %v3130 = vld [vmem:[%s3124 + $0x28] sm:$0xff]
  %v3131 = vld [vmem:[%s3124 + $0x30] sm:$0xff]
  %v3132 = vld [vmem:[%s3124 + $0x38] sm:$0xff]
  %v3134 = vsel %vm1306, %v3123, 0
  %3136 = vmatprep.subr.mxu0 0.0
  %3137 = vmatpush1.msra.mxu0 0.0
  %3138 = vmatprep.subr.mxu0 0.0
  %3139 = vmatpush1.msra.mxu0 0.0
  %3140 = vmatprep.subr.mxu0 0.0
  %3141 = vmatpush1.msra.mxu0 0.0
  %3142 = vmatprep.subr.mxu0 0.0
  %3143 = vmatpush1.msra.mxu0 0.0
  %3144 = vmatprep.subr.mxu0 0.0
  %3145 = vmatpush1.msra.mxu0 0.0
  %3146 = vmatprep.subr.mxu0 0.0
  %3147 = vmatpush1.msra.mxu0 0.0
  %3148 = vmatprep.subr.mxu0 0.0
  %3149 = vmatpush1.msra.mxu0 0.0
  %3150 = vmatprep.subr.mxu0 0.0
  %3151 = vmatpush1.msra.mxu0 0.0
  %3152 = vmatprep.subr.mxu0 0.0
  %3153 = vmatpush1.msra.mxu0 %v3132
  %3154 = vmatprep.subr.mxu0 0.0
  %3155 = vmatpush1.msra.mxu0 %v3131
  %3156 = vmatprep.subr.mxu0 0.0
  %3157 = vmatpush1.msra.mxu0 %v3130
  %3158 = vmatprep.subr.mxu0 0.0
  %3159 = vmatpush1.msra.mxu0 %v3129
  %3160 = vmatprep.subr.mxu0 0.0
  %3161 = vmatpush1.msra.mxu0 %v3128
  %3162 = vmatprep.subr.mxu0 0.0
  %3163 = vmatpush1.msra.mxu0 %v3127
  %3164 = vmatprep.subr.mxu0 0.0
  %3165 = vmatpush1.msra.mxu0 %v3126
  %3166 = vmatprep.subr.mxu0 0.0
  %3167 = vmatpush1.msra.mxu0 %v3125
  %3168 = vmatprep.subr.mxu0 0.0
  %3169 = vmatpush2.msra.mxu0 0.0
  %3170 = vmatprep.subr.mxu0 0.0
  %3171 = vmatpush2.msra.mxu0 0.0
  %3172 = vmatprep.subr.mxu0 0.0
  %3173 = vmatpush2.msra.mxu0 0.0
  %3174 = vmatprep.subr.mxu0 0.0
  %3175 = vmatpush2.msra.mxu0 0.0
  %3176 = vmatprep.subr.mxu0 0.0
  %3177 = vmatpush2.msra.mxu0 0.0
  %3178 = vmatprep.subr.mxu0 0.0
  %3179 = vmatpush2.msra.mxu0 0.0
  %3180 = vmatprep.subr.mxu0 0.0
  %3181 = vmatpush2.msra.mxu0 0.0
  %3182 = vmatprep.subr.mxu0 0.0
  %3183 = vmatpush2.msra.mxu0 0.0
  %3184 = vmatprep.subr.mxu0 0.0
  %3185 = vmatpush2.msra.mxu0 0.0
  %3186 = vmatprep.subr.mxu0 0.0
  %3187 = vmatpush2.msra.mxu0 0.0
  %3188 = vmatprep.subr.mxu0 0.0
  %3189 = vmatpush2.msra.mxu0 0.0
  %3190 = vmatprep.subr.mxu0 0.0
  %3191 = vmatpush2.msra.mxu0 0.0
  %3192 = vmatprep.subr.mxu0 0.0
  %3193 = vmatpush2.msra.mxu0 0.0
  %3194 = vmatprep.subr.mxu0 0.0
  %3195 = vmatpush2.msra.mxu0 0.0
  %3196 = vmatprep.subr.mxu0 0.0
  %3197 = vmatpush2.msra.mxu0 0.0
  %3198 = vmatprep.subr.mxu0 0.0
  %3199 = vmatpush2.msra.mxu0 0.0
  %3200 = vmatprep.mubr.f32.mxu0 0.0
  %3201 = vmatmul.mubr.f32.gmra.mxu0 %v3134
  %v3202 = vpop.f32.mrf.mxu0
  %v3203 = vadd.f32 0.0, %v3202
  %v3204 = vpop.f32.mrf.mxu0
  %3205 = vdwg.mxu0
  %v3206 = vadd.f32 %v3120, %v3203
  %v3207 = vld [vmem:[%s2112] sm:$0xff]
  %s3208 = scalar_lea.vmem %s4, 192
  %v3209 = vld [vmem:[%s3208] sm:$0xff]
  %v3210 = vld [vmem:[%s3208 + $0x8] sm:$0xff]
  %v3211 = vld [vmem:[%s3208 + $0x10] sm:$0xff]
  %v3212 = vld [vmem:[%s3208 + $0x18] sm:$0xff]
  %v3213 = vld [vmem:[%s3208 + $0x20] sm:$0xff]
  %v3214 = vld [vmem:[%s3208 + $0x28] sm:$0xff]
  %v3215 = vld [vmem:[%s3208 + $0x30] sm:$0xff]
  %v3216 = vld [vmem:[%s3208 + $0x38] sm:$0xff]
  %v3218 = vsel %vm1306, %v3207, 0
  %3220 = vmatprep.subr.mxu0 0.0
  %3221 = vmatpush1.msra.mxu0 0.0
  %3222 = vmatprep.subr.mxu0 0.0
  %3223 = vmatpush1.msra.mxu0 0.0
  %3224 = vmatprep.subr.mxu0 0.0
  %3225 = vmatpush1.msra.mxu0 0.0
  %3226 = vmatprep.subr.mxu0 0.0
  %3227 = vmatpush1.msra.mxu0 0.0
  %3228 = vmatprep.subr.mxu0 0.0
  %3229 = vmatpush1.msra.mxu0 0.0
  %3230 = vmatprep.subr.mxu0 0.0
  %3231 = vmatpush1.msra.mxu0 0.0
  %3232 = vmatprep.subr.mxu0 0.0
  %3233 = vmatpush1.msra.mxu0 0.0
  %3234 = vmatprep.subr.mxu0 0.0
  %3235 = vmatpush1.msra.mxu0 0.0
  %3236 = vmatprep.subr.mxu0 0.0
  %3237 = vmatpush1.msra.mxu0 %v3216
  %3238 = vmatprep.subr.mxu0 0.0
  %3239 = vmatpush1.msra.mxu0 %v3215
  %3240 = vmatprep.subr.mxu0 0.0
  %3241 = vmatpush1.msra.mxu0 %v3214
  %3242 = vmatprep.subr.mxu0 0.0
  %3243 = vmatpush1.msra.mxu0 %v3213
  %3244 = vmatprep.subr.mxu0 0.0
  %3245 = vmatpush1.msra.mxu0 %v3212
  %3246 = vmatprep.subr.mxu0 0.0
  %3247 = vmatpush1.msra.mxu0 %v3211
  %3248 = vmatprep.subr.mxu0 0.0
  %3249 = vmatpush1.msra.mxu0 %v3210
  %3250 = vmatprep.subr.mxu0 0.0
  %3251 = vmatpush1.msra.mxu0 %v3209
  %3252 = vmatprep.subr.mxu0 0.0
  %3253 = vmatpush2.msra.mxu0 0.0
  %3254 = vmatprep.subr.mxu0 0.0
  %3255 = vmatpush2.msra.mxu0 0.0
  %3256 = vmatprep.subr.mxu0 0.0
  %3257 = vmatpush2.msra.mxu0 0.0
  %3258 = vmatprep.subr.mxu0 0.0
  %3259 = vmatpush2.msra.mxu0 0.0
  %3260 = vmatprep.subr.mxu0 0.0
  %3261 = vmatpush2.msra.mxu0 0.0
  %3262 = vmatprep.subr.mxu0 0.0
  %3263 = vmatpush2.msra.mxu0 0.0
  %3264 = vmatprep.subr.mxu0 0.0
  %3265 = vmatpush2.msra.mxu0 0.0
  %3266 = vmatprep.subr.mxu0 0.0
  %3267 = vmatpush2.msra.mxu0 0.0
  %3268 = vmatprep.subr.mxu0 0.0
  %3269 = vmatpush2.msra.mxu0 0.0
  %3270 = vmatprep.subr.mxu0 0.0
  %3271 = vmatpush2.msra.mxu0 0.0
  %3272 = vmatprep.subr.mxu0 0.0
  %3273 = vmatpush2.msra.mxu0 0.0
  %3274 = vmatprep.subr.mxu0 0.0
  %3275 = vmatpush2.msra.mxu0 0.0
  %3276 = vmatprep.subr.mxu0 0.0
  %3277 = vmatpush2.msra.mxu0 0.0
  %3278 = vmatprep.subr.mxu0 0.0
  %3279 = vmatpush2.msra.mxu0 0.0
  %3280 = vmatprep.subr.mxu0 0.0
  %3281 = vmatpush2.msra.mxu0 0.0
  %3282 = vmatprep.subr.mxu0 0.0
  %3283 = vmatpush2.msra.mxu0 0.0
  %3284 = vmatprep.mubr.f32.mxu0 0.0
  %3285 = vmatmul.mubr.f32.gmra.mxu0 %v3218
  %v3286 = vpop.f32.mrf.mxu0
  %v3287 = vadd.f32 0.0, %v3286
  %v3288 = vpop.f32.mrf.mxu0
  %3289 = vdwg.mxu0
  %v3290 = vadd.f32 %v3206, %v3287
  %v3291 = vld [vmem:[%s2323] sm:$0xff]
  %s3292 = scalar_lea.vmem %s4, 256
  %v3293 = vld [vmem:[%s3292] sm:$0xff]
  %v3294 = vld [vmem:[%s3292 + $0x8] sm:$0xff]
  %v3295 = vld [vmem:[%s3292 + $0x10] sm:$0xff]
  %v3296 = vld [vmem:[%s3292 + $0x18] sm:$0xff]
  %v3297 = vld [vmem:[%s3292 + $0x20] sm:$0xff]
  %v3298 = vld [vmem:[%s3292 + $0x28] sm:$0xff]
  %v3299 = vld [vmem:[%s3292 + $0x30] sm:$0xff]
  %v3300 = vld [vmem:[%s3292 + $0x38] sm:$0xff]
  %v3302 = vsel %vm1306, %v3291, 0
  %3304 = vmatprep.subr.mxu0 0.0
  %3305 = vmatpush1.msra.mxu0 0.0
  %3306 = vmatprep.subr.mxu0 0.0
  %3307 = vmatpush1.msra.mxu0 0.0
  %3308 = vmatprep.subr.mxu0 0.0
  %3309 = vmatpush1.msra.mxu0 0.0
  %3310 = vmatprep.subr.mxu0 0.0
  %3311 = vmatpush1.msra.mxu0 0.0
  %3312 = vmatprep.subr.mxu0 0.0
  %3313 = vmatpush1.msra.mxu0 0.0
  %3314 = vmatprep.subr.mxu0 0.0
  %3315 = vmatpush1.msra.mxu0 0.0
  %3316 = vmatprep.subr.mxu0 0.0
  %3317 = vmatpush1.msra.mxu0 0.0
  %3318 = vmatprep.subr.mxu0 0.0
  %3319 = vmatpush1.msra.mxu0 0.0
  %3320 = vmatprep.subr.mxu0 0.0
  %3321 = vmatpush1.msra.mxu0 %v3300
  %3322 = vmatprep.subr.mxu0 0.0
  %3323 = vmatpush1.msra.mxu0 %v3299
  %3324 = vmatprep.subr.mxu0 0.0
  %3325 = vmatpush1.msra.mxu0 %v3298
  %3326 = vmatprep.subr.mxu0 0.0
  %3327 = vmatpush1.msra.mxu0 %v3297
  %3328 = vmatprep.subr.mxu0 0.0
  %3329 = vmatpush1.msra.mxu0 %v3296
  %3330 = vmatprep.subr.mxu0 0.0
  %3331 = vmatpush1.msra.mxu0 %v3295
  %3332 = vmatprep.subr.mxu0 0.0
  %3333 = vmatpush1.msra.mxu0 %v3294
  %3334 = vmatprep.subr.mxu0 0.0
  %3335 = vmatpush1.msra.mxu0 %v3293
  %3336 = vmatprep.subr.mxu0 0.0
  %3337 = vmatpush2.msra.mxu0 0.0
  %3338 = vmatprep.subr.mxu0 0.0
  %3339 = vmatpush2.msra.mxu0 0.0
  %3340 = vmatprep.subr.mxu0 0.0
  %3341 = vmatpush2.msra.mxu0 0.0
  %3342 = vmatprep.subr.mxu0 0.0
  %3343 = vmatpush2.msra.mxu0 0.0
  %3344 = vmatprep.subr.mxu0 0.0
  %3345 = vmatpush2.msra.mxu0 0.0
  %3346 = vmatprep.subr.mxu0 0.0
  %3347 = vmatpush2.msra.mxu0 0.0
  %3348 = vmatprep.subr.mxu0 0.0
  %3349 = vmatpush2.msra.mxu0 0.0
  %3350 = vmatprep.subr.mxu0 0.0
  %3351 = vmatpush2.msra.mxu0 0.0
  %3352 = vmatprep.subr.mxu0 0.0
  %3353 = vmatpush2.msra.mxu0 0.0
  %3354 = vmatprep.subr.mxu0 0.0
  %3355 = vmatpush2.msra.mxu0 0.0
  %3356 = vmatprep.subr.mxu0 0.0
  %3357 = vmatpush2.msra.mxu0 0.0
  %3358 = vmatprep.subr.mxu0 0.0
  %3359 = vmatpush2.msra.mxu0 0.0
  %3360 = vmatprep.subr.mxu0 0.0
  %3361 = vmatpush2.msra.mxu0 0.0
  %3362 = vmatprep.subr.mxu0 0.0
  %3363 = vmatpush2.msra.mxu0 0.0
  %3364 = vmatprep.subr.mxu0 0.0
  %3365 = vmatpush2.msra.mxu0 0.0
  %3366 = vmatprep.subr.mxu0 0.0
  %3367 = vmatpush2.msra.mxu0 0.0
  %3368 = vmatprep.mubr.f32.mxu0 0.0
  %3369 = vmatmul.mubr.f32.gmra.mxu0 %v3302
  %v3370 = vpop.f32.mrf.mxu0
  %v3371 = vadd.f32 0.0, %v3370
  %v3372 = vpop.f32.mrf.mxu0
  %3373 = vdwg.mxu0
  %v3374 = vadd.f32 %v3290, %v3371
  %v3375 = vld [vmem:[%s2534] sm:$0xff]
  %s3376 = scalar_lea.vmem %s4, 320
  %v3377 = vld [vmem:[%s3376] sm:$0xff]
  %v3378 = vld [vmem:[%s3376 + $0x8] sm:$0xff]
  %v3379 = vld [vmem:[%s3376 + $0x10] sm:$0xff]
  %v3380 = vld [vmem:[%s3376 + $0x18] sm:$0xff]
  %v3381 = vld [vmem:[%s3376 + $0x20] sm:$0xff]
  %v3382 = vld [vmem:[%s3376 + $0x28] sm:$0xff]
  %v3383 = vld [vmem:[%s3376 + $0x30] sm:$0xff]
  %v3384 = vld [vmem:[%s3376 + $0x38] sm:$0xff]
  %v3386 = vsel %vm1306, %v3375, 0
  %3388 = vmatprep.subr.mxu0 0.0
  %3389 = vmatpush1.msra.mxu0 0.0
  %3390 = vmatprep.subr.mxu0 0.0
  %3391 = vmatpush1.msra.mxu0 0.0
  %3392 = vmatprep.subr.mxu0 0.0
  %3393 = vmatpush1.msra.mxu0 0.0
  %3394 = vmatprep.subr.mxu0 0.0
  %3395 = vmatpush1.msra.mxu0 0.0
  %3396 = vmatprep.subr.mxu0 0.0
  %3397 = vmatpush1.msra.mxu0 0.0
  %3398 = vmatprep.subr.mxu0 0.0
  %3399 = vmatpush1.msra.mxu0 0.0
  %3400 = vmatprep.subr.mxu0 0.0
  %3401 = vmatpush1.msra.mxu0 0.0
  %3402 = vmatprep.subr.mxu0 0.0
  %3403 = vmatpush1.msra.mxu0 0.0
  %3404 = vmatprep.subr.mxu0 0.0
  %3405 = vmatpush1.msra.mxu0 %v3384
  %3406 = vmatprep.subr.mxu0 0.0
  %3407 = vmatpush1.msra.mxu0 %v3383
  %3408 = vmatprep.subr.mxu0 0.0
  %3409 = vmatpush1.msra.mxu0 %v3382
  %3410 = vmatprep.subr.mxu0 0.0
  %3411 = vmatpush1.msra.mxu0 %v3381
  %3412 = vmatprep.subr.mxu0 0.0
  %3413 = vmatpush1.msra.mxu0 %v3380
  %3414 = vmatprep.subr.mxu0 0.0
  %3415 = vmatpush1.msra.mxu0 %v3379
  %3416 = vmatprep.subr.mxu0 0.0
  %3417 = vmatpush1.msra.mxu0 %v3378
  %3418 = vmatprep.subr.mxu0 0.0
  %3419 = vmatpush1.msra.mxu0 %v3377
  %3420 = vmatprep.subr.mxu0 0.0
  %3421 = vmatpush2.msra.mxu0 0.0
  %3422 = vmatprep.subr.mxu0 0.0
  %3423 = vmatpush2.msra.mxu0 0.0
  %3424 = vmatprep.subr.mxu0 0.0
  %3425 = vmatpush2.msra.mxu0 0.0
  %3426 = vmatprep.subr.mxu0 0.0
  %3427 = vmatpush2.msra.mxu0 0.0
  %3428 = vmatprep.subr.mxu0 0.0
  %3429 = vmatpush2.msra.mxu0 0.0
  %3430 = vmatprep.subr.mxu0 0.0
  %3431 = vmatpush2.msra.mxu0 0.0
  %3432 = vmatprep.subr.mxu0 0.0
  %3433 = vmatpush2.msra.mxu0 0.0
  %3434 = vmatprep.subr.mxu0 0.0
  %3435 = vmatpush2.msra.mxu0 0.0
  %3436 = vmatprep.subr.mxu0 0.0
  %3437 = vmatpush2.msra.mxu0 0.0
  %3438 = vmatprep.subr.mxu0 0.0
  %3439 = vmatpush2.msra.mxu0 0.0
  %3440 = vmatprep.subr.mxu0 0.0
  %3441 = vmatpush2.msra.mxu0 0.0
  %3442 = vmatprep.subr.mxu0 0.0
  %3443 = vmatpush2.msra.mxu0 0.0
  %3444 = vmatprep.subr.mxu0 0.0
  %3445 = vmatpush2.msra.mxu0 0.0
  %3446 = vmatprep.subr.mxu0 0.0
  %3447 = vmatpush2.msra.mxu0 0.0
  %3448 = vmatprep.subr.mxu0 0.0
  %3449 = vmatpush2.msra.mxu0 0.0
  %3450 = vmatprep.subr.mxu0 0.0
  %3451 = vmatpush2.msra.mxu0 0.0
  %3452 = vmatprep.mubr.f32.mxu0 0.0
  %3453 = vmatmul.mubr.f32.gmra.mxu0 %v3386
  %v3454 = vpop.f32.mrf.mxu0
  %v3455 = vadd.f32 0.0, %v3454
  %v3456 = vpop.f32.mrf.mxu0
  %3457 = vdwg.mxu0
  %v3458 = vadd.f32 %v3374, %v3455
  %v3459 = vld [vmem:[%s2745] sm:$0xff]
  %s3460 = scalar_lea.vmem %s4, 384
  %v3461 = vld [vmem:[%s3460] sm:$0xff]
  %v3462 = vld [vmem:[%s3460 + $0x8] sm:$0xff]
  %v3463 = vld [vmem:[%s3460 + $0x10] sm:$0xff]
  %v3464 = vld [vmem:[%s3460 + $0x18] sm:$0xff]
  %v3465 = vld [vmem:[%s3460 + $0x20] sm:$0xff]
  %v3466 = vld [vmem:[%s3460 + $0x28] sm:$0xff]
  %v3467 = vld [vmem:[%s3460 + $0x30] sm:$0xff]
  %v3468 = vld [vmem:[%s3460 + $0x38] sm:$0xff]
  %v3470 = vsel %vm1306, %v3459, 0
  %3472 = vmatprep.subr.mxu0 0.0
  %3473 = vmatpush1.msra.mxu0 0.0
  %3474 = vmatprep.subr.mxu0 0.0
  %3475 = vmatpush1.msra.mxu0 0.0
  %3476 = vmatprep.subr.mxu0 0.0
  %3477 = vmatpush1.msra.mxu0 0.0
  %3478 = vmatprep.subr.mxu0 0.0
  %3479 = vmatpush1.msra.mxu0 0.0
  %3480 = vmatprep.subr.mxu0 0.0
  %3481 = vmatpush1.msra.mxu0 0.0
  %3482 = vmatprep.subr.mxu0 0.0
  %3483 = vmatpush1.msra.mxu0 0.0
  %3484 = vmatprep.subr.mxu0 0.0
  %3485 = vmatpush1.msra.mxu0 0.0
  %3486 = vmatprep.subr.mxu0 0.0
  %3487 = vmatpush1.msra.mxu0 0.0
  %3488 = vmatprep.subr.mxu0 0.0
  %3489 = vmatpush1.msra.mxu0 %v3468
  %3490 = vmatprep.subr.mxu0 0.0
  %3491 = vmatpush1.msra.mxu0 %v3467
  %3492 = vmatprep.subr.mxu0 0.0
  %3493 = vmatpush1.msra.mxu0 %v3466
  %3494 = vmatprep.subr.mxu0 0.0
  %3495 = vmatpush1.msra.mxu0 %v3465
  %3496 = vmatprep.subr.mxu0 0.0
  %3497 = vmatpush1.msra.mxu0 %v3464
  %3498 = vmatprep.subr.mxu0 0.0
  %3499 = vmatpush1.msra.mxu0 %v3463
  %3500 = vmatprep.subr.mxu0 0.0
  %3501 = vmatpush1.msra.mxu0 %v3462
  %3502 = vmatprep.subr.mxu0 0.0
  %3503 = vmatpush1.msra.mxu0 %v3461
  %3504 = vmatprep.subr.mxu0 0.0
  %3505 = vmatpush2.msra.mxu0 0.0
  %3506 = vmatprep.subr.mxu0 0.0
  %3507 = vmatpush2.msra.mxu0 0.0
  %3508 = vmatprep.subr.mxu0 0.0
  %3509 = vmatpush2.msra.mxu0 0.0
  %3510 = vmatprep.subr.mxu0 0.0
  %3511 = vmatpush2.msra.mxu0 0.0
  %3512 = vmatprep.subr.mxu0 0.0
  %3513 = vmatpush2.msra.mxu0 0.0
  %3514 = vmatprep.subr.mxu0 0.0
  %3515 = vmatpush2.msra.mxu0 0.0
  %3516 = vmatprep.subr.mxu0 0.0
  %3517 = vmatpush2.msra.mxu0 0.0
  %3518 = vmatprep.subr.mxu0 0.0
  %3519 = vmatpush2.msra.mxu0 0.0
  %3520 = vmatprep.subr.mxu0 0.0
  %3521 = vmatpush2.msra.mxu0 0.0
  %3522 = vmatprep.subr.mxu0 0.0
  %3523 = vmatpush2.msra.mxu0 0.0
  %3524 = vmatprep.subr.mxu0 0.0
  %3525 = vmatpush2.msra.mxu0 0.0
  %3526 = vmatprep.subr.mxu0 0.0
  %3527 = vmatpush2.msra.mxu0 0.0
  %3528 = vmatprep.subr.mxu0 0.0
  %3529 = vmatpush2.msra.mxu0 0.0
  %3530 = vmatprep.subr.mxu0 0.0
  %3531 = vmatpush2.msra.mxu0 0.0
  %3532 = vmatprep.subr.mxu0 0.0
  %3533 = vmatpush2.msra.mxu0 0.0
  %3534 = vmatprep.subr.mxu0 0.0
  %3535 = vmatpush2.msra.mxu0 0.0
  %3536 = vmatprep.mubr.f32.mxu0 0.0
  %3537 = vmatmul.mubr.f32.gmra.mxu0 %v3470
  %v3538 = vpop.f32.mrf.mxu0
  %v3539 = vadd.f32 0.0, %v3538
  %v3540 = vpop.f32.mrf.mxu0
  %3541 = vdwg.mxu0
  %v3542 = vadd.f32 %v3458, %v3539
  %v3543 = vld [vmem:[%s2956] sm:$0xff]
  %s3544 = scalar_lea.vmem %s4, 448
  %v3545 = vld [vmem:[%s3544] sm:$0xff]
  %v3546 = vld [vmem:[%s3544 + $0x8] sm:$0xff]
  %v3547 = vld [vmem:[%s3544 + $0x10] sm:$0xff]
  %v3548 = vld [vmem:[%s3544 + $0x18] sm:$0xff]
  %v3549 = vld [vmem:[%s3544 + $0x20] sm:$0xff]
  %v3550 = vld [vmem:[%s3544 + $0x28] sm:$0xff]
  %v3551 = vld [vmem:[%s3544 + $0x30] sm:$0xff]
  %v3552 = vld [vmem:[%s3544 + $0x38] sm:$0xff]
  %v3554 = vsel %vm1306, %v3543, 0
  %3556 = vmatprep.subr.mxu0 0.0
  %3557 = vmatpush1.msra.mxu0 0.0
  %3558 = vmatprep.subr.mxu0 0.0
  %3559 = vmatpush1.msra.mxu0 0.0
  %3560 = vmatprep.subr.mxu0 0.0
  %3561 = vmatpush1.msra.mxu0 0.0
  %3562 = vmatprep.subr.mxu0 0.0
  %3563 = vmatpush1.msra.mxu0 0.0
  %3564 = vmatprep.subr.mxu0 0.0
  %3565 = vmatpush1.msra.mxu0 0.0
  %3566 = vmatprep.subr.mxu0 0.0
  %3567 = vmatpush1.msra.mxu0 0.0
  %3568 = vmatprep.subr.mxu0 0.0
  %3569 = vmatpush1.msra.mxu0 0.0
  %3570 = vmatprep.subr.mxu0 0.0
  %3571 = vmatpush1.msra.mxu0 0.0
  %3572 = vmatprep.subr.mxu0 0.0
  %3573 = vmatpush1.msra.mxu0 %v3552
  %3574 = vmatprep.subr.mxu0 0.0
  %3575 = vmatpush1.msra.mxu0 %v3551
  %3576 = vmatprep.subr.mxu0 0.0
  %3577 = vmatpush1.msra.mxu0 %v3550
  %3578 = vmatprep.subr.mxu0 0.0
  %3579 = vmatpush1.msra.mxu0 %v3549
  %3580 = vmatprep.subr.mxu0 0.0
  %3581 = vmatpush1.msra.mxu0 %v3548
  %3582 = vmatprep.subr.mxu0 0.0
  %3583 = vmatpush1.msra.mxu0 %v3547
  %3584 = vmatprep.subr.mxu0 0.0
  %3585 = vmatpush1.msra.mxu0 %v3546
  %3586 = vmatprep.subr.mxu0 0.0
  %3587 = vmatpush1.msra.mxu0 %v3545
  %3588 = vmatprep.subr.mxu0 0.0
  %3589 = vmatpush2.msra.mxu0 0.0
  %3590 = vmatprep.subr.mxu0 0.0
  %3591 = vmatpush2.msra.mxu0 0.0
  %3592 = vmatprep.subr.mxu0 0.0
  %3593 = vmatpush2.msra.mxu0 0.0
  %3594 = vmatprep.subr.mxu0 0.0
  %3595 = vmatpush2.msra.mxu0 0.0
  %3596 = vmatprep.subr.mxu0 0.0
  %3597 = vmatpush2.msra.mxu0 0.0
  %3598 = vmatprep.subr.mxu0 0.0
  %3599 = vmatpush2.msra.mxu0 0.0
  %3600 = vmatprep.subr.mxu0 0.0
  %3601 = vmatpush2.msra.mxu0 0.0
  %3602 = vmatprep.subr.mxu0 0.0
  %3603 = vmatpush2.msra.mxu0 0.0
  %3604 = vmatprep.subr.mxu0 0.0
  %3605 = vmatpush2.msra.mxu0 0.0
  %3606 = vmatprep.subr.mxu0 0.0
  %3607 = vmatpush2.msra.mxu0 0.0
  %3608 = vmatprep.subr.mxu0 0.0
  %3609 = vmatpush2.msra.mxu0 0.0
  %3610 = vmatprep.subr.mxu0 0.0
  %3611 = vmatpush2.msra.mxu0 0.0
  %3612 = vmatprep.subr.mxu0 0.0
  %3613 = vmatpush2.msra.mxu0 0.0
  %3614 = vmatprep.subr.mxu0 0.0
  %3615 = vmatpush2.msra.mxu0 0.0
  %3616 = vmatprep.subr.mxu0 0.0
  %3617 = vmatpush2.msra.mxu0 0.0
  %3618 = vmatprep.subr.mxu0 0.0
  %3619 = vmatpush2.msra.mxu0 0.0
  %3620 = vmatprep.mubr.f32.mxu0 0.0
  %3621 = vmatmul.mubr.f32.gmra.mxu0 %v3554
  %v3622 = vpop.f32.mrf.mxu0
  %v3623 = vadd.f32 0.0, %v3622
  %v3624 = vpop.f32.mrf.mxu0
  %3625 = vdwg.mxu0
  %v3626 = vadd.f32 %v3542, %v3623
  %v3627 = vld [vmem:[%s5] sm:$0x1]
  %v3629 = vlaneseq
  %v3630 = vshrl.u32 %v3629, 7
  %v3631 = vsub.s32 0, %v3630
  %v3632 = vrot.slane %v3627, %v3631
  %v3634 = vadd.f32 %v3626, %v3632
  %vm3635 = vcmp.ge.f32.partialorder %v3634, 0.0
  %v3636 = vmul.f32 %v3634, 0.01
  %v3637 = vsel %vm3635, %v3634, %v3636
  %v3638 = vld [vmem:[%s6] sm:$0xff]
  %v3639 = vld [vmem:[%s6 + $0x8] sm:$0xff]
  %v3640 = vld [vmem:[%s6 + $0x10] sm:$0xff]
  %v3641 = vld [vmem:[%s6 + $0x18] sm:$0xff]
  %v3642 = vld [vmem:[%s6 + $0x20] sm:$0xff]
  %v3643 = vld [vmem:[%s6 + $0x28] sm:$0xff]
  %v3644 = vld [vmem:[%s6 + $0x30] sm:$0xff]
  %v3645 = vld [vmem:[%s6 + $0x38] sm:$0xff]
  %v3646 = vld [vmem:[%s7] sm:$0x1]
  %v3648 = vlaneseq
  %v3649 = vshrl.u32 %v3648, 7
  %v3650 = vsub.s32 0, %v3649
  %v3651 = vrot.slane %v3646, %v3650
  %v3654 = vsel %vm1306, %v3637, 0
  %3656 = vmatprep.subr.mxu0 0.0
  %3657 = vmatpush1.msra.mxu0 0.0
  %3658 = vmatprep.subr.mxu0 0.0
  %3659 = vmatpush1.msra.mxu0 0.0
  %3660 = vmatprep.subr.mxu0 0.0
  %3661 = vmatpush1.msra.mxu0 0.0
  %3662 = vmatprep.subr.mxu0 0.0
  %3663 = vmatpush1.msra.mxu0 0.0
  %3664 = vmatprep.subr.mxu0 0.0
  %3665 = vmatpush1.msra.mxu0 0.0
  %3666 = vmatprep.subr.mxu0 0.0
  %3667 = vmatpush1.msra.mxu0 0.0
  %3668 = vmatprep.subr.mxu0 0.0
  %3669 = vmatpush1.msra.mxu0 0.0
  %3670 = vmatprep.subr.mxu0 0.0
  %3671 = vmatpush1.msra.mxu0 0.0
  %3672 = vmatprep.subr.mxu0 0.0
  %3673 = vmatpush1.msra.mxu0 %v3645
  %3674 = vmatprep.subr.mxu0 0.0
  %3675 = vmatpush1.msra.mxu0 %v3644
  %3676 = vmatprep.subr.mxu0 0.0
  %3677 = vmatpush1.msra.mxu0 %v3643
  %3678 = vmatprep.subr.mxu0 0.0
  %3679 = vmatpush1.msra.mxu0 %v3642
  %3680 = vmatprep.subr.mxu0 0.0
  %3681 = vmatpush1.msra.mxu0 %v3641
  %3682 = vmatprep.subr.mxu0 0.0
  %3683 = vmatpush1.msra.mxu0 %v3640
  %3684 = vmatprep.subr.mxu0 0.0
  %3685 = vmatpush1.msra.mxu0 %v3639
  %3686 = vmatprep.subr.mxu0 0.0
  %3687 = vmatpush1.msra.mxu0 %v3638
  %3688 = vmatprep.subr.mxu0 0.0
  %3689 = vmatpush2.msra.mxu0 0.0
  %3690 = vmatprep.subr.mxu0 0.0
  %3691 = vmatpush2.msra.mxu0 0.0
  %3692 = vmatprep.subr.mxu0 0.0
  %3693 = vmatpush2.msra.mxu0 0.0
  %3694 = vmatprep.subr.mxu0 0.0
  %3695 = vmatpush2.msra.mxu0 0.0
  %3696 = vmatprep.subr.mxu0 0.0
  %3697 = vmatpush2.msra.mxu0 0.0
  %3698 = vmatprep.subr.mxu0 0.0
  %3699 = vmatpush2.msra.mxu0 0.0
  %3700 = vmatprep.subr.mxu0 0.0
  %3701 = vmatpush2.msra.mxu0 0.0
  %3702 = vmatprep.subr.mxu0 0.0
  %3703 = vmatpush2.msra.mxu0 0.0
  %3704 = vmatprep.subr.mxu0 0.0
  %3705 = vmatpush2.msra.mxu0 0.0
  %3706 = vmatprep.subr.mxu0 0.0
  %3707 = vmatpush2.msra.mxu0 0.0
  %3708 = vmatprep.subr.mxu0 0.0
  %3709 = vmatpush2.msra.mxu0 0.0
  %3710 = vmatprep.subr.mxu0 0.0
  %3711 = vmatpush2.msra.mxu0 0.0
  %3712 = vmatprep.subr.mxu0 0.0
  %3713 = vmatpush2.msra.mxu0 0.0
  %3714 = vmatprep.subr.mxu0 0.0
  %3715 = vmatpush2.msra.mxu0 0.0
  %3716 = vmatprep.subr.mxu0 0.0
  %3717 = vmatpush2.msra.mxu0 0.0
  %3718 = vmatprep.subr.mxu0 0.0
  %3719 = vmatpush2.msra.mxu0 0.0
  %3720 = vmatprep.mubr.f32.mxu0 0.0
  %3721 = vmatmul.mubr.f32.gmra.mxu0 %v3654
  %v3722 = vpop.f32.mrf.mxu0
  %v3723 = vadd.f32 %v3651, %v3722
  %v3724 = vpop.f32.mrf.mxu0
  %3725 = vdwg.mxu0
  %v3726 = vxor.u32 %v3723, 2147483648
  %v3727 = vmul.f32 %v3726, 1.442695
  %v3728 = vpow.pop %v3727
  %v3729 = vadd.f32 %v3728, 1.0
  %v3730 = vrcp.pop %v3729
  %v3731 = vmul.f32 1.0, %v3730
  %vm3732 = vcmask 23552
  %3733 = vst.msk [vmem:[%s8] sm:$0xff] %vm3732, %v3731
  // Predicated region
  $region34: #{bilstm_forward.1} parent=0 // pred_check
    _
  $region35: #{bilstm_forward.1} parent=0 // pred_check_branch
    %3735 = sbr.rel (0) target = $region37
  $region36: #{bilstm_forward.1} parent=0 // pred_region
    _
  $region37: #{bilstm_forward.1} parent=0 // pred_fallthru
    _
  // Predicated region
  $region38: #{bilstm_forward.1} parent=0 // pred_check
    _
  $region39: #{bilstm_forward.1} parent=0 // pred_check_branch
    %3737 = sbr.rel (0) target = $region41
  $region40: #{bilstm_forward.1} parent=0 // pred_region
    _
  $region41: #{bilstm_forward.1} parent=0 // pred_fallthru
    _

</llo_original>
